<compile_context>
chip_gen: v7x
topology: tpu7x:2x2x1
jax: 0.10.0
libtpu: 0.0.40
codegen_flags: <defaults>
</compile_context>

<pallas_src>
import functools

import jax
import jax.numpy as jnp
from jax.experimental import pallas as pl
from jax.experimental.pallas import tpu as pltpu

_LANE = 128


def _round_up(x, m):
    return (x + m - 1) // m * m


# ----------------------------------------------------------------------------
# Fused kernel:
#   [optional per-channel affine + ReLU on the input (previous layer's BN)]
#   -> zero-padded halo built in VMEM
#   -> 3x3 "same" conv as ONE im2col MXU matmul
#   -> per-channel sum / sum-of-squares accumulated across the batch axis.
# One batch element per grid step; channels are pre-padded to multiples of 128.
# ----------------------------------------------------------------------------
def _conv3x3_fused_kernel(x_ref, w_ref, scale_ref, shift_ref,
                          y_ref, sum_ref, sq_ref,
                          xp_ref, col_ref,
                          *, H, W, Cin, Cout, apply_prologue):
    @pl.when(pl.program_id(0) == 0)
    def _():
        sum_ref[...] = jnp.zeros_like(sum_ref)
        sq_ref[...] = jnp.zeros_like(sq_ref)

    x = x_ref[0]                                          # (H, W, Cin) f32
    if apply_prologue:
        # Previous layer's BatchNorm affine + ReLU, fused into this conv's
        # input path (eliminates one full activation write+read to HBM).
        x = jnp.maximum(x * scale_ref[0] + shift_ref[0], 0.0)

    # Build the zero-padded tile in VMEM AFTER the prologue so the conv's
    # "same" zero border stays exactly zero (matches PyTorch padding=1).
    xp_ref[...] = jnp.zeros_like(xp_ref)
    xp_ref[1:H + 1, 1:W + 1, :] = x
    xp = xp_ref[...]                                      # (H+2, W+2, Cin)

    # im2col: one lane-dense (H*W, 9*Cin) slab, then a single MXU matmul
    # against the pre-flattened (9*Cin, Cout) weight.
    t = 0
    for dh in range(3):
        for dw in range(3):
            col_ref[:, t * Cin:(t + 1) * Cin] = (
                xp[dh:dh + H, dw:dw + W, :].reshape(H * W, Cin))
            t += 1

    y = jnp.dot(col_ref[...], w_ref[...],
                preferred_element_type=jnp.float32)       # (H*W, Cout)
    y_ref[0] = y.reshape(H, W, Cout)

    # BatchNorm statistics for THIS layer, accumulated across the batch axis.
    sum_ref[0] = sum_ref[0] + jnp.sum(y, axis=0)
    sq_ref[0] = sq_ref[0] + jnp.sum(y * y, axis=0)


def conv3x3_bn_stats(x_nhwc, w_flat, scale, shift, *, apply_prologue):
    """3x3 same-conv (+optional fused input affine+ReLU) + BN stat reduction."""
    N, H, W, Cin = x_nhwc.shape
    Cout = w_flat.shape[-1]
    kern = functools.partial(_conv3x3_fused_kernel, H=H, W=W, Cin=Cin,
                             Cout=Cout, apply_prologue=apply_prologue)
    y, s, sq = pl.pallas_call(
        kern,
        out_shape=(jax.ShapeDtypeStruct((N, H, W, Cout), jnp.float32),
                   jax.ShapeDtypeStruct((1, Cout), jnp.float32),
                   jax.ShapeDtypeStruct((1, Cout), jnp.float32)),
        grid_spec=pltpu.PrefetchScalarGridSpec(
            num_scalar_prefetch=0,
            grid=(N,),
            in_specs=[
                pl.BlockSpec((1, H, W, Cin), lambda n: (n, 0, 0, 0)),
                pl.BlockSpec((9 * Cin, Cout), lambda n: (0, 0)),
                pl.BlockSpec((1, Cin), lambda n: (0, 0)),
                pl.BlockSpec((1, Cin), lambda n: (0, 0)),
            ],
            out_specs=(
                pl.BlockSpec((1, H, W, Cout), lambda n: (n, 0, 0, 0)),
                pl.BlockSpec((1, Cout), lambda n: (0, 0)),
                pl.BlockSpec((1, Cout), lambda n: (0, 0)),
            ),
            scratch_shapes=[
                pltpu.VMEM((H + 2, W + 2, Cin), jnp.float32),   # padded tile
                pltpu.VMEM((H * W, 9 * Cin), jnp.float32),      # im2col slab
            ],
        ),
        # Batch axis carries the stats accumulators -> must be "arbitrary".
        compiler_params=pltpu.CompilerParams(
            dimension_semantics=("arbitrary",)),
    )(x_nhwc, w_flat, scale, shift)
    return y, s[0], sq[0]


# ----------------------------------------------------------------------------
# Elementwise BN affine + ReLU for the final layer (lane-dense channels).
# ----------------------------------------------------------------------------
def _bn_relu_kernel(y_ref, scale_ref, shift_ref, o_ref):
    o_ref[0] = jnp.maximum(y_ref[0] * scale_ref[0] + shift_ref[0], 0.0)


def bn_relu(y_nhwc, scale, shift):
    N, H, W, C = y_nhwc.shape
    return pl.pallas_call(
        _bn_relu_kernel,
        out_shape=jax.ShapeDtypeStruct((N, H, W, C), jnp.float32),
        grid_spec=pltpu.PrefetchScalarGridSpec(
            num_scalar_prefetch=0,
            grid=(N,),
            in_specs=[
                pl.BlockSpec((1, H, W, C), lambda n: (n, 0, 0, 0)),
                pl.BlockSpec((1, C), lambda n: (0, 0)),
                pl.BlockSpec((1, C), lambda n: (0, 0)),
            ],
            out_specs=pl.BlockSpec((1, H, W, C), lambda n: (n, 0, 0, 0)),
        ),
        compiler_params=pltpu.CompilerParams(
            dimension_semantics=("parallel",)),
    )(y_nhwc, scale, shift)


# ----------------------------------------------------------------------------
# DoubleConv forward (PyTorch NCHW / OIHW at the boundary)
# ----------------------------------------------------------------------------
def double_conv(x_nchw, w1_oihw, g1, b1, w2_oihw, g2, b2, eps=1e-5):
    N, Cin, H, W = x_nchw.shape
    Cout = w1_oihw.shape[0]
    Cip = _round_up(Cin, _LANE)
    Cop = _round_up(Cout, _LANE)

    # NCHW -> NHWC, pad channels to lane multiples (128) for lane-dense
    # loads/stores and MXU-shaped matmuls.
    x = jnp.transpose(x_nchw, (0, 2, 3, 1)).astype(jnp.float32)
    x = jnp.pad(x, ((0, 0), (0, 0), (0, 0), (0, Cip - Cin)))

    def prep_weight(w_oihw, ci_pad):
        # OIHW -> HWIO, pad (Cin, Cout), flatten to (9*Cin_pad, Cout_pad).
        w = jnp.transpose(w_oihw, (2, 3, 1, 0)).astype(jnp.float32)
        w = jnp.pad(w, ((0, 0), (0, 0),
                        (0, ci_pad - w.shape[2]), (0, Cop - w.shape[3])))
        return w.reshape(9 * ci_pad, Cop)

    w1f = prep_weight(w1_oihw, Cip)
    w2f = prep_weight(w2_oihw, Cop)

    def pad_vec(v):
        return jnp.pad(v.astype(jnp.float32), (0, Cop - v.shape[0]))

    g1p, b1p = pad_vec(g1), pad_vec(b1)
    g2p, b2p = pad_vec(g2), pad_vec(b2)

    count = float(N * H * W)
    ones = jnp.ones((1, Cip), jnp.float32)
    zeros = jnp.zeros((1, Cip), jnp.float32)

    # ---- conv1 (+ BN1 statistics fused into the epilogue) -------------------
    y1, s1, q1 = conv3x3_bn_stats(x, w1f, ones, zeros, apply_prologue=False)
    m1 = s1 / count
    v1 = jnp.maximum(q1 / count - m1 * m1, 0.0)     # biased var, clamped >= 0
    scale1 = g1p / jnp.sqrt(v1 + eps)
    shift1 = b1p - m1 * scale1

    # ---- conv2 with BN1+ReLU fused into the input prologue (+ BN2 stats) ----
    y2, s2, q2 = conv3x3_bn_stats(y1, w2f, scale1.reshape(1, Cop),
                                  shift1.reshape(1, Cop), apply_prologue=True)
    m2 = s2 / count
    v2 = jnp.maximum(q2 / count - m2 * m2, 0.0)
    scale2 = g2p / jnp.sqrt(v2 + eps)
    shift2 = b2p - m2 * scale2

    # ---- final BN2 affine + ReLU --------------------------------------------
    a2 = bn_relu(y2, scale2.reshape(1, Cop), shift2.reshape(1, Cop))

    # strip channel padding, NHWC -> NCHW
    return jnp.transpose(a2[..., :Cout], (0, 3, 1, 2))


# ----------------------------------------------------------------------------
# Pure-JAX reference (for correctness check)
# ----------------------------------------------------------------------------
def _ref_double_conv(x, w1, g1, b1, w2, g2, b2, eps=1e-5):
    def conv(x, w):
        return jax.lax.conv_general_dilated(
            x, w, (1, 1), ((1, 1), (1, 1)),
            dimension_numbers=("NCHW", "OIHW", "NCHW"))

    def bnr(y, g, b):
        m = jnp.mean(y, axis=(0, 2, 3), keepdims=True)
        v = jnp.mean((y - m) ** 2, axis=(0, 2, 3), keepdims=True)
        yn = (y - m) / jnp.sqrt(v + eps)
        yn = yn * g.reshape(1, -1, 1, 1) + b.reshape(1, -1, 1, 1)
        return jnp.maximum(yn, 0.0)

    return bnr(conv(bnr(conv(x, w1), g1, b1), w2), g2, b2)


if __name__ == "__main__":
    N, Cin, Cout, H, W = 2, 4, 8, 16, 16

    key = jax.random.PRNGKey(0)
    kx, kw1, kw2 = jax.random.split(key, 3)

    x = jax.random.normal(kx, (N, Cin, H, W), jnp.float32)           # NCHW
    w1 = jax.random.normal(kw1, (Cout, Cin, 3, 3), jnp.float32) * 0.2
    w2 = jax.random.normal(kw2, (Cout, Cout, 3, 3), jnp.float32) * 0.2
    # BatchNorm2d default init: weight (gamma) = 1, bias (beta) = 0
    g1 = jnp.ones((Cout,), jnp.float32)
    b1 = jnp.zeros((Cout,), jnp.float32)
    g2 = jnp.ones((Cout,), jnp.float32)
    b2 = jnp.zeros((Cout,), jnp.float32)

    out = double_conv(x, w1, g1, b1, w2, g2, b2)
    out = jax.block_until_ready(out)

    ref = _ref_double_conv(x, w1, g1, b1, w2, g2, b2)
    assert out.shape == (N, Cout, H, W), out.shape
    assert jnp.allclose(out, ref, atol=1e-3, rtol=1e-3), (
        float(jnp.max(jnp.abs(out - ref))))

    print("KERNEL_OK")
</pallas_src>

<mosaic_0001>
module attributes {stable_mosaic.version = 11 : i64} {
  func.func @_conv3x3_fused_kernel(%arg0: i32, %arg1: memref<1x16x16x128xf32, #tpu.memory_space<vmem>>, %arg2: memref<1152x128xf32, #tpu.memory_space<vmem>>, %arg3: memref<1x128xf32, #tpu.memory_space<vmem>>, %arg4: memref<1x128xf32, #tpu.memory_space<vmem>>, %arg5: memref<1x16x16x128xf32, #tpu.memory_space<vmem>>, %arg6: memref<1x128xf32, #tpu.memory_space<vmem>>, %arg7: memref<1x128xf32, #tpu.memory_space<vmem>>, %arg8: memref<18x18x128xf32, #tpu.memory_space<vmem>>, %arg9: memref<256x1152xf32, #tpu.memory_space<vmem>>) attributes {dimension_semantics = [#tpu.dimension_semantics<arbitrary>], iteration_bounds = array<i64: 2>, scalar_prefetch = 0 : i64, scratch_operands = 2 : i64, tpu.core_type = #tpu.core_type<tc>, window_params = [{transform_indices = @transform_0, window_bounds = array<i64: 1, 16, 16, 128>}, {pipeline_mode = #tpu.pipeline_mode<synchronous>, transform_indices = @transform_1, window_bounds = array<i64: 1152, 128>}, {pipeline_mode = #tpu.pipeline_mode<synchronous>, transform_indices = @transform_2, window_bounds = array<i64: 1, 128>}, {pipeline_mode = #tpu.pipeline_mode<synchronous>, transform_indices = @transform_3, window_bounds = array<i64: 1, 128>}, {transform_indices = @transform_4, window_bounds = array<i64: 1, 16, 16, 128>}, {pipeline_mode = #tpu.pipeline_mode<synchronous>, transform_indices = @transform_5, window_bounds = array<i64: 1, 128>}, {pipeline_mode = #tpu.pipeline_mode<synchronous>, transform_indices = @transform_6, window_bounds = array<i64: 1, 128>}]} {
    %c0_i32 = arith.constant 0 : i32
    %0 = arith.cmpi eq, %arg0, %c0_i32 : i32
    %1 = arith.extui %0 : i1 to i32
    %c0_i32_0 = arith.constant 0 : i32
    %2 = arith.cmpi ne, %1, %c0_i32_0 : i32
    scf.if %2 {
      %cst_41 = arith.constant 0.000000e+00 : f32
      %58 = vector.broadcast %cst_41 : f32 to vector<1x128xf32>
      %c0_42 = arith.constant 0 : index
      %c0_43 = arith.constant 0 : index
      %59 = vector.load %arg6[%c0_42, %c0_43] : memref<1x128xf32, #tpu.memory_space<vmem>>, vector<1x128xf32>
      tpu.vector_store %arg6[%c0_42, %c0_43], %58 {strides = array<i32>} : memref<1x128xf32, #tpu.memory_space<vmem>>, vector<1x128xf32>,
      %cst_44 = arith.constant 0.000000e+00 : f32
      %60 = vector.broadcast %cst_44 : f32 to vector<1x128xf32>
      %c0_45 = arith.constant 0 : index
      %c0_46 = arith.constant 0 : index
      %61 = vector.load %arg7[%c0_45, %c0_46] : memref<1x128xf32, #tpu.memory_space<vmem>>, vector<1x128xf32>
      tpu.vector_store %arg7[%c0_45, %c0_46], %60 {strides = array<i32>} : memref<1x128xf32, #tpu.memory_space<vmem>>, vector<1x128xf32>,
    } else {
    }
    %c0 = arith.constant 0 : index
    %c0_1 = arith.constant 0 : index
    %c0_2 = arith.constant 0 : index
    %c0_3 = arith.constant 0 : index
    %3 = vector.load %arg1[%c0, %c0_1, %c0_2, %c0_3] : memref<1x16x16x128xf32, #tpu.memory_space<vmem>>, vector<1x16x16x128xf32>
    %4 = vector.shape_cast %3 : vector<1x16x16x128xf32> to vector<16x16x128xf32>
    %cst = arith.constant 0.000000e+00 : f32
    %5 = vector.broadcast %cst : f32 to vector<18x18x128xf32>
    %c0_4 = arith.constant 0 : index
    %c0_5 = arith.constant 0 : index
    %c0_6 = arith.constant 0 : index
    %6 = vector.load %arg8[%c0_4, %c0_5, %c0_6] : memref<18x18x128xf32, #tpu.memory_space<vmem>>, vector<18x18x128xf32>
    tpu.vector_store %arg8[%c0_4, %c0_5, %c0_6], %5 {strides = array<i32>} : memref<18x18x128xf32, #tpu.memory_space<vmem>>, vector<18x18x128xf32>,
    %c1 = arith.constant 1 : index
    %c1_7 = arith.constant 1 : index
    %c0_8 = arith.constant 0 : index
    %7 = vector.load %arg8[%c1, %c1_7, %c0_8] : memref<18x18x128xf32, #tpu.memory_space<vmem>>, vector<16x16x128xf32>
    tpu.vector_store %arg8[%c1, %c1_7, %c0_8], %4 {strides = array<i32>} : memref<18x18x128xf32, #tpu.memory_space<vmem>>, vector<16x16x128xf32>,
    %c0_9 = arith.constant 0 : index
    %c0_10 = arith.constant 0 : index
    %c0_11 = arith.constant 0 : index
    %8 = vector.load %arg8[%c0_9, %c0_10, %c0_11] : memref<18x18x128xf32, #tpu.memory_space<vmem>>, vector<18x18x128xf32>
    %9 = vector.extract_strided_slice %8 {offsets = [0, 0, 0], sizes = [16, 16, 128], strides = [1, 1, 1]} : vector<18x18x128xf32> to vector<16x16x128xf32>
    %10 = vector.shape_cast %9 : vector<16x16x128xf32> to vector<256x128xf32>
    %c0_12 = arith.constant 0 : index
    %c0_13 = arith.constant 0 : index
    %11 = vector.load %arg9[%c0_12, %c0_13] : memref<256x1152xf32, #tpu.memory_space<vmem>>, vector<256x128xf32>
    tpu.vector_store %arg9[%c0_12, %c0_13], %10 {strides = array<i32>} : memref<256x1152xf32, #tpu.memory_space<vmem>>, vector<256x128xf32>,
    %12 = vector.extract_strided_slice %8 {offsets = [0, 1, 0], sizes = [16, 16, 128], strides = [1, 1, 1]} : vector<18x18x128xf32> to vector<16x16x128xf32>
    %13 = vector.shape_cast %12 : vector<16x16x128xf32> to vector<256x128xf32>
    %c0_14 = arith.constant 0 : index
    %c128 = arith.constant 128 : index
    %14 = vector.load %arg9[%c0_14, %c128] : memref<256x1152xf32, #tpu.memory_space<vmem>>, vector<256x128xf32>
    tpu.vector_store %arg9[%c0_14, %c128], %13 {strides = array<i32>} : memref<256x1152xf32, #tpu.memory_space<vmem>>, vector<256x128xf32>,
    %15 = vector.extract_strided_slice %8 {offsets = [0, 2, 0], sizes = [16, 16, 128], strides = [1, 1, 1]} : vector<18x18x128xf32> to vector<16x16x128xf32>
    %16 = vector.shape_cast %15 : vector<16x16x128xf32> to vector<256x128xf32>
    %c0_15 = arith.constant 0 : index
    %c256 = arith.constant 256 : index
    %17 = vector.load %arg9[%c0_15, %c256] : memref<256x1152xf32, #tpu.memory_space<vmem>>, vector<256x128xf32>
    tpu.vector_store %arg9[%c0_15, %c256], %16 {strides = array<i32>} : memref<256x1152xf32, #tpu.memory_space<vmem>>, vector<256x128xf32>,
    %18 = vector.extract_strided_slice %8 {offsets = [1, 0, 0], sizes = [16, 16, 128], strides = [1, 1, 1]} : vector<18x18x128xf32> to vector<16x16x128xf32>
    %19 = vector.shape_cast %18 : vector<16x16x128xf32> to vector<256x128xf32>
    %c0_16 = arith.constant 0 : index
    %c384 = arith.constant 384 : index
    %20 = vector.load %arg9[%c0_16, %c384] : memref<256x1152xf32, #tpu.memory_space<vmem>>, vector<256x128xf32>
    tpu.vector_store %arg9[%c0_16, %c384], %19 {strides = array<i32>} : memref<256x1152xf32, #tpu.memory_space<vmem>>, vector<256x128xf32>,
    %21 = vector.extract_strided_slice %8 {offsets = [1, 1, 0], sizes = [16, 16, 128], strides = [1, 1, 1]} : vector<18x18x128xf32> to vector<16x16x128xf32>
    %22 = vector.shape_cast %21 : vector<16x16x128xf32> to vector<256x128xf32>
    %c0_17 = arith.constant 0 : index
    %c512 = arith.constant 512 : index
    %23 = vector.load %arg9[%c0_17, %c512] : memref<256x1152xf32, #tpu.memory_space<vmem>>, vector<256x128xf32>
    tpu.vector_store %arg9[%c0_17, %c512], %22 {strides = array<i32>} : memref<256x1152xf32, #tpu.memory_space<vmem>>, vector<256x128xf32>,
    %24 = vector.extract_strided_slice %8 {offsets = [1, 2, 0], sizes = [16, 16, 128], strides = [1, 1, 1]} : vector<18x18x128xf32> to vector<16x16x128xf32>
    %25 = vector.shape_cast %24 : vector<16x16x128xf32> to vector<256x128xf32>
    %c0_18 = arith.constant 0 : index
    %c640 = arith.constant 640 : index
    %26 = vector.load %arg9[%c0_18, %c640] : memref<256x1152xf32, #tpu.memory_space<vmem>>, vector<256x128xf32>
    tpu.vector_store %arg9[%c0_18, %c640], %25 {strides = array<i32>} : memref<256x1152xf32, #tpu.memory_space<vmem>>, vector<256x128xf32>,
    %27 = vector.extract_strided_slice %8 {offsets = [2, 0, 0], sizes = [16, 16, 128], strides = [1, 1, 1]} : vector<18x18x128xf32> to vector<16x16x128xf32>
    %28 = vector.shape_cast %27 : vector<16x16x128xf32> to vector<256x128xf32>
    %c0_19 = arith.constant 0 : index
    %c768 = arith.constant 768 : index
    %29 = vector.load %arg9[%c0_19, %c768] : memref<256x1152xf32, #tpu.memory_space<vmem>>, vector<256x128xf32>
    tpu.vector_store %arg9[%c0_19, %c768], %28 {strides = array<i32>} : memref<256x1152xf32, #tpu.memory_space<vmem>>, vector<256x128xf32>,
    %30 = vector.extract_strided_slice %8 {offsets = [2, 1, 0], sizes = [16, 16, 128], strides = [1, 1, 1]} : vector<18x18x128xf32> to vector<16x16x128xf32>
    %31 = vector.shape_cast %30 : vector<16x16x128xf32> to vector<256x128xf32>
    %c0_20 = arith.constant 0 : index
    %c896 = arith.constant 896 : index
    %32 = vector.load %arg9[%c0_20, %c896] : memref<256x1152xf32, #tpu.memory_space<vmem>>, vector<256x128xf32>
    tpu.vector_store %arg9[%c0_20, %c896], %31 {strides = array<i32>} : memref<256x1152xf32, #tpu.memory_space<vmem>>, vector<256x128xf32>,
    %33 = vector.extract_strided_slice %8 {offsets = [2, 2, 0], sizes = [16, 16, 128], strides = [1, 1, 1]} : vector<18x18x128xf32> to vector<16x16x128xf32>
    %34 = vector.shape_cast %33 : vector<16x16x128xf32> to vector<256x128xf32>
    %c0_21 = arith.constant 0 : index
    %c1024 = arith.constant 1024 : index
    %35 = vector.load %arg9[%c0_21, %c1024] : memref<256x1152xf32, #tpu.memory_space<vmem>>, vector<256x128xf32>
    tpu.vector_store %arg9[%c0_21, %c1024], %34 {strides = array<i32>} : memref<256x1152xf32, #tpu.memory_space<vmem>>, vector<256x128xf32>,
    %c0_22 = arith.constant 0 : index
    %c0_23 = arith.constant 0 : index
    %36 = vector.load %arg9[%c0_22, %c0_23] : memref<256x1152xf32, #tpu.memory_space<vmem>>, vector<256x1152xf32>
    %c0_24 = arith.constant 0 : index
    %c0_25 = arith.constant 0 : index
    %37 = vector.load %arg2[%c0_24, %c0_25] : memref<1152x128xf32, #tpu.memory_space<vmem>>, vector<1152x128xf32>
    %cst_26 = arith.constant dense<0.000000e+00> : vector<256x128xf32>
    %38 = tpu.matmul %36, %37, %cst_26 {dimension_numbers = #tpu.dot_dimension_numbers<[1], [0], [0], [1], [0, 0, 1, 1], [], []>} : vector<256x1152xf32>, vector<1152x128xf32>, vector<256x128xf32> -> vector<256x128xf32>
    %39 = vector.shape_cast %38 : vector<256x128xf32> to vector<16x16x128xf32>
    %c0_27 = arith.constant 0 : index
    %c0_28 = arith.constant 0 : index
    %c0_29 = arith.constant 0 : index
    %c0_30 = arith.constant 0 : index
    %40 = vector.load %arg5[%c0_27, %c0_28, %c0_29, %c0_30] : memref<1x16x16x128xf32, #tpu.memory_space<vmem>>, vector<1x16x16x128xf32>
    %41 = vector.shape_cast %40 : vector<1x16x16x128xf32> to vector<16x16x128xf32>
    %42 = vector.shape_cast %39 : vector<16x16x128xf32> to vector<1x16x16x128xf32>
    tpu.vector_store %arg5[%c0_27, %c0_28, %c0_29, %c0_30], %42 {strides = array<i32>} : memref<1x16x16x128xf32, #tpu.memory_space<vmem>>, vector<1x16x16x128xf32>,
    %c0_31 = arith.constant 0 : index
    %c0_32 = arith.constant 0 : index
    %43 = vector.load %arg6[%c0_31, %c0_32] : memref<1x128xf32, #tpu.memory_space<vmem>>, vector<1x128xf32>
    %44 = vector.shape_cast %43 : vector<1x128xf32> to vector<128xf32>
    %cst_33 = arith.constant dense<0.000000e+00> : vector<128xf32>
    %45 = vector.multi_reduction <add>, %38, %cst_33 [0] : vector<256x128xf32> to vector<128xf32>
    %46 = arith.addf %44, %45 : vector<128xf32>
    %c0_34 = arith.constant 0 : index
    %c0_35 = arith.constant 0 : index
    %47 = vector.load %arg6[%c0_34, %c0_35] : memref<1x128xf32, #tpu.memory_space<vmem>>, vector<1x128xf32>
    %48 = vector.shape_cast %47 : vector<1x128xf32> to vector<128xf32>
    %49 = vector.shape_cast %46 : vector<128xf32> to vector<1x128xf32>
    tpu.vector_store %arg6[%c0_34, %c0_35], %49 {strides = array<i32>} : memref<1x128xf32, #tpu.memory_space<vmem>>, vector<1x128xf32>,
    %c0_36 = arith.constant 0 : index
    %c0_37 = arith.constant 0 : index
    %50 = vector.load %arg7[%c0_36, %c0_37] : memref<1x128xf32, #tpu.memory_space<vmem>>, vector<1x128xf32>
    %51 = vector.shape_cast %50 : vector<1x128xf32> to vector<128xf32>
    %52 = arith.mulf %38, %38 : vector<256x128xf32>
    %cst_38 = arith.constant dense<0.000000e+00> : vector<128xf32>
    %53 = vector.multi_reduction <add>, %52, %cst_38 [0] : vector<256x128xf32> to vector<128xf32>
    %54 = arith.addf %51, %53 : vector<128xf32>
    %c0_39 = arith.constant 0 : index
    %c0_40 = arith.constant 0 : index
    %55 = vector.load %arg7[%c0_39, %c0_40] : memref<1x128xf32, #tpu.memory_space<vmem>>, vector<1x128xf32>
    %56 = vector.shape_cast %55 : vector<1x128xf32> to vector<128xf32>
    %57 = vector.shape_cast %54 : vector<128xf32> to vector<1x128xf32>
    tpu.vector_store %arg7[%c0_39, %c0_40], %57 {strides = array<i32>} : memref<1x128xf32, #tpu.memory_space<vmem>>, vector<1x128xf32>,
    return
  }
  func.func @transform_0(%arg0: i32) -> (i32, i32, i32, i32) {
    %c0_i32 = arith.constant 0 : i32
    %c0_i32_0 = arith.constant 0 : i32
    %c0_i32_1 = arith.constant 0 : i32
    %c0_i32_2 = arith.constant 0 : i32
    return %arg0, %c0_i32, %c0_i32_0, %c0_i32_1 : i32, i32, i32, i32
  }
  func.func @transform_1(%arg0: i32) -> (i32, i32) {
    %c0_i32 = arith.constant 0 : i32
    %c0_i32_0 = arith.constant 0 : i32
    %c0_i32_1 = arith.constant 0 : i32
    return %c0_i32, %c0_i32_0 : i32, i32
  }
  func.func @transform_2(%arg0: i32) -> (i32, i32) {
    %c0_i32 = arith.constant 0 : i32
    %c0_i32_0 = arith.constant 0 : i32
    %c0_i32_1 = arith.constant 0 : i32
    return %c0_i32, %c0_i32_0 : i32, i32
  }
  func.func @transform_3(%arg0: i32) -> (i32, i32) {
    %c0_i32 = arith.constant 0 : i32
    %c0_i32_0 = arith.constant 0 : i32
    %c0_i32_1 = arith.constant 0 : i32
    return %c0_i32, %c0_i32_0 : i32, i32
  }
  func.func @transform_4(%arg0: i32) -> (i32, i32, i32, i32) {
    %c0_i32 = arith.constant 0 : i32
    %c0_i32_0 = arith.constant 0 : i32
    %c0_i32_1 = arith.constant 0 : i32
    %c0_i32_2 = arith.constant 0 : i32
    return %arg0, %c0_i32, %c0_i32_0, %c0_i32_1 : i32, i32, i32, i32
  }
  func.func @transform_5(%arg0: i32) -> (i32, i32) {
    %c0_i32 = arith.constant 0 : i32
    %c0_i32_0 = arith.constant 0 : i32
    %c0_i32_1 = arith.constant 0 : i32
    return %c0_i32, %c0_i32_0 : i32, i32
  }
  func.func @transform_6(%arg0: i32) -> (i32, i32) {
    %c0_i32 = arith.constant 0 : i32
    %c0_i32_0 = arith.constant 0 : i32
    %c0_i32_1 = arith.constant 0 : i32
    return %c0_i32, %c0_i32_0 : i32, i32
  }
}

</mosaic_0001>

<llo_original>
// kernel: tpu_custom_call.1
$region0: #{tpu_custom_call.1}
  #allocation0 [shape = 'u32[]', space=smem, size = 0x4, offset = 0x4, fixed_abs, tag = 'smem constant byte address 0x4 - core index']
  #allocation1 [shape = 'u32[144,128]{1,0:T(1,128)}', space=vmem, size = 0x12000, scoped, tag = 'internal scratch']
  #allocation2 [shape = 'f32[18,18,128]{2,1,0:T(8,128)}', space=vmem, size = 0x36000, scoped, tag = 'scratch operand']
  #allocation3 [shape = 'f32[256,1152]{1,0:T(8,128)}', space=vmem, size = 0x120000, scoped, tag = 'scratch operand']
  %s0 = inlined_call_operand.hbm [shape: f32[2,16,16,128], index: 0, kind: input, shape index: {}]
  %s1 = inlined_call_operand.hbm [shape: f32[1152,128], index: 1, kind: input, shape index: {}]
  %s2 = inlined_call_operand.vmem [shape: f32[1,128], index: 2, kind: input, shape index: {}]
  %s3 = inlined_call_operand.vmem [shape: f32[1,128], index: 3, kind: input, shape index: {}]
  %s4 = inlined_call_operand.hbm [shape: f32[2,16,16,128], index: 4, kind: output, shape index: {0}]
  %s5 = inlined_call_operand.hbm [shape: f32[1,128], index: 5, kind: output, shape index: {1}]
  %s6 = inlined_call_operand.hbm [shape: f32[1,128], index: 6, kind: output, shape index: {2}]
  %7 = xla_tuple %s4, %s5, %s6
  %s8 = sld [smem:[#allocation0]]
  $region77: #{tpu_custom_call.1} parent=0
    _
  %s10 = ssub.s32 1, %s8
  %s11 = scalar_select 0, %s10, %s8
  $region1: #{tpu_custom_call.1} parent=0
    #allocation4 [shape = 'u8[262144]{0}', space=vmem, size = 0x40000, scoped, tag = 'input window, operand 0']
    #allocation5 [shape = 's32[2]{0}', space=sflag, size = 0x8, scoped, tag = 'scoped memory for tpu_custom_call.1']
    #allocation6 [shape = 's32[2]{0}', space=sflag, size = 0x8, scoped, tag = 'scoped memory for tpu_custom_call.1']
    #allocation7 [shape = 'u8[589824]{0}', space=vmem, size = 0x90000, scoped, tag = 'input window, operand 1, single buffered']
    #allocation8 [shape = 's32[1]{0}', space=sflag, size = 0x4, scoped, tag = 'scoped memory for tpu_custom_call.1']
    #allocation9 [shape = 'u8[262144]{0}', space=vmem, size = 0x40000, scoped, tag = 'output window, operand 0']
    #allocation10 [shape = 'u8[512]{0}', space=vmem, size = 0x400, scoped, tag = 'output window, operand 1, single buffered']
    #allocation11 [shape = 's32[1]{0}', space=sflag, size = 0x4, scoped, tag = 'scoped memory for tpu_custom_call.1']
    #allocation12 [shape = 'u8[512]{0}', space=vmem, size = 0x400, scoped, tag = 'output window, operand 2, single buffered']
    %12 = vsyncpa [#allocation5], 0
    %s13 = scalar_lea.sflag [#allocation5], 1
    %14 = vsyncpa %s13, 0
    %15 = vsyncpa [#allocation8], 0
    %16 = vsyncpa [#allocation6], 0
    %s17 = scalar_lea.sflag [#allocation6], 1
    %18 = vsyncpa %s17, 0
    %19 = vsyncpa [#allocation11], 0
    loop: start=0, step=1, limit=4
    $region2: #{tpu_custom_call.1} parent=1 // loop_pre_header
      _
    $region3: #{tpu_custom_call.1} parent=1 // loop_header
      %s21 = sphi 0, %s25
      %p22 = scmp.ge.s32.totalorder %s21, 4
      %s31 = sphi 0, %s33
      %s34 = sphi 0, %s31
      %s35 = sphi 0, %s34
      %s51 = sphi 0, %s35
      %s55 = sphi 0, %s55
      %s57 = sphi 0, %s55
      %s58 = sphi 0, %s57
      %s72 = sphi 0, %s58
      %s76 = sphi 0, %s76
      %s78 = sphi 0, %s76
      %s79 = sphi 0, %s78
      %s93 = sphi 0, %s79
      %s97 = sphi 0, %s97
      %s99 = sphi 0, %s97
      %s100 = sphi 0, %s99
      %s114 = sphi 0, %s100
      %s120 = sphi 0, %s122
      %s123 = sphi 0, %s120
      %s124 = sphi 0, %s123
      %s140 = sphi 0, %s124
      %s144 = sphi 0, %s144
      %s146 = sphi 0, %s144
      %s147 = sphi 0, %s146
      %s161 = sphi 0, %s147
      %s165 = sphi 0, %s165
      %s167 = sphi 0, %s165
      %s168 = sphi 0, %s167
      %s182 = sphi 0, %s168
    $region4: #{tpu_custom_call.1} parent=1 // loop_header_branch
      %24 = sbr.rel (%p22) target = $region8
    $region5: #{tpu_custom_call.1} parent=1 // loop_body
      %s26 = ssub.s32 %s21, 1
      %s27 = ssub.s32 %s21, 2
      %s28 = sadd.s32 %s21, 1
      %s29 = ssub.s32 %s21, %s28
      %p30 = scmp.eq.s32.totalorder %s29, 0
      %s32 = sadd.s32 %s31, 1
      %s33 = scalar_select %p30, %s31, %s32
      %p36 = pneg %p30
      %p37 = scmp.eq.s32.totalorder %s21, 1
      %p38 = por %p36, %p37
      %p39 = scmp.ne.s32.totalorder %s31, %s34
      %p40 = scmp.eq.s32.totalorder %s21, 0
      %p41 = por %p39, %p40
      %p42 = scmp.ne.s32.totalorder %s31, %s34
      %p43 = scmp.eq.s32.totalorder %s26, 1
      %p44 = por %p42, %p43
      %p45 = scmp.ne.s32.totalorder %s34, %s35
      %p46 = scmp.eq.s32.totalorder %s26, 0
      %p47 = por %p45, %p46
      %p48 = scmp.ne.s32.totalorder %s34, %s35
      %p49 = scmp.eq.s32.totalorder %s27, 1
      %p50 = por %p48, %p49
      %p52 = scmp.ne.s32.totalorder %s35, %s51
      %p53 = scmp.eq.s32.totalorder %s27, 0
      %p54 = por %p52, %p53
      %s56 = sadd.s32 %s55, 1
      %p59 = scmp.eq.s32.totalorder %s21, 1
      %p60 = scmp.ne.s32.totalorder %s55, %s57
      %p61 = scmp.eq.s32.totalorder %s21, 0
      %p62 = por %p60, %p61
      %p63 = scmp.ne.s32.totalorder %s55, %s57
      %p64 = scmp.eq.s32.totalorder %s26, 1
      %p65 = por %p63, %p64
      %p66 = scmp.ne.s32.totalorder %s57, %s58
      %p67 = scmp.eq.s32.totalorder %s26, 0
      %p68 = por %p66, %p67
      %p69 = scmp.ne.s32.totalorder %s57, %s58
      %p70 = scmp.eq.s32.totalorder %s27, 1
      %p71 = por %p69, %p70
      %p73 = scmp.ne.s32.totalorder %s58, %s72
      %p74 = scmp.eq.s32.totalorder %s27, 0
      %p75 = por %p73, %p74
      %s77 = sadd.s32 %s76, 1
      %p80 = scmp.eq.s32.totalorder %s21, 1
      %p81 = scmp.ne.s32.totalorder %s76, %s78
      %p82 = scmp.eq.s32.totalorder %s21, 0
      %p83 = por %p81, %p82
      %p84 = scmp.ne.s32.totalorder %s76, %s78
      %p85 = scmp.eq.s32.totalorder %s26, 1
      %p86 = por %p84, %p85
      %p87 = scmp.ne.s32.totalorder %s78, %s79
      %p88 = scmp.eq.s32.totalorder %s26, 0
      %p89 = por %p87, %p88
      %p90 = scmp.ne.s32.totalorder %s78, %s79
      %p91 = scmp.eq.s32.totalorder %s27, 1
      %p92 = por %p90, %p91
      %p94 = scmp.ne.s32.totalorder %s79, %s93
      %p95 = scmp.eq.s32.totalorder %s27, 0
      %p96 = por %p94, %p95
      %s98 = sadd.s32 %s97, 1
      %p101 = scmp.eq.s32.totalorder %s21, 1
      %p102 = scmp.ne.s32.totalorder %s97, %s99
      %p103 = scmp.eq.s32.totalorder %s21, 0
      %p104 = por %p102, %p103
      %p105 = scmp.ne.s32.totalorder %s97, %s99
      %p106 = scmp.eq.s32.totalorder %s26, 1
      %p107 = por %p105, %p106
      %p108 = scmp.ne.s32.totalorder %s99, %s100
      %p109 = scmp.eq.s32.totalorder %s26, 0
      %p110 = por %p108, %p109
      %p111 = scmp.ne.s32.totalorder %s99, %s100
      %p112 = scmp.eq.s32.totalorder %s27, 1
      %p113 = por %p111, %p112
      %p115 = scmp.ne.s32.totalorder %s100, %s114
      %p116 = scmp.eq.s32.totalorder %s27, 0
      %p117 = por %p115, %p116
      %s118 = ssub.s32 %s21, %s28
      %p119 = scmp.eq.s32.totalorder %s118, 0
      %s121 = sadd.s32 %s120, 1
      %s122 = scalar_select %p119, %s120, %s121
      %p125 = pneg %p119
      %p126 = scmp.eq.s32.totalorder %s21, 1
      %p127 = por %p125, %p126
      %p128 = scmp.ne.s32.totalorder %s120, %s123
      %p129 = scmp.eq.s32.totalorder %s21, 0
      %p130 = por %p128, %p129
      %p131 = scmp.ne.s32.totalorder %s120, %s123
      %p132 = scmp.eq.s32.totalorder %s26, 1
      %p133 = por %p131, %p132
      %p134 = scmp.ne.s32.totalorder %s123, %s124
      %p135 = scmp.eq.s32.totalorder %s26, 0
      %p136 = por %p134, %p135
      %p137 = scmp.ne.s32.totalorder %s123, %s124
      %p138 = scmp.eq.s32.totalorder %s27, 1
      %p139 = por %p137, %p138
      %p141 = scmp.ne.s32.totalorder %s124, %s140
      %p142 = scmp.eq.s32.totalorder %s27, 0
      %p143 = por %p141, %p142
      %s145 = sadd.s32 %s144, 1
      %p148 = scmp.eq.s32.totalorder %s21, 1
      %p149 = scmp.ne.s32.totalorder %s144, %s146
      %p150 = scmp.eq.s32.totalorder %s21, 0
      %p151 = por %p149, %p150
      %p152 = scmp.ne.s32.totalorder %s144, %s146
      %p153 = scmp.eq.s32.totalorder %s26, 1
      %p154 = por %p152, %p153
      %p155 = scmp.ne.s32.totalorder %s146, %s147
      %p156 = scmp.eq.s32.totalorder %s26, 0
      %p157 = por %p155, %p156
      %p158 = scmp.ne.s32.totalorder %s146, %s147
      %p159 = scmp.eq.s32.totalorder %s27, 1
      %p160 = por %p158, %p159
      %p162 = scmp.ne.s32.totalorder %s147, %s161
      %p163 = scmp.eq.s32.totalorder %s27, 0
      %p164 = por %p162, %p163
      %s166 = sadd.s32 %s165, 1
      %p169 = scmp.eq.s32.totalorder %s21, 1
      %p170 = scmp.ne.s32.totalorder %s165, %s167
      %p171 = scmp.eq.s32.totalorder %s21, 0
      %p172 = por %p170, %p171
      %p173 = scmp.ne.s32.totalorder %s165, %s167
      %p174 = scmp.eq.s32.totalorder %s26, 1
      %p175 = por %p173, %p174
      %p176 = scmp.ne.s32.totalorder %s167, %s168
      %p177 = scmp.eq.s32.totalorder %s26, 0
      %p178 = por %p176, %p177
      %p179 = scmp.ne.s32.totalorder %s167, %s168
      %p180 = scmp.eq.s32.totalorder %s27, 1
      %p181 = por %p179, %p180
      %p183 = scmp.ne.s32.totalorder %s168, %s182
      %p184 = scmp.eq.s32.totalorder %s27, 0
      %p185 = por %p183, %p184
      %p186 = scmp.le.s32.totalorder 1, %s21
      %p187 = scmp.lt.s32.totalorder %s21, 3
      %p188 = pnand %p186, %p187
      %p189 = pneg %p188
      // Predicated region
      $region9: #{tpu_custom_call.1} parent=5 // pred_check
        _
      $region10: #{tpu_custom_call.1} parent=5 // pred_check_branch
        %191 = sbr.rel (%p188) target = $region12
      $region11: #{tpu_custom_call.1} parent=5 // pred_region
        %s192 = ssub.s32 %s21, 1
        // Predicated region
        $region13: #{tpu_custom_call.1} parent=11 // pred_check
          %p193 = pneg %p68
        $region14: #{tpu_custom_call.1} parent=11 // pred_check_branch
          %195 = sbr.rel (%p193) target = $region16
        $region15: #{tpu_custom_call.1} parent=11 // pred_region
          %s197 = ssub.s32 18432, 18432
          %198 = vsyncadd [#allocation8], %s197
          %s199 = sshll.u32 [#allocation7], 4
          %s200 = int_to_ptr.vmem [resolvable:$true] %s199
          %205 = dma.hbm_to_vmem [thread:$0]  %s1, 18432, %s200, [#allocation8], 128, 128, 8
        $region16: #{tpu_custom_call.1} parent=11 // pred_fallthru
          _
        // Predicated region
        $region17: #{tpu_custom_call.1} parent=11 // pred_check
          %p206 = pneg %p89
        $region18: #{tpu_custom_call.1} parent=11 // pred_check_branch
          %208 = sbr.rel (%p206) target = $region20
        $region19: #{tpu_custom_call.1} parent=11 // pred_region
          _
        $region20: #{tpu_custom_call.1} parent=11 // pred_fallthru
          _
        // Predicated region
        $region21: #{tpu_custom_call.1} parent=11 // pred_check
          %p209 = pneg %p110
        $region22: #{tpu_custom_call.1} parent=11 // pred_check_branch
          %211 = sbr.rel (%p209) target = $region24
        $region23: #{tpu_custom_call.1} parent=11 // pred_region
          _
        $region24: #{tpu_custom_call.1} parent=11 // pred_fallthru
          _
      $region12: #{tpu_custom_call.1} parent=5 // pred_fallthru
        _
      %p212 = scmp.lt.s32.totalorder %s21, 2
      // Predicated region
      $region25: #{tpu_custom_call.1} parent=5 // pred_check
        %p213 = pneg %p212
      $region26: #{tpu_custom_call.1} parent=5 // pred_check_branch
        %215 = sbr.rel (%p213) target = $region28
      $region27: #{tpu_custom_call.1} parent=5 // pred_region
        // Predicated region
        $region29: #{tpu_custom_call.1} parent=27 // pred_check
          %p216 = pneg %p41
        $region30: #{tpu_custom_call.1} parent=27 // pred_check_branch
          %218 = sbr.rel (%p216) target = $region32
        $region31: #{tpu_custom_call.1} parent=27 // pred_region
          %s219 = sand.u32 %s31, 1
          %s220 = scalar_lea.sflag [#allocation5], %s219
          %s221 = sand.u32 %s31, 1
          %s222 = smul.addr %s221, 256
          %s223 = scalar_lea.vmem [#allocation4], %s222
          %s225 = ssub.s32 4096, 4096
          %226 = vsyncadd %s220, %s225
          %s227 = smul.addr %s21, 32
          %s228 = smul.addr %s227, 128
          %s229 = scalar_lea.hbm %s0, %s228
          %s230 = sshll.u32 %s223, 4
          %s231 = int_to_ptr.vmem [resolvable:$true] %s230
          %236 = dma.hbm_to_vmem [thread:$0]  %s229, 4096, %s231, %s220, 128, 128, 8
        $region32: #{tpu_custom_call.1} parent=27 // pred_fallthru
          _
      $region28: #{tpu_custom_call.1} parent=5 // pred_fallthru
        _
      %p237 = scmp.le.s32.totalorder 1, %s21
      %p238 = scmp.lt.s32.totalorder %s21, 3
      %p239 = pnand %p237, %p238
      %p240 = pneg %p239
      // Predicated region
      $region33: #{tpu_custom_call.1} parent=5 // pred_check
        _
      $region34: #{tpu_custom_call.1} parent=5 // pred_check_branch
        %242 = sbr.rel (%p239) target = $region36
      $region35: #{tpu_custom_call.1} parent=5 // pred_region
        %s243 = ssub.s32 %s21, 1
        %s244 = sand.u32 %s34, 1
        %s245 = scalar_lea.sflag [#allocation5], %s244
        %s246 = sand.u32 %s34, 1
        %s247 = smul.addr %s246, 256
        %s248 = scalar_lea.vmem [#allocation4], %s247
        // Predicated region
        $region37: #{tpu_custom_call.1} parent=35 // pred_check
          %p249 = pneg %p47
        $region38: #{tpu_custom_call.1} parent=35 // pred_check_branch
          %251 = sbr.rel (%p249) target = $region40
        $region39: #{tpu_custom_call.1} parent=35 // pred_region
          %252 = dma.done %s245, 4096
        $region40: #{tpu_custom_call.1} parent=35 // pred_fallthru
          _
        // Predicated region
        $region41: #{tpu_custom_call.1} parent=35 // pred_check
          %p253 = pneg %p68
        $region42: #{tpu_custom_call.1} parent=35 // pred_check_branch
          %255 = sbr.rel (%p253) target = $region44
        $region43: #{tpu_custom_call.1} parent=35 // pred_region
          %256 = dma.done [#allocation8], 18432
        $region44: #{tpu_custom_call.1} parent=35 // pred_fallthru
          _
        %s257 = sand.u32 %s34, 1
        %s258 = scalar_lea.sflag [#allocation5], %s257
        %s259 = sand.u32 %s34, 1
        %s260 = smul.addr %s259, 256
        %s261 = scalar_lea.vmem [#allocation4], %s260
        %p262 = pneg %p47
        %p263 = pneg %p44
        %p264 = pneg %p68
        %p265 = pneg %p65
        %p266 = pneg %p89
        %p267 = pneg %p86
        %p268 = pneg %p110
        %p269 = pneg %p107
        %p270 = pneg %p136
        %p271 = pneg %p133
        %s272 = sand.u32 %s123, 1
        %s273 = scalar_lea.sflag [#allocation6], %s272
        %s274 = sand.u32 %s123, 1
        %s275 = smul.addr %s274, 256
        %s276 = scalar_lea.vmem [#allocation9], %s275
        %p277 = pneg %p157
        %p278 = pneg %p154
        %p279 = pneg %p178
        %p280 = pneg %p175
        %p281 = scmp.eq.s32.totalorder %s26, 0
        // Predicated region
        $region45: #{tpu_custom_call.1} parent=35 // pred_check
          %p282 = pneg %p281
        $region46: #{tpu_custom_call.1} parent=35 // pred_check_branch
          %284 = sbr.rel (%p282) target = $region48
        $region47: #{tpu_custom_call.1} parent=35 // pred_region
          %285 = vst [vmem:[#allocation10] sm:$0x1] 0.0
          %286 = vst [vmem:[#allocation12] sm:$0x1] 0.0
        $region48: #{tpu_custom_call.1} parent=35 // pred_fallthru
          _
        %v287 = vld [vmem:[%s248] sm:$0xff]
        %v288 = vld [vmem:[%s248 + $0x8] sm:$0xff]
        %v289 = vld [vmem:[%s248 + $0x10] sm:$0xff]
        %v290 = vld [vmem:[%s248 + $0x18] sm:$0xff]
        %v291 = vld [vmem:[%s248 + $0x20] sm:$0xff]
        %v292 = vld [vmem:[%s248 + $0x28] sm:$0xff]
        %v293 = vld [vmem:[%s248 + $0x30] sm:$0xff]
        %v294 = vld [vmem:[%s248 + $0x38] sm:$0xff]
        %v295 = vld [vmem:[%s248 + $0x40] sm:$0xff]
        %v296 = vld [vmem:[%s248 + $0x48] sm:$0xff]
        %v297 = vld [vmem:[%s248 + $0x50] sm:$0xff]
        %v298 = vld [vmem:[%s248 + $0x58] sm:$0xff]
        %v299 = vld [vmem:[%s248 + $0x60] sm:$0xff]
        %v300 = vld [vmem:[%s248 + $0x68] sm:$0xff]
        %v301 = vld [vmem:[%s248 + $0x70] sm:$0xff]
        %v302 = vld [vmem:[%s248 + $0x78] sm:$0xff]
        %v303 = vld [vmem:[%s248 + $0x80] sm:$0xff]
        %v304 = vld [vmem:[%s248 + $0x88] sm:$0xff]
        %v305 = vld [vmem:[%s248 + $0x90] sm:$0xff]
        %v306 = vld [vmem:[%s248 + $0x98] sm:$0xff]
        %v307 = vld [vmem:[%s248 + $0xa0] sm:$0xff]
        %v308 = vld [vmem:[%s248 + $0xa8] sm:$0xff]
        %v309 = vld [vmem:[%s248 + $0xb0] sm:$0xff]
        %v310 = vld [vmem:[%s248 + $0xb8] sm:$0xff]
        %v311 = vld [vmem:[%s248 + $0xc0] sm:$0xff]
        %v312 = vld [vmem:[%s248 + $0xc8] sm:$0xff]
        %v313 = vld [vmem:[%s248 + $0xd0] sm:$0xff]
        %v314 = vld [vmem:[%s248 + $0xd8] sm:$0xff]
        %v315 = vld [vmem:[%s248 + $0xe0] sm:$0xff]
        %v316 = vld [vmem:[%s248 + $0xe8] sm:$0xff]
        %v317 = vld [vmem:[%s248 + $0xf0] sm:$0xff]
        %v318 = vld [vmem:[%s248 + $0xf8] sm:$0xff]
        %319 = vst [vmem:[#allocation2] sm:$0xff] 0.0
        %320 = vst [vmem:[#allocation2 + $0x8] sm:$0xff] 0.0
        %321 = vst [vmem:[#allocation2 + $0x10] sm:$0x3] 0.0
        %322 = vst [vmem:[#allocation2 + $0x18] sm:$0xff] 0.0
        %323 = vst [vmem:[#allocation2 + $0x20] sm:$0xff] 0.0
        %324 = vst [vmem:[#allocation2 + $0x28] sm:$0x3] 0.0
        %325 = vst [vmem:[#allocation2 + $0x30] sm:$0xff] 0.0
        %326 = vst [vmem:[#allocation2 + $0x38] sm:$0xff] 0.0
        %327 = vst [vmem:[#allocation2 + $0x40] sm:$0x3] 0.0
        %328 = vst [vmem:[#allocation2 + $0x48] sm:$0xff] 0.0
        %329 = vst [vmem:[#allocation2 + $0x50] sm:$0xff] 0.0
        %330 = vst [vmem:[#allocation2 + $0x58] sm:$0x3] 0.0
        %331 = vst [vmem:[#allocation2 + $0x60] sm:$0xff] 0.0
        %332 = vst [vmem:[#allocation2 + $0x68] sm:$0xff] 0.0
        %333 = vst [vmem:[#allocation2 + $0x70] sm:$0x3] 0.0
        %334 = vst [vmem:[#allocation2 + $0x78] sm:$0xff] 0.0
        %335 = vst [vmem:[#allocation2 + $0x80] sm:$0xff] 0.0
        %336 = vst [vmem:[#allocation2 + $0x88] sm:$0x3] 0.0
        %337 = vst [vmem:[#allocation2 + $0x90] sm:$0xff] 0.0
        %338 = vst [vmem:[#allocation2 + $0x98] sm:$0xff] 0.0
        %339 = vst [vmem:[#allocation2 + $0xa0] sm:$0x3] 0.0
        %340 = vst [vmem:[#allocation2 + $0xa8] sm:$0xff] 0.0
        %341 = vst [vmem:[#allocation2 + $0xb0] sm:$0xff] 0.0
        %342 = vst [vmem:[#allocation2 + $0xb8] sm:$0x3] 0.0
        %343 = vst [vmem:[#allocation2 + $0xc0] sm:$0xff] 0.0
        %344 = vst [vmem:[#allocation2 + $0xc8] sm:$0xff] 0.0
        %345 = vst [vmem:[#allocation2 + $0xd0] sm:$0x3] 0.0
        %346 = vst [vmem:[#allocation2 + $0xd8] sm:$0xff] 0.0
        %347 = vst [vmem:[#allocation2 + $0xe0] sm:$0xff] 0.0
        %348 = vst [vmem:[#allocation2 + $0xe8] sm:$0x3] 0.0
        %349 = vst [vmem:[#allocation2 + $0xf0] sm:$0xff] 0.0
        %350 = vst [vmem:[#allocation2 + $0xf8] sm:$0xff] 0.0
        %351 = vst [vmem:[#allocation2 + $0x100] sm:$0x3] 0.0
        %352 = vst [vmem:[#allocation2 + $0x108] sm:$0xff] 0.0
        %353 = vst [vmem:[#allocation2 + $0x110] sm:$0xff] 0.0
        %354 = vst [vmem:[#allocation2 + $0x118] sm:$0x3] 0.0
        %355 = vst [vmem:[#allocation2 + $0x120] sm:$0xff] 0.0
        %356 = vst [vmem:[#allocation2 + $0x128] sm:$0xff] 0.0
        %357 = vst [vmem:[#allocation2 + $0x130] sm:$0x3] 0.0
        %358 = vst [vmem:[#allocation2 + $0x138] sm:$0xff] 0.0
        %359 = vst [vmem:[#allocation2 + $0x140] sm:$0xff] 0.0
        %360 = vst [vmem:[#allocation2 + $0x148] sm:$0x3] 0.0
        %361 = vst [vmem:[#allocation2 + $0x150] sm:$0xff] 0.0
        %362 = vst [vmem:[#allocation2 + $0x158] sm:$0xff] 0.0
        %363 = vst [vmem:[#allocation2 + $0x160] sm:$0x3] 0.0
        %364 = vst [vmem:[#allocation2 + $0x168] sm:$0xff] 0.0
        %365 = vst [vmem:[#allocation2 + $0x170] sm:$0xff] 0.0
        %366 = vst [vmem:[#allocation2 + $0x178] sm:$0x3] 0.0
        %367 = vst [vmem:[#allocation2 + $0x180] sm:$0xff] 0.0
        %368 = vst [vmem:[#allocation2 + $0x188] sm:$0xff] 0.0
        %369 = vst [vmem:[#allocation2 + $0x190] sm:$0x3] 0.0
        %370 = vst [vmem:[#allocation2 + $0x198] sm:$0xff] 0.0
        %371 = vst [vmem:[#allocation2 + $0x1a0] sm:$0xff] 0.0
        %372 = vst [vmem:[#allocation2 + $0x1a8] sm:$0x3] 0.0
        %s373 = scalar_lea.vmem [#allocation2], 24
        %374 = vst [vmem:[%s373 + $0x1] sm:$0xff] %v287
        %375 = vst [vmem:[%s373 + $0x9] sm:$0xff] %v288
        %376 = vst [vmem:[%s373 + $0x19] sm:$0xff] %v289
        %377 = vst [vmem:[%s373 + $0x21] sm:$0xff] %v290
        %378 = vst [vmem:[%s373 + $0x31] sm:$0xff] %v291
        %379 = vst [vmem:[%s373 + $0x39] sm:$0xff] %v292
        %380 = vst [vmem:[%s373 + $0x49] sm:$0xff] %v293
        %381 = vst [vmem:[%s373 + $0x51] sm:$0xff] %v294
        %382 = vst [vmem:[%s373 + $0x61] sm:$0xff] %v295
        %383 = vst [vmem:[%s373 + $0x69] sm:$0xff] %v296
        %384 = vst [vmem:[%s373 + $0x79] sm:$0xff] %v297
        %385 = vst [vmem:[%s373 + $0x81] sm:$0xff] %v298
        %386 = vst [vmem:[%s373 + $0x91] sm:$0xff] %v299
        %387 = vst [vmem:[%s373 + $0x99] sm:$0xff] %v300
        %388 = vst [vmem:[%s373 + $0xa9] sm:$0xff] %v301
        %389 = vst [vmem:[%s373 + $0xb1] sm:$0xff] %v302
        %390 = vst [vmem:[%s373 + $0xc1] sm:$0xff] %v303
        %391 = vst [vmem:[%s373 + $0xc9] sm:$0xff] %v304
        %392 = vst [vmem:[%s373 + $0xd9] sm:$0xff] %v305
        %393 = vst [vmem:[%s373 + $0xe1] sm:$0xff] %v306
        %394 = vst [vmem:[%s373 + $0xf1] sm:$0xff] %v307
        %395 = vst [vmem:[%s373 + $0xf9] sm:$0xff] %v308
        %396 = vst [vmem:[%s373 + $0x109] sm:$0xff] %v309
        %397 = vst [vmem:[%s373 + $0x111] sm:$0xff] %v310
        %398 = vst [vmem:[%s373 + $0x121] sm:$0xff] %v311
        %399 = vst [vmem:[%s373 + $0x129] sm:$0xff] %v312
        %400 = vst [vmem:[%s373 + $0x139] sm:$0xff] %v313
        %401 = vst [vmem:[%s373 + $0x141] sm:$0xff] %v314
        %402 = vst [vmem:[%s373 + $0x151] sm:$0xff] %v315
        %403 = vst [vmem:[%s373 + $0x159] sm:$0xff] %v316
        %404 = vst [vmem:[%s373 + $0x169] sm:$0xff] %v317
        %405 = vst [vmem:[%s373 + $0x171] sm:$0xff] %v318
        %v406 = vld [vmem:[#allocation2] sm:$0xff]
        %v407 = vld [vmem:[#allocation2 + $0x8] sm:$0xff]
        %v408 = vld [vmem:[#allocation2 + $0x10] sm:$0x3]
        %v409 = vld [vmem:[#allocation2 + $0x18] sm:$0xff]
        %v410 = vld [vmem:[#allocation2 + $0x20] sm:$0xff]
        %v411 = vld [vmem:[#allocation2 + $0x28] sm:$0x3]
        %v412 = vld [vmem:[#allocation2 + $0x30] sm:$0xff]
        %v413 = vld [vmem:[#allocation2 + $0x38] sm:$0xff]
        %v414 = vld [vmem:[#allocation2 + $0x40] sm:$0x3]
        %v415 = vld [vmem:[#allocation2 + $0x48] sm:$0xff]
        %v416 = vld [vmem:[#allocation2 + $0x50] sm:$0xff]
        %v417 = vld [vmem:[#allocation2 + $0x58] sm:$0x3]
        %v418 = vld [vmem:[#allocation2 + $0x60] sm:$0xff]
        %v419 = vld [vmem:[#allocation2 + $0x68] sm:$0xff]
        %v420 = vld [vmem:[#allocation2 + $0x70] sm:$0x3]
        %v421 = vld [vmem:[#allocation2 + $0x78] sm:$0xff]
        %v422 = vld [vmem:[#allocation2 + $0x80] sm:$0xff]
        %v423 = vld [vmem:[#allocation2 + $0x88] sm:$0x3]
        %v424 = vld [vmem:[#allocation2 + $0x90] sm:$0xff]
        %v425 = vld [vmem:[#allocation2 + $0x98] sm:$0xff]
        %v426 = vld [vmem:[#allocation2 + $0xa0] sm:$0x3]
        %v427 = vld [vmem:[#allocation2 + $0xa8] sm:$0xff]
        %v428 = vld [vmem:[#allocation2 + $0xb0] sm:$0xff]
        %v429 = vld [vmem:[#allocation2 + $0xb8] sm:$0x3]
        %v430 = vld [vmem:[#allocation2 + $0xc0] sm:$0xff]
        %v431 = vld [vmem:[#allocation2 + $0xc8] sm:$0xff]
        %v432 = vld [vmem:[#allocation2 + $0xd0] sm:$0x3]
        %v433 = vld [vmem:[#allocation2 + $0xd8] sm:$0xff]
        %v434 = vld [vmem:[#allocation2 + $0xe0] sm:$0xff]
        %v435 = vld [vmem:[#allocation2 + $0xe8] sm:$0x3]
        %v436 = vld [vmem:[#allocation2 + $0xf0] sm:$0xff]
        %v437 = vld [vmem:[#allocation2 + $0xf8] sm:$0xff]
        %v438 = vld [vmem:[#allocation2 + $0x100] sm:$0x3]
        %v439 = vld [vmem:[#allocation2 + $0x108] sm:$0xff]
        %v440 = vld [vmem:[#allocation2 + $0x110] sm:$0xff]
        %v441 = vld [vmem:[#allocation2 + $0x118] sm:$0x3]
        %v442 = vld [vmem:[#allocation2 + $0x120] sm:$0xff]
        %v443 = vld [vmem:[#allocation2 + $0x128] sm:$0xff]
        %v444 = vld [vmem:[#allocation2 + $0x130] sm:$0x3]
        %v445 = vld [vmem:[#allocation2 + $0x138] sm:$0xff]
        %v446 = vld [vmem:[#allocation2 + $0x140] sm:$0xff]
        %v447 = vld [vmem:[#allocation2 + $0x148] sm:$0x3]
        %v448 = vld [vmem:[#allocation2 + $0x150] sm:$0xff]
        %v449 = vld [vmem:[#allocation2 + $0x158] sm:$0xff]
        %v450 = vld [vmem:[#allocation2 + $0x160] sm:$0x3]
        %v451 = vld [vmem:[#allocation2 + $0x168] sm:$0xff]
        %v452 = vld [vmem:[#allocation2 + $0x170] sm:$0xff]
        %v453 = vld [vmem:[#allocation2 + $0x178] sm:$0x3]
        %v454 = vld [vmem:[#allocation2 + $0x180] sm:$0xff]
        %v455 = vld [vmem:[#allocation2 + $0x188] sm:$0xff]
        %v456 = vld [vmem:[#allocation2 + $0x190] sm:$0x3]
        %v457 = vld [vmem:[#allocation2 + $0x198] sm:$0xff]
        %v458 = vld [vmem:[#allocation2 + $0x1a0] sm:$0xff]
        %v459 = vld [vmem:[#allocation2 + $0x1a8] sm:$0x3]
        %460 = vst [vmem:[#allocation3] sm:$0xff] %v406
        %461 = vst [vmem:[#allocation3 + $0x48] sm:$0xff] %v407
        %462 = vst [vmem:[#allocation3 + $0x90] sm:$0xff] %v409
        %463 = vst [vmem:[#allocation3 + $0xd8] sm:$0xff] %v410
        %464 = vst [vmem:[#allocation3 + $0x120] sm:$0xff] %v412
        %465 = vst [vmem:[#allocation3 + $0x168] sm:$0xff] %v413
        %466 = vst [vmem:[#allocation3 + $0x1b0] sm:$0xff] %v415
        %467 = vst [vmem:[#allocation3 + $0x1f8] sm:$0xff] %v416
        %468 = vst [vmem:[#allocation3 + $0x240] sm:$0xff] %v418
        %469 = vst [vmem:[#allocation3 + $0x288] sm:$0xff] %v419
        %470 = vst [vmem:[#allocation3 + $0x2d0] sm:$0xff] %v421
        %471 = vst [vmem:[#allocation3 + $0x318] sm:$0xff] %v422
        %472 = vst [vmem:[#allocation3 + $0x360] sm:$0xff] %v424
        %473 = vst [vmem:[#allocation3 + $0x3a8] sm:$0xff] %v425
        %474 = vst [vmem:[#allocation3 + $0x3f0] sm:$0xff] %v427
        %475 = vst [vmem:[#allocation3 + $0x438] sm:$0xff] %v428
        %476 = vst [vmem:[#allocation3 + $0x480] sm:$0xff] %v430
        %477 = vst [vmem:[#allocation3 + $0x4c8] sm:$0xff] %v431
        %478 = vst [vmem:[#allocation3 + $0x510] sm:$0xff] %v433
        %479 = vst [vmem:[#allocation3 + $0x558] sm:$0xff] %v434
        %480 = vst [vmem:[#allocation3 + $0x5a0] sm:$0xff] %v436
        %481 = vst [vmem:[#allocation3 + $0x5e8] sm:$0xff] %v437
        %482 = vst [vmem:[#allocation3 + $0x630] sm:$0xff] %v439
        %483 = vst [vmem:[#allocation3 + $0x678] sm:$0xff] %v440
        %484 = vst [vmem:[#allocation3 + $0x6c0] sm:$0xff] %v442
        %485 = vst [vmem:[#allocation3 + $0x708] sm:$0xff] %v443
        %486 = vst [vmem:[#allocation3 + $0x750] sm:$0xff] %v445
        %487 = vst [vmem:[#allocation3 + $0x798] sm:$0xff] %v446
        %488 = vst [vmem:[#allocation3 + $0x7e0] sm:$0xff] %v448
        %489 = vst [vmem:[#allocation3 + $0x828] sm:$0xff] %v449
        %490 = vst [vmem:[#allocation3 + $0x870] sm:$0xff] %v451
        %491 = vst [vmem:[#allocation3 + $0x8b8] sm:$0xff] %v452
        %vm540 = vcmask 1046528
        %v541 = vrot.slane %v406, 1
        %v542 = vrot.slane %v407, 1
        %v543 = vsel %vm540, %v541, %v542
        %v544 = vrot.slane %v408, 1
        %v545 = vsel %vm540, %v542, %v544
        %v546 = vrot.slane %v409, 1
        %v547 = vrot.slane %v410, 1
        %v548 = vsel %vm540, %v546, %v547
        %v549 = vrot.slane %v411, 1
        %v550 = vsel %vm540, %v547, %v549
        %v551 = vrot.slane %v412, 1
        %v552 = vrot.slane %v413, 1
        %v553 = vsel %vm540, %v551, %v552
        %v554 = vrot.slane %v414, 1
        %v555 = vsel %vm540, %v552, %v554
        %v556 = vrot.slane %v415, 1
        %v557 = vrot.slane %v416, 1
        %v558 = vsel %vm540, %v556, %v557
        %v559 = vrot.slane %v417, 1
        %v560 = vsel %vm540, %v557, %v559
        %v561 = vrot.slane %v418, 1
        %v562 = vrot.slane %v419, 1
        %v563 = vsel %vm540, %v561, %v562
        %v564 = vrot.slane %v420, 1
        %v565 = vsel %vm540, %v562, %v564
        %v566 = vrot.slane %v421, 1
        %v567 = vrot.slane %v422, 1
        %v568 = vsel %vm540, %v566, %v567
        %v569 = vrot.slane %v423, 1
        %v570 = vsel %vm540, %v567, %v569
        %v571 = vrot.slane %v424, 1
        %v572 = vrot.slane %v425, 1
        %v573 = vsel %vm540, %v571, %v572
        %v574 = vrot.slane %v426, 1
        %v575 = vsel %vm540, %v572, %v574
        %v576 = vrot.slane %v427, 1
        %v577 = vrot.slane %v428, 1
        %v578 = vsel %vm540, %v576, %v577
        %v579 = vrot.slane %v429, 1
        %v580 = vsel %vm540, %v577, %v579
        %v581 = vrot.slane %v430, 1
        %v582 = vrot.slane %v431, 1
        %v583 = vsel %vm540, %v581, %v582
        %v584 = vrot.slane %v432, 1
        %v585 = vsel %vm540, %v582, %v584
        %v586 = vrot.slane %v433, 1
        %v587 = vrot.slane %v434, 1
        %v588 = vsel %vm540, %v586, %v587
        %v589 = vrot.slane %v435, 1
        %v590 = vsel %vm540, %v587, %v589
        %v591 = vrot.slane %v436, 1
        %v592 = vrot.slane %v437, 1
        %v593 = vsel %vm540, %v591, %v592
        %v594 = vrot.slane %v438, 1
        %v595 = vsel %vm540, %v592, %v594
        %v596 = vrot.slane %v439, 1
        %v597 = vrot.slane %v440, 1
        %v598 = vsel %vm540, %v596, %v597
        %v599 = vrot.slane %v441, 1
        %v600 = vsel %vm540, %v597, %v599
        %v601 = vrot.slane %v442, 1
        %v602 = vrot.slane %v443, 1
        %v603 = vsel %vm540, %v601, %v602
        %v604 = vrot.slane %v444, 1
        %v605 = vsel %vm540, %v602, %v604
        %v606 = vrot.slane %v445, 1
        %v607 = vrot.slane %v446, 1
        %v608 = vsel %vm540, %v606, %v607
        %v609 = vrot.slane %v447, 1
        %v610 = vsel %vm540, %v607, %v609
        %v611 = vrot.slane %v448, 1
        %v612 = vrot.slane %v449, 1
        %v613 = vsel %vm540, %v611, %v612
        %v614 = vrot.slane %v450, 1
        %v615 = vsel %vm540, %v612, %v614
        %v616 = vrot.slane %v451, 1
        %v617 = vrot.slane %v452, 1
        %v618 = vsel %vm540, %v616, %v617
        %v619 = vrot.slane %v453, 1
        %v620 = vsel %vm540, %v617, %v619
        %653 = vst [vmem:[#allocation3 + $0x8] sm:$0xff] %v543
        %654 = vst [vmem:[#allocation3 + $0x50] sm:$0xff] %v545
        %655 = vst [vmem:[#allocation3 + $0x98] sm:$0xff] %v548
        %656 = vst [vmem:[#allocation3 + $0xe0] sm:$0xff] %v550
        %657 = vst [vmem:[#allocation3 + $0x128] sm:$0xff] %v553
        %658 = vst [vmem:[#allocation3 + $0x170] sm:$0xff] %v555
        %659 = vst [vmem:[#allocation3 + $0x1b8] sm:$0xff] %v558
        %660 = vst [vmem:[#allocation3 + $0x200] sm:$0xff] %v560
        %661 = vst [vmem:[#allocation3 + $0x248] sm:$0xff] %v563
        %662 = vst [vmem:[#allocation3 + $0x290] sm:$0xff] %v565
        %663 = vst [vmem:[#allocation3 + $0x2d8] sm:$0xff] %v568
        %664 = vst [vmem:[#allocation3 + $0x320] sm:$0xff] %v570
        %665 = vst [vmem:[#allocation3 + $0x368] sm:$0xff] %v573
        %666 = vst [vmem:[#allocation3 + $0x3b0] sm:$0xff] %v575
        %667 = vst [vmem:[#allocation3 + $0x3f8] sm:$0xff] %v578
        %668 = vst [vmem:[#allocation3 + $0x440] sm:$0xff] %v580
        %669 = vst [vmem:[#allocation3 + $0x488] sm:$0xff] %v583
        %670 = vst [vmem:[#allocation3 + $0x4d0] sm:$0xff] %v585
        %671 = vst [vmem:[#allocation3 + $0x518] sm:$0xff] %v588
        %672 = vst [vmem:[#allocation3 + $0x560] sm:$0xff] %v590
        %673 = vst [vmem:[#allocation3 + $0x5a8] sm:$0xff] %v593
        %674 = vst [vmem:[#allocation3 + $0x5f0] sm:$0xff] %v595
        %675 = vst [vmem:[#allocation3 + $0x638] sm:$0xff] %v598
        %676 = vst [vmem:[#allocation3 + $0x680] sm:$0xff] %v600
        %677 = vst [vmem:[#allocation3 + $0x6c8] sm:$0xff] %v603
        %678 = vst [vmem:[#allocation3 + $0x710] sm:$0xff] %v605
        %679 = vst [vmem:[#allocation3 + $0x758] sm:$0xff] %v608
        %680 = vst [vmem:[#allocation3 + $0x7a0] sm:$0xff] %v610
        %681 = vst [vmem:[#allocation3 + $0x7e8] sm:$0xff] %v613
        %682 = vst [vmem:[#allocation3 + $0x830] sm:$0xff] %v615
        %683 = vst [vmem:[#allocation3 + $0x878] sm:$0xff] %v618
        %684 = vst [vmem:[#allocation3 + $0x8c0] sm:$0xff] %v620
        %vm685 = vcmask 1045504
        %v686 = vrot.slane %v406, 2
        %v687 = vrot.slane %v407, 2
        %v688 = vsel %vm685, %v686, %v687
        %v689 = vrot.slane %v408, 2
        %v690 = vsel %vm685, %v687, %v689
        %v691 = vrot.slane %v409, 2
        %v692 = vrot.slane %v410, 2
        %v693 = vsel %vm685, %v691, %v692
        %v694 = vrot.slane %v411, 2
        %v695 = vsel %vm685, %v692, %v694
        %v696 = vrot.slane %v412, 2
        %v697 = vrot.slane %v413, 2
        %v698 = vsel %vm685, %v696, %v697
        %v699 = vrot.slane %v414, 2
        %v700 = vsel %vm685, %v697, %v699
        %v701 = vrot.slane %v415, 2
        %v702 = vrot.slane %v416, 2
        %v703 = vsel %vm685, %v701, %v702
        %v704 = vrot.slane %v417, 2
        %v705 = vsel %vm685, %v702, %v704
        %v706 = vrot.slane %v418, 2
        %v707 = vrot.slane %v419, 2
        %v708 = vsel %vm685, %v706, %v707
        %v709 = vrot.slane %v420, 2
        %v710 = vsel %vm685, %v707, %v709
        %v711 = vrot.slane %v421, 2
        %v712 = vrot.slane %v422, 2
        %v713 = vsel %vm685, %v711, %v712
        %v714 = vrot.slane %v423, 2
        %v715 = vsel %vm685, %v712, %v714
        %v716 = vrot.slane %v424, 2
        %v717 = vrot.slane %v425, 2
        %v718 = vsel %vm685, %v716, %v717
        %v719 = vrot.slane %v426, 2
        %v720 = vsel %vm685, %v717, %v719
        %v721 = vrot.slane %v427, 2
        %v722 = vrot.slane %v428, 2
        %v723 = vsel %vm685, %v721, %v722
        %v724 = vrot.slane %v429, 2
        %v725 = vsel %vm685, %v722, %v724
        %v726 = vrot.slane %v430, 2
        %v727 = vrot.slane %v431, 2
        %v728 = vsel %vm685, %v726, %v727
        %v729 = vrot.slane %v432, 2
        %v730 = vsel %vm685, %v727, %v729
        %v731 = vrot.slane %v433, 2
        %v732 = vrot.slane %v434, 2
        %v733 = vsel %vm685, %v731, %v732
        %v734 = vrot.slane %v435, 2
        %v735 = vsel %vm685, %v732, %v734
        %v736 = vrot.slane %v436, 2
        %v737 = vrot.slane %v437, 2
        %v738 = vsel %vm685, %v736, %v737
        %v739 = vrot.slane %v438, 2
        %v740 = vsel %vm685, %v737, %v739
        %v741 = vrot.slane %v439, 2
        %v742 = vrot.slane %v440, 2
        %v743 = vsel %vm685, %v741, %v742
        %v744 = vrot.slane %v441, 2
        %v745 = vsel %vm685, %v742, %v744
        %v746 = vrot.slane %v442, 2
        %v747 = vrot.slane %v443, 2
        %v748 = vsel %vm685, %v746, %v747
        %v749 = vrot.slane %v444, 2
        %v750 = vsel %vm685, %v747, %v749
        %v751 = vrot.slane %v445, 2
        %v752 = vrot.slane %v446, 2
        %v753 = vsel %vm685, %v751, %v752
        %v754 = vrot.slane %v447, 2
        %v755 = vsel %vm685, %v752, %v754
        %v756 = vrot.slane %v448, 2
        %v757 = vrot.slane %v449, 2
        %v758 = vsel %vm685, %v756, %v757
        %v759 = vrot.slane %v450, 2
        %v760 = vsel %vm685, %v757, %v759
        %v761 = vrot.slane %v451, 2
        %v762 = vrot.slane %v452, 2
        %v763 = vsel %vm685, %v761, %v762
        %v764 = vrot.slane %v453, 2
        %v765 = vsel %vm685, %v762, %v764
        %798 = vst [vmem:[#allocation3 + $0x10] sm:$0xff] %v688
        %799 = vst [vmem:[#allocation3 + $0x58] sm:$0xff] %v690
        %800 = vst [vmem:[#allocation3 + $0xa0] sm:$0xff] %v693
        %801 = vst [vmem:[#allocation3 + $0xe8] sm:$0xff] %v695
        %802 = vst [vmem:[#allocation3 + $0x130] sm:$0xff] %v698
        %803 = vst [vmem:[#allocation3 + $0x178] sm:$0xff] %v700
        %804 = vst [vmem:[#allocation3 + $0x1c0] sm:$0xff] %v703
        %805 = vst [vmem:[#allocation3 + $0x208] sm:$0xff] %v705
        %806 = vst [vmem:[#allocation3 + $0x250] sm:$0xff] %v708
        %807 = vst [vmem:[#allocation3 + $0x298] sm:$0xff] %v710
        %808 = vst [vmem:[#allocation3 + $0x2e0] sm:$0xff] %v713
        %809 = vst [vmem:[#allocation3 + $0x328] sm:$0xff] %v715
        %810 = vst [vmem:[#allocation3 + $0x370] sm:$0xff] %v718
        %811 = vst [vmem:[#allocation3 + $0x3b8] sm:$0xff] %v720
        %812 = vst [vmem:[#allocation3 + $0x400] sm:$0xff] %v723
        %813 = vst [vmem:[#allocation3 + $0x448] sm:$0xff] %v725
        %814 = vst [vmem:[#allocation3 + $0x490] sm:$0xff] %v728
        %815 = vst [vmem:[#allocation3 + $0x4d8] sm:$0xff] %v730
        %816 = vst [vmem:[#allocation3 + $0x520] sm:$0xff] %v733
        %817 = vst [vmem:[#allocation3 + $0x568] sm:$0xff] %v735
        %818 = vst [vmem:[#allocation3 + $0x5b0] sm:$0xff] %v738
        %819 = vst [vmem:[#allocation3 + $0x5f8] sm:$0xff] %v740
        %820 = vst [vmem:[#allocation3 + $0x640] sm:$0xff] %v743
        %821 = vst [vmem:[#allocation3 + $0x688] sm:$0xff] %v745
        %822 = vst [vmem:[#allocation3 + $0x6d0] sm:$0xff] %v748
        %823 = vst [vmem:[#allocation3 + $0x718] sm:$0xff] %v750
        %824 = vst [vmem:[#allocation3 + $0x760] sm:$0xff] %v753
        %825 = vst [vmem:[#allocation3 + $0x7a8] sm:$0xff] %v755
        %826 = vst [vmem:[#allocation3 + $0x7f0] sm:$0xff] %v758
        %827 = vst [vmem:[#allocation3 + $0x838] sm:$0xff] %v760
        %828 = vst [vmem:[#allocation3 + $0x880] sm:$0xff] %v763
        %829 = vst [vmem:[#allocation3 + $0x8c8] sm:$0xff] %v765
        %830 = vst [vmem:[#allocation3 + $0x18] sm:$0xff] %v409
        %831 = vst [vmem:[#allocation3 + $0x60] sm:$0xff] %v410
        %832 = vst [vmem:[#allocation3 + $0xa8] sm:$0xff] %v412
        %833 = vst [vmem:[#allocation3 + $0xf0] sm:$0xff] %v413
        %834 = vst [vmem:[#allocation3 + $0x138] sm:$0xff] %v415
        %835 = vst [vmem:[#allocation3 + $0x180] sm:$0xff] %v416
        %836 = vst [vmem:[#allocation3 + $0x1c8] sm:$0xff] %v418
        %837 = vst [vmem:[#allocation3 + $0x210] sm:$0xff] %v419
        %838 = vst [vmem:[#allocation3 + $0x258] sm:$0xff] %v421
        %839 = vst [vmem:[#allocation3 + $0x2a0] sm:$0xff] %v422
        %840 = vst [vmem:[#allocation3 + $0x2e8] sm:$0xff] %v424
        %841 = vst [vmem:[#allocation3 + $0x330] sm:$0xff] %v425
        %842 = vst [vmem:[#allocation3 + $0x378] sm:$0xff] %v427
        %843 = vst [vmem:[#allocation3 + $0x3c0] sm:$0xff] %v428
        %844 = vst [vmem:[#allocation3 + $0x408] sm:$0xff] %v430
        %845 = vst [vmem:[#allocation3 + $0x450] sm:$0xff] %v431
        %846 = vst [vmem:[#allocation3 + $0x498] sm:$0xff] %v433
        %847 = vst [vmem:[#allocation3 + $0x4e0] sm:$0xff] %v434
        %848 = vst [vmem:[#allocation3 + $0x528] sm:$0xff] %v436
        %849 = vst [vmem:[#allocation3 + $0x570] sm:$0xff] %v437
        %850 = vst [vmem:[#allocation3 + $0x5b8] sm:$0xff] %v439
        %851 = vst [vmem:[#allocation3 + $0x600] sm:$0xff] %v440
        %852 = vst [vmem:[#allocation3 + $0x648] sm:$0xff] %v442
        %853 = vst [vmem:[#allocation3 + $0x690] sm:$0xff] %v443
        %854 = vst [vmem:[#allocation3 + $0x6d8] sm:$0xff] %v445
        %855 = vst [vmem:[#allocation3 + $0x720] sm:$0xff] %v446
        %856 = vst [vmem:[#allocation3 + $0x768] sm:$0xff] %v448
        %857 = vst [vmem:[#allocation3 + $0x7b0] sm:$0xff] %v449
        %858 = vst [vmem:[#allocation3 + $0x7f8] sm:$0xff] %v451
        %859 = vst [vmem:[#allocation3 + $0x840] sm:$0xff] %v452
        %860 = vst [vmem:[#allocation3 + $0x888] sm:$0xff] %v454
        %861 = vst [vmem:[#allocation3 + $0x8d0] sm:$0xff] %v455
        %v865 = vrot.slane %v454, 1
        %v866 = vrot.slane %v455, 1
        %v867 = vsel %vm540, %v865, %v866
        %v868 = vrot.slane %v456, 1
        %v869 = vsel %vm540, %v866, %v868
        %872 = vst [vmem:[#allocation3 + $0x20] sm:$0xff] %v548
        %873 = vst [vmem:[#allocation3 + $0x68] sm:$0xff] %v550
        %874 = vst [vmem:[#allocation3 + $0xb0] sm:$0xff] %v553
        %875 = vst [vmem:[#allocation3 + $0xf8] sm:$0xff] %v555
        %876 = vst [vmem:[#allocation3 + $0x140] sm:$0xff] %v558
        %877 = vst [vmem:[#allocation3 + $0x188] sm:$0xff] %v560
        %878 = vst [vmem:[#allocation3 + $0x1d0] sm:$0xff] %v563
        %879 = vst [vmem:[#allocation3 + $0x218] sm:$0xff] %v565
        %880 = vst [vmem:[#allocation3 + $0x260] sm:$0xff] %v568
        %881 = vst [vmem:[#allocation3 + $0x2a8] sm:$0xff] %v570
        %882 = vst [vmem:[#allocation3 + $0x2f0] sm:$0xff] %v573
        %883 = vst [vmem:[#allocation3 + $0x338] sm:$0xff] %v575
        %884 = vst [vmem:[#allocation3 + $0x380] sm:$0xff] %v578
        %885 = vst [vmem:[#allocation3 + $0x3c8] sm:$0xff] %v580
        %886 = vst [vmem:[#allocation3 + $0x410] sm:$0xff] %v583
        %887 = vst [vmem:[#allocation3 + $0x458] sm:$0xff] %v585
        %888 = vst [vmem:[#allocation3 + $0x4a0] sm:$0xff] %v588
        %889 = vst [vmem:[#allocation3 + $0x4e8] sm:$0xff] %v590
        %890 = vst [vmem:[#allocation3 + $0x530] sm:$0xff] %v593
        %891 = vst [vmem:[#allocation3 + $0x578] sm:$0xff] %v595
        %892 = vst [vmem:[#allocation3 + $0x5c0] sm:$0xff] %v598
        %893 = vst [vmem:[#allocation3 + $0x608] sm:$0xff] %v600
        %894 = vst [vmem:[#allocation3 + $0x650] sm:$0xff] %v603
        %895 = vst [vmem:[#allocation3 + $0x698] sm:$0xff] %v605
        %896 = vst [vmem:[#allocation3 + $0x6e0] sm:$0xff] %v608
        %897 = vst [vmem:[#allocation3 + $0x728] sm:$0xff] %v610
        %898 = vst [vmem:[#allocation3 + $0x770] sm:$0xff] %v613
        %899 = vst [vmem:[#allocation3 + $0x7b8] sm:$0xff] %v615
        %900 = vst [vmem:[#allocation3 + $0x800] sm:$0xff] %v618
        %901 = vst [vmem:[#allocation3 + $0x848] sm:$0xff] %v620
        %902 = vst [vmem:[#allocation3 + $0x890] sm:$0xff] %v867
        %903 = vst [vmem:[#allocation3 + $0x8d8] sm:$0xff] %v869
        %v904 = vrot.slane %v454, 2
        %v905 = vrot.slane %v455, 2
        %v906 = vsel %vm685, %v904, %v905
        %v907 = vrot.slane %v456, 2
        %v908 = vsel %vm685, %v905, %v907
        %911 = vst [vmem:[#allocation3 + $0x28] sm:$0xff] %v693
        %912 = vst [vmem:[#allocation3 + $0x70] sm:$0xff] %v695
        %913 = vst [vmem:[#allocation3 + $0xb8] sm:$0xff] %v698
        %914 = vst [vmem:[#allocation3 + $0x100] sm:$0xff] %v700
        %915 = vst [vmem:[#allocation3 + $0x148] sm:$0xff] %v703
        %916 = vst [vmem:[#allocation3 + $0x190] sm:$0xff] %v705
        %917 = vst [vmem:[#allocation3 + $0x1d8] sm:$0xff] %v708
        %918 = vst [vmem:[#allocation3 + $0x220] sm:$0xff] %v710
        %919 = vst [vmem:[#allocation3 + $0x268] sm:$0xff] %v713
        %920 = vst [vmem:[#allocation3 + $0x2b0] sm:$0xff] %v715
        %921 = vst [vmem:[#allocation3 + $0x2f8] sm:$0xff] %v718
        %922 = vst [vmem:[#allocation3 + $0x340] sm:$0xff] %v720
        %923 = vst [vmem:[#allocation3 + $0x388] sm:$0xff] %v723
        %924 = vst [vmem:[#allocation3 + $0x3d0] sm:$0xff] %v725
        %925 = vst [vmem:[#allocation3 + $0x418] sm:$0xff] %v728
        %926 = vst [vmem:[#allocation3 + $0x460] sm:$0xff] %v730
        %927 = vst [vmem:[#allocation3 + $0x4a8] sm:$0xff] %v733
        %928 = vst [vmem:[#allocation3 + $0x4f0] sm:$0xff] %v735
        %929 = vst [vmem:[#allocation3 + $0x538] sm:$0xff] %v738
        %930 = vst [vmem:[#allocation3 + $0x580] sm:$0xff] %v740
        %931 = vst [vmem:[#allocation3 + $0x5c8] sm:$0xff] %v743
        %932 = vst [vmem:[#allocation3 + $0x610] sm:$0xff] %v745
        %933 = vst [vmem:[#allocation3 + $0x658] sm:$0xff] %v748
        %934 = vst [vmem:[#allocation3 + $0x6a0] sm:$0xff] %v750
        %935 = vst [vmem:[#allocation3 + $0x6e8] sm:$0xff] %v753
        %936 = vst [vmem:[#allocation3 + $0x730] sm:$0xff] %v755
        %937 = vst [vmem:[#allocation3 + $0x778] sm:$0xff] %v758
        %938 = vst [vmem:[#allocation3 + $0x7c0] sm:$0xff] %v760
        %939 = vst [vmem:[#allocation3 + $0x808] sm:$0xff] %v763
        %940 = vst [vmem:[#allocation3 + $0x850] sm:$0xff] %v765
        %941 = vst [vmem:[#allocation3 + $0x898] sm:$0xff] %v906
        %942 = vst [vmem:[#allocation3 + $0x8e0] sm:$0xff] %v908
        %943 = vst [vmem:[#allocation3 + $0x30] sm:$0xff] %v412
        %944 = vst [vmem:[#allocation3 + $0x78] sm:$0xff] %v413
        %945 = vst [vmem:[#allocation3 + $0xc0] sm:$0xff] %v415
        %946 = vst [vmem:[#allocation3 + $0x108] sm:$0xff] %v416
        %947 = vst [vmem:[#allocation3 + $0x150] sm:$0xff] %v418
        %948 = vst [vmem:[#allocation3 + $0x198] sm:$0xff] %v419
        %949 = vst [vmem:[#allocation3 + $0x1e0] sm:$0xff] %v421
        %950 = vst [vmem:[#allocation3 + $0x228] sm:$0xff] %v422
        %951 = vst [vmem:[#allocation3 + $0x270] sm:$0xff] %v424
        %952 = vst [vmem:[#allocation3 + $0x2b8] sm:$0xff] %v425
        %953 = vst [vmem:[#allocation3 + $0x300] sm:$0xff] %v427
        %954 = vst [vmem:[#allocation3 + $0x348] sm:$0xff] %v428
        %955 = vst [vmem:[#allocation3 + $0x390] sm:$0xff] %v430
        %956 = vst [vmem:[#allocation3 + $0x3d8] sm:$0xff] %v431
        %957 = vst [vmem:[#allocation3 + $0x420] sm:$0xff] %v433
        %958 = vst [vmem:[#allocation3 + $0x468] sm:$0xff] %v434
        %959 = vst [vmem:[#allocation3 + $0x4b0] sm:$0xff] %v436
        %960 = vst [vmem:[#allocation3 + $0x4f8] sm:$0xff] %v437
        %961 = vst [vmem:[#allocation3 + $0x540] sm:$0xff] %v439
        %962 = vst [vmem:[#allocation3 + $0x588] sm:$0xff] %v440
        %963 = vst [vmem:[#allocation3 + $0x5d0] sm:$0xff] %v442
        %964 = vst [vmem:[#allocation3 + $0x618] sm:$0xff] %v443
        %965 = vst [vmem:[#allocation3 + $0x660] sm:$0xff] %v445
        %966 = vst [vmem:[#allocation3 + $0x6a8] sm:$0xff] %v446
        %967 = vst [vmem:[#allocation3 + $0x6f0] sm:$0xff] %v448
        %968 = vst [vmem:[#allocation3 + $0x738] sm:$0xff] %v449
        %969 = vst [vmem:[#allocation3 + $0x780] sm:$0xff] %v451
        %970 = vst [vmem:[#allocation3 + $0x7c8] sm:$0xff] %v452
        %971 = vst [vmem:[#allocation3 + $0x810] sm:$0xff] %v454
        %972 = vst [vmem:[#allocation3 + $0x858] sm:$0xff] %v455
        %973 = vst [vmem:[#allocation3 + $0x8a0] sm:$0xff] %v457
        %974 = vst [vmem:[#allocation3 + $0x8e8] sm:$0xff] %v458
        %v978 = vrot.slane %v457, 1
        %v979 = vrot.slane %v458, 1
        %v980 = vsel %vm540, %v978, %v979
        %v981 = vrot.slane %v459, 1
        %v982 = vsel %vm540, %v979, %v981
        %985 = vst [vmem:[#allocation3 + $0x38] sm:$0xff] %v553
        %986 = vst [vmem:[#allocation3 + $0x80] sm:$0xff] %v555
        %987 = vst [vmem:[#allocation3 + $0xc8] sm:$0xff] %v558
        %988 = vst [vmem:[#allocation3 + $0x110] sm:$0xff] %v560
        %989 = vst [vmem:[#allocation3 + $0x158] sm:$0xff] %v563
        %990 = vst [vmem:[#allocation3 + $0x1a0] sm:$0xff] %v565
        %991 = vst [vmem:[#allocation3 + $0x1e8] sm:$0xff] %v568
        %992 = vst [vmem:[#allocation3 + $0x230] sm:$0xff] %v570
        %993 = vst [vmem:[#allocation3 + $0x278] sm:$0xff] %v573
        %994 = vst [vmem:[#allocation3 + $0x2c0] sm:$0xff] %v575
        %995 = vst [vmem:[#allocation3 + $0x308] sm:$0xff] %v578
        %996 = vst [vmem:[#allocation3 + $0x350] sm:$0xff] %v580
        %997 = vst [vmem:[#allocation3 + $0x398] sm:$0xff] %v583
        %998 = vst [vmem:[#allocation3 + $0x3e0] sm:$0xff] %v585
        %999 = vst [vmem:[#allocation3 + $0x428] sm:$0xff] %v588
        %1000 = vst [vmem:[#allocation3 + $0x470] sm:$0xff] %v590
        %1001 = vst [vmem:[#allocation3 + $0x4b8] sm:$0xff] %v593
        %1002 = vst [vmem:[#allocation3 + $0x500] sm:$0xff] %v595
        %1003 = vst [vmem:[#allocation3 + $0x548] sm:$0xff] %v598
        %1004 = vst [vmem:[#allocation3 + $0x590] sm:$0xff] %v600
        %1005 = vst [vmem:[#allocation3 + $0x5d8] sm:$0xff] %v603
        %1006 = vst [vmem:[#allocation3 + $0x620] sm:$0xff] %v605
        %1007 = vst [vmem:[#allocation3 + $0x668] sm:$0xff] %v608
        %1008 = vst [vmem:[#allocation3 + $0x6b0] sm:$0xff] %v610
        %1009 = vst [vmem:[#allocation3 + $0x6f8] sm:$0xff] %v613
        %1010 = vst [vmem:[#allocation3 + $0x740] sm:$0xff] %v615
        %1011 = vst [vmem:[#allocation3 + $0x788] sm:$0xff] %v618
        %1012 = vst [vmem:[#allocation3 + $0x7d0] sm:$0xff] %v620
        %1013 = vst [vmem:[#allocation3 + $0x818] sm:$0xff] %v867
        %1014 = vst [vmem:[#allocation3 + $0x860] sm:$0xff] %v869
        %1015 = vst [vmem:[#allocation3 + $0x8a8] sm:$0xff] %v980
        %1016 = vst [vmem:[#allocation3 + $0x8f0] sm:$0xff] %v982
        %v1017 = vrot.slane %v457, 2
        %v1018 = vrot.slane %v458, 2
        %v1019 = vsel %vm685, %v1017, %v1018
        %v1020 = vrot.slane %v459, 2
        %v1021 = vsel %vm685, %v1018, %v1020
        %1024 = vst [vmem:[#allocation3 + $0x40] sm:$0xff] %v698
        %1025 = vst [vmem:[#allocation3 + $0x88] sm:$0xff] %v700
        %1026 = vst [vmem:[#allocation3 + $0xd0] sm:$0xff] %v703
        %1027 = vst [vmem:[#allocation3 + $0x118] sm:$0xff] %v705
        %1028 = vst [vmem:[#allocation3 + $0x160] sm:$0xff] %v708
        %1029 = vst [vmem:[#allocation3 + $0x1a8] sm:$0xff] %v710
        %1030 = vst [vmem:[#allocation3 + $0x1f0] sm:$0xff] %v713
        %1031 = vst [vmem:[#allocation3 + $0x238] sm:$0xff] %v715
        %1032 = vst [vmem:[#allocation3 + $0x280] sm:$0xff] %v718
        %1033 = vst [vmem:[#allocation3 + $0x2c8] sm:$0xff] %v720
        %1034 = vst [vmem:[#allocation3 + $0x310] sm:$0xff] %v723
        %1035 = vst [vmem:[#allocation3 + $0x358] sm:$0xff] %v725
        %1036 = vst [vmem:[#allocation3 + $0x3a0] sm:$0xff] %v728
        %1037 = vst [vmem:[#allocation3 + $0x3e8] sm:$0xff] %v730
        %1038 = vst [vmem:[#allocation3 + $0x430] sm:$0xff] %v733
        %1039 = vst [vmem:[#allocation3 + $0x478] sm:$0xff] %v735
        %1040 = vst [vmem:[#allocation3 + $0x4c0] sm:$0xff] %v738
        %1041 = vst [vmem:[#allocation3 + $0x508] sm:$0xff] %v740
        %1042 = vst [vmem:[#allocation3 + $0x550] sm:$0xff] %v743
        %1043 = vst [vmem:[#allocation3 + $0x598] sm:$0xff] %v745
        %1044 = vst [vmem:[#allocation3 + $0x5e0] sm:$0xff] %v748
        %1045 = vst [vmem:[#allocation3 + $0x628] sm:$0xff] %v750
        %1046 = vst [vmem:[#allocation3 + $0x670] sm:$0xff] %v753
        %1047 = vst [vmem:[#allocation3 + $0x6b8] sm:$0xff] %v755
        %1048 = vst [vmem:[#allocation3 + $0x700] sm:$0xff] %v758
        %1049 = vst [vmem:[#allocation3 + $0x748] sm:$0xff] %v760
        %1050 = vst [vmem:[#allocation3 + $0x790] sm:$0xff] %v763
        %1051 = vst [vmem:[#allocation3 + $0x7d8] sm:$0xff] %v765
        %1052 = vst [vmem:[#allocation3 + $0x820] sm:$0xff] %v906
        %1053 = vst [vmem:[#allocation3 + $0x868] sm:$0xff] %v908
        %1054 = vst [vmem:[#allocation3 + $0x8b0] sm:$0xff] %v1019
        %1055 = vst [vmem:[#allocation3 + $0x8f8] sm:$0xff] %v1021
        %v1056 = vld [vmem:[#allocation3] sm:$0xff]
        %v1057 = vld [vmem:[#allocation3 + $0x8] sm:$0xff]
        %v1058 = vld [vmem:[#allocation3 + $0x10] sm:$0xff]
        %v1059 = vld [vmem:[#allocation3 + $0x18] sm:$0xff]
        %v1060 = vld [vmem:[#allocation3 + $0x20] sm:$0xff]
        %v1061 = vld [vmem:[#allocation3 + $0x28] sm:$0xff]
        %v1062 = vld [vmem:[#allocation3 + $0x30] sm:$0xff]
        %v1063 = vld [vmem:[#allocation3 + $0x38] sm:$0xff]
        %v1064 = vld [vmem:[#allocation3 + $0x40] sm:$0xff]
        %v1065 = vld [vmem:[#allocation3 + $0x48] sm:$0xff]
        %v1066 = vld [vmem:[#allocation3 + $0x50] sm:$0xff]
        %v1067 = vld [vmem:[#allocation3 + $0x58] sm:$0xff]
        %v1068 = vld [vmem:[#allocation3 + $0x60] sm:$0xff]
        %v1069 = vld [vmem:[#allocation3 + $0x68] sm:$0xff]
        %v1070 = vld [vmem:[#allocation3 + $0x70] sm:$0xff]
        %v1071 = vld [vmem:[#allocation3 + $0x78] sm:$0xff]
        %v1072 = vld [vmem:[#allocation3 + $0x80] sm:$0xff]
        %v1073 = vld [vmem:[#allocation3 + $0x88] sm:$0xff]
        %v1074 = vld [vmem:[#allocation3 + $0x90] sm:$0xff]
        %v1075 = vld [vmem:[#allocation3 + $0x98] sm:$0xff]
        %v1076 = vld [vmem:[#allocation3 + $0xa0] sm:$0xff]
        %v1077 = vld [vmem:[#allocation3 + $0xa8] sm:$0xff]
        %v1078 = vld [vmem:[#allocation3 + $0xb0] sm:$0xff]
        %v1079 = vld [vmem:[#allocation3 + $0xb8] sm:$0xff]
        %v1080 = vld [vmem:[#allocation3 + $0xc0] sm:$0xff]
        %v1081 = vld [vmem:[#allocation3 + $0xc8] sm:$0xff]
        %v1082 = vld [vmem:[#allocation3 + $0xd0] sm:$0xff]
        %v1083 = vld [vmem:[#allocation3 + $0xd8] sm:$0xff]
        %v1084 = vld [vmem:[#allocation3 + $0xe0] sm:$0xff]
        %v1085 = vld [vmem:[#allocation3 + $0xe8] sm:$0xff]
        %v1086 = vld [vmem:[#allocation3 + $0xf0] sm:$0xff]
        %v1087 = vld [vmem:[#allocation3 + $0xf8] sm:$0xff]
        %v1088 = vld [vmem:[#allocation3 + $0x100] sm:$0xff]
        %v1089 = vld [vmem:[#allocation3 + $0x108] sm:$0xff]
        %v1090 = vld [vmem:[#allocation3 + $0x110] sm:$0xff]
        %v1091 = vld [vmem:[#allocation3 + $0x118] sm:$0xff]
        %v1092 = vld [vmem:[#allocation3 + $0x120] sm:$0xff]
        %v1093 = vld [vmem:[#allocation3 + $0x128] sm:$0xff]
        %v1094 = vld [vmem:[#allocation3 + $0x130] sm:$0xff]
        %v1095 = vld [vmem:[#allocation3 + $0x138] sm:$0xff]
        %v1096 = vld [vmem:[#allocation3 + $0x140] sm:$0xff]
        %v1097 = vld [vmem:[#allocation3 + $0x148] sm:$0xff]
        %v1098 = vld [vmem:[#allocation3 + $0x150] sm:$0xff]
        %v1099 = vld [vmem:[#allocation3 + $0x158] sm:$0xff]
        %v1100 = vld [vmem:[#allocation3 + $0x160] sm:$0xff]
        %v1101 = vld [vmem:[#allocation3 + $0x168] sm:$0xff]
        %v1102 = vld [vmem:[#allocation3 + $0x170] sm:$0xff]
        %v1103 = vld [vmem:[#allocation3 + $0x178] sm:$0xff]
        %v1104 = vld [vmem:[#allocation3 + $0x180] sm:$0xff]
        %v1105 = vld [vmem:[#allocation3 + $0x188] sm:$0xff]
        %v1106 = vld [vmem:[#allocation3 + $0x190] sm:$0xff]
        %v1107 = vld [vmem:[#allocation3 + $0x198] sm:$0xff]
        %v1108 = vld [vmem:[#allocation3 + $0x1a0] sm:$0xff]
        %v1109 = vld [vmem:[#allocation3 + $0x1a8] sm:$0xff]
        %v1110 = vld [vmem:[#allocation3 + $0x1b0] sm:$0xff]
        %v1111 = vld [vmem:[#allocation3 + $0x1b8] sm:$0xff]
        %v1112 = vld [vmem:[#allocation3 + $0x1c0] sm:$0xff]
        %v1113 = vld [vmem:[#allocation3 + $0x1c8] sm:$0xff]
        %v1114 = vld [vmem:[#allocation3 + $0x1d0] sm:$0xff]
        %v1115 = vld [vmem:[#allocation3 + $0x1d8] sm:$0xff]
        %v1116 = vld [vmem:[#allocation3 + $0x1e0] sm:$0xff]
        %v1117 = vld [vmem:[#allocation3 + $0x1e8] sm:$0xff]
        %v1118 = vld [vmem:[#allocation3 + $0x1f0] sm:$0xff]
        %v1119 = vld [vmem:[#allocation3 + $0x1f8] sm:$0xff]
        %v1120 = vld [vmem:[#allocation3 + $0x200] sm:$0xff]
        %v1121 = vld [vmem:[#allocation3 + $0x208] sm:$0xff]
        %v1122 = vld [vmem:[#allocation3 + $0x210] sm:$0xff]
        %v1123 = vld [vmem:[#allocation3 + $0x218] sm:$0xff]
        %v1124 = vld [vmem:[#allocation3 + $0x220] sm:$0xff]
        %v1125 = vld [vmem:[#allocation3 + $0x228] sm:$0xff]
        %v1126 = vld [vmem:[#allocation3 + $0x230] sm:$0xff]
        %v1127 = vld [vmem:[#allocation3 + $0x238] sm:$0xff]
        %v1128 = vld [vmem:[#allocation3 + $0x240] sm:$0xff]
        %v1129 = vld [vmem:[#allocation3 + $0x248] sm:$0xff]
        %v1130 = vld [vmem:[#allocation3 + $0x250] sm:$0xff]
        %v1131 = vld [vmem:[#allocation3 + $0x258] sm:$0xff]
        %v1132 = vld [vmem:[#allocation3 + $0x260] sm:$0xff]
        %v1133 = vld [vmem:[#allocation3 + $0x268] sm:$0xff]
        %v1134 = vld [vmem:[#allocation3 + $0x270] sm:$0xff]
        %v1135 = vld [vmem:[#allocation3 + $0x278] sm:$0xff]
        %v1136 = vld [vmem:[#allocation3 + $0x280] sm:$0xff]
        %v1137 = vld [vmem:[#allocation3 + $0x288] sm:$0xff]
        %v1138 = vld [vmem:[#allocation3 + $0x290] sm:$0xff]
        %v1139 = vld [vmem:[#allocation3 + $0x298] sm:$0xff]
        %v1140 = vld [vmem:[#allocation3 + $0x2a0] sm:$0xff]
        %v1141 = vld [vmem:[#allocation3 + $0x2a8] sm:$0xff]
        %v1142 = vld [vmem:[#allocation3 + $0x2b0] sm:$0xff]
        %v1143 = vld [vmem:[#allocation3 + $0x2b8] sm:$0xff]
        %v1144 = vld [vmem:[#allocation3 + $0x2c0] sm:$0xff]
        %v1145 = vld [vmem:[#allocation3 + $0x2c8] sm:$0xff]
        %v1146 = vld [vmem:[#allocation3 + $0x2d0] sm:$0xff]
        %v1147 = vld [vmem:[#allocation3 + $0x2d8] sm:$0xff]
        %v1148 = vld [vmem:[#allocation3 + $0x2e0] sm:$0xff]
        %v1149 = vld [vmem:[#allocation3 + $0x2e8] sm:$0xff]
        %v1150 = vld [vmem:[#allocation3 + $0x2f0] sm:$0xff]
        %v1151 = vld [vmem:[#allocation3 + $0x2f8] sm:$0xff]
        %v1152 = vld [vmem:[#allocation3 + $0x300] sm:$0xff]
        %v1153 = vld [vmem:[#allocation3 + $0x308] sm:$0xff]
        %v1154 = vld [vmem:[#allocation3 + $0x310] sm:$0xff]
        %v1155 = vld [vmem:[#allocation3 + $0x318] sm:$0xff]
        %v1156 = vld [vmem:[#allocation3 + $0x320] sm:$0xff]
        %v1157 = vld [vmem:[#allocation3 + $0x328] sm:$0xff]
        %v1158 = vld [vmem:[#allocation3 + $0x330] sm:$0xff]
        %v1159 = vld [vmem:[#allocation3 + $0x338] sm:$0xff]
        %v1160 = vld [vmem:[#allocation3 + $0x340] sm:$0xff]
        %v1161 = vld [vmem:[#allocation3 + $0x348] sm:$0xff]
        %v1162 = vld [vmem:[#allocation3 + $0x350] sm:$0xff]
        %v1163 = vld [vmem:[#allocation3 + $0x358] sm:$0xff]
        %v1164 = vld [vmem:[#allocation3 + $0x360] sm:$0xff]
        %v1165 = vld [vmem:[#allocation3 + $0x368] sm:$0xff]
        %v1166 = vld [vmem:[#allocation3 + $0x370] sm:$0xff]
        %v1167 = vld [vmem:[#allocation3 + $0x378] sm:$0xff]
        %v1168 = vld [vmem:[#allocation3 + $0x380] sm:$0xff]
        %v1169 = vld [vmem:[#allocation3 + $0x388] sm:$0xff]
        %v1170 = vld [vmem:[#allocation3 + $0x390] sm:$0xff]
        %v1171 = vld [vmem:[#allocation3 + $0x398] sm:$0xff]
        %v1172 = vld [vmem:[#allocation3 + $0x3a0] sm:$0xff]
        %v1173 = vld [vmem:[#allocation3 + $0x3a8] sm:$0xff]
        %v1174 = vld [vmem:[#allocation3 + $0x3b0] sm:$0xff]
        %v1175 = vld [vmem:[#allocation3 + $0x3b8] sm:$0xff]
        %v1176 = vld [vmem:[#allocation3 + $0x3c0] sm:$0xff]
        %v1177 = vld [vmem:[#allocation3 + $0x3c8] sm:$0xff]
        %v1178 = vld [vmem:[#allocation3 + $0x3d0] sm:$0xff]
        %v1179 = vld [vmem:[#allocation3 + $0x3d8] sm:$0xff]
        %v1180 = vld [vmem:[#allocation3 + $0x3e0] sm:$0xff]
        %v1181 = vld [vmem:[#allocation3 + $0x3e8] sm:$0xff]
        %v1182 = vld [vmem:[#allocation3 + $0x3f0] sm:$0xff]
        %v1183 = vld [vmem:[#allocation3 + $0x3f8] sm:$0xff]
        %v1184 = vld [vmem:[#allocation3 + $0x400] sm:$0xff]
        %v1185 = vld [vmem:[#allocation3 + $0x408] sm:$0xff]
        %v1186 = vld [vmem:[#allocation3 + $0x410] sm:$0xff]
        %v1187 = vld [vmem:[#allocation3 + $0x418] sm:$0xff]
        %v1188 = vld [vmem:[#allocation3 + $0x420] sm:$0xff]
        %v1189 = vld [vmem:[#allocation3 + $0x428] sm:$0xff]
        %v1190 = vld [vmem:[#allocation3 + $0x430] sm:$0xff]
        %v1191 = vld [vmem:[#allocation3 + $0x438] sm:$0xff]
        %v1192 = vld [vmem:[#allocation3 + $0x440] sm:$0xff]
        %v1193 = vld [vmem:[#allocation3 + $0x448] sm:$0xff]
        %v1194 = vld [vmem:[#allocation3 + $0x450] sm:$0xff]
        %v1195 = vld [vmem:[#allocation3 + $0x458] sm:$0xff]
        %v1196 = vld [vmem:[#allocation3 + $0x460] sm:$0xff]
        %v1197 = vld [vmem:[#allocation3 + $0x468] sm:$0xff]
        %v1198 = vld [vmem:[#allocation3 + $0x470] sm:$0xff]
        %v1199 = vld [vmem:[#allocation3 + $0x478] sm:$0xff]
        %v1200 = vld [vmem:[#allocation3 + $0x480] sm:$0xff]
        %v1201 = vld [vmem:[#allocation3 + $0x488] sm:$0xff]
        %v1202 = vld [vmem:[#allocation3 + $0x490] sm:$0xff]
        %v1203 = vld [vmem:[#allocation3 + $0x498] sm:$0xff]
        %v1204 = vld [vmem:[#allocation3 + $0x4a0] sm:$0xff]
        %v1205 = vld [vmem:[#allocation3 + $0x4a8] sm:$0xff]
        %v1206 = vld [vmem:[#allocation3 + $0x4b0] sm:$0xff]
        %v1207 = vld [vmem:[#allocation3 + $0x4b8] sm:$0xff]
        %v1208 = vld [vmem:[#allocation3 + $0x4c0] sm:$0xff]
        %v1209 = vld [vmem:[#allocation3 + $0x4c8] sm:$0xff]
        %v1210 = vld [vmem:[#allocation3 + $0x4d0] sm:$0xff]
        %v1211 = vld [vmem:[#allocation3 + $0x4d8] sm:$0xff]
        %v1212 = vld [vmem:[#allocation3 + $0x4e0] sm:$0xff]
        %v1213 = vld [vmem:[#allocation3 + $0x4e8] sm:$0xff]
        %v1214 = vld [vmem:[#allocation3 + $0x4f0] sm:$0xff]
        %v1215 = vld [vmem:[#allocation3 + $0x4f8] sm:$0xff]
        %v1216 = vld [vmem:[#allocation3 + $0x500] sm:$0xff]
        %v1217 = vld [vmem:[#allocation3 + $0x508] sm:$0xff]
        %v1218 = vld [vmem:[#allocation3 + $0x510] sm:$0xff]
        %v1219 = vld [vmem:[#allocation3 + $0x518] sm:$0xff]
        %v1220 = vld [vmem:[#allocation3 + $0x520] sm:$0xff]
        %v1221 = vld [vmem:[#allocation3 + $0x528] sm:$0xff]
        %v1222 = vld [vmem:[#allocation3 + $0x530] sm:$0xff]
        %v1223 = vld [vmem:[#allocation3 + $0x538] sm:$0xff]
        %v1224 = vld [vmem:[#allocation3 + $0x540] sm:$0xff]
        %v1225 = vld [vmem:[#allocation3 + $0x548] sm:$0xff]
        %v1226 = vld [vmem:[#allocation3 + $0x550] sm:$0xff]
        %v1227 = vld [vmem:[#allocation3 + $0x558] sm:$0xff]
        %v1228 = vld [vmem:[#allocation3 + $0x560] sm:$0xff]
        %v1229 = vld [vmem:[#allocation3 + $0x568] sm:$0xff]
        %v1230 = vld [vmem:[#allocation3 + $0x570] sm:$0xff]
        %v1231 = vld [vmem:[#allocation3 + $0x578] sm:$0xff]
        %v1232 = vld [vmem:[#allocation3 + $0x580] sm:$0xff]
        %v1233 = vld [vmem:[#allocation3 + $0x588] sm:$0xff]
        %v1234 = vld [vmem:[#allocation3 + $0x590] sm:$0xff]
        %v1235 = vld [vmem:[#allocation3 + $0x598] sm:$0xff]
        %v1236 = vld [vmem:[#allocation3 + $0x5a0] sm:$0xff]
        %v1237 = vld [vmem:[#allocation3 + $0x5a8] sm:$0xff]
        %v1238 = vld [vmem:[#allocation3 + $0x5b0] sm:$0xff]
        %v1239 = vld [vmem:[#allocation3 + $0x5b8] sm:$0xff]
        %v1240 = vld [vmem:[#allocation3 + $0x5c0] sm:$0xff]
        %v1241 = vld [vmem:[#allocation3 + $0x5c8] sm:$0xff]
        %v1242 = vld [vmem:[#allocation3 + $0x5d0] sm:$0xff]
        %v1243 = vld [vmem:[#allocation3 + $0x5d8] sm:$0xff]
        %v1244 = vld [vmem:[#allocation3 + $0x5e0] sm:$0xff]
        %v1245 = vld [vmem:[#allocation3 + $0x5e8] sm:$0xff]
        %v1246 = vld [vmem:[#allocation3 + $0x5f0] sm:$0xff]
        %v1247 = vld [vmem:[#allocation3 + $0x5f8] sm:$0xff]
        %v1248 = vld [vmem:[#allocation3 + $0x600] sm:$0xff]
        %v1249 = vld [vmem:[#allocation3 + $0x608] sm:$0xff]
        %v1250 = vld [vmem:[#allocation3 + $0x610] sm:$0xff]
        %v1251 = vld [vmem:[#allocation3 + $0x618] sm:$0xff]
        %v1252 = vld [vmem:[#allocation3 + $0x620] sm:$0xff]
        %v1253 = vld [vmem:[#allocation3 + $0x628] sm:$0xff]
        %v1254 = vld [vmem:[#allocation3 + $0x630] sm:$0xff]
        %v1255 = vld [vmem:[#allocation3 + $0x638] sm:$0xff]
        %v1256 = vld [vmem:[#allocation3 + $0x640] sm:$0xff]
        %v1257 = vld [vmem:[#allocation3 + $0x648] sm:$0xff]
        %v1258 = vld [vmem:[#allocation3 + $0x650] sm:$0xff]
        %v1259 = vld [vmem:[#allocation3 + $0x658] sm:$0xff]
        %v1260 = vld [vmem:[#allocation3 + $0x660] sm:$0xff]
        %v1261 = vld [vmem:[#allocation3 + $0x668] sm:$0xff]
        %v1262 = vld [vmem:[#allocation3 + $0x670] sm:$0xff]
        %v1263 = vld [vmem:[#allocation3 + $0x678] sm:$0xff]
        %v1264 = vld [vmem:[#allocation3 + $0x680] sm:$0xff]
        %v1265 = vld [vmem:[#allocation3 + $0x688] sm:$0xff]
        %v1266 = vld [vmem:[#allocation3 + $0x690] sm:$0xff]
        %v1267 = vld [vmem:[#allocation3 + $0x698] sm:$0xff]
        %v1268 = vld [vmem:[#allocation3 + $0x6a0] sm:$0xff]
        %v1269 = vld [vmem:[#allocation3 + $0x6a8] sm:$0xff]
        %v1270 = vld [vmem:[#allocation3 + $0x6b0] sm:$0xff]
        %v1271 = vld [vmem:[#allocation3 + $0x6b8] sm:$0xff]
        %v1272 = vld [vmem:[#allocation3 + $0x6c0] sm:$0xff]
        %v1273 = vld [vmem:[#allocation3 + $0x6c8] sm:$0xff]
        %v1274 = vld [vmem:[#allocation3 + $0x6d0] sm:$0xff]
        %v1275 = vld [vmem:[#allocation3 + $0x6d8] sm:$0xff]
        %v1276 = vld [vmem:[#allocation3 + $0x6e0] sm:$0xff]
        %v1277 = vld [vmem:[#allocation3 + $0x6e8] sm:$0xff]
        %v1278 = vld [vmem:[#allocation3 + $0x6f0] sm:$0xff]
        %v1279 = vld [vmem:[#allocation3 + $0x6f8] sm:$0xff]
        %v1280 = vld [vmem:[#allocation3 + $0x700] sm:$0xff]
        %v1281 = vld [vmem:[#allocation3 + $0x708] sm:$0xff]
        %v1282 = vld [vmem:[#allocation3 + $0x710] sm:$0xff]
        %v1283 = vld [vmem:[#allocation3 + $0x718] sm:$0xff]
        %v1284 = vld [vmem:[#allocation3 + $0x720] sm:$0xff]
        %v1285 = vld [vmem:[#allocation3 + $0x728] sm:$0xff]
        %v1286 = vld [vmem:[#allocation3 + $0x730] sm:$0xff]
        %v1287 = vld [vmem:[#allocation3 + $0x738] sm:$0xff]
        %v1288 = vld [vmem:[#allocation3 + $0x740] sm:$0xff]
        %v1289 = vld [vmem:[#allocation3 + $0x748] sm:$0xff]
        %v1290 = vld [vmem:[#allocation3 + $0x750] sm:$0xff]
        %v1291 = vld [vmem:[#allocation3 + $0x758] sm:$0xff]
        %v1292 = vld [vmem:[#allocation3 + $0x760] sm:$0xff]
        %v1293 = vld [vmem:[#allocation3 + $0x768] sm:$0xff]
        %v1294 = vld [vmem:[#allocation3 + $0x770] sm:$0xff]
        %v1295 = vld [vmem:[#allocation3 + $0x778] sm:$0xff]
        %v1296 = vld [vmem:[#allocation3 + $0x780] sm:$0xff]
        %v1297 = vld [vmem:[#allocation3 + $0x788] sm:$0xff]
        %v1298 = vld [vmem:[#allocation3 + $0x790] sm:$0xff]
        %v1299 = vld [vmem:[#allocation3 + $0x798] sm:$0xff]
        %v1300 = vld [vmem:[#allocation3 + $0x7a0] sm:$0xff]
        %v1301 = vld [vmem:[#allocation3 + $0x7a8] sm:$0xff]
        %v1302 = vld [vmem:[#allocation3 + $0x7b0] sm:$0xff]
        %v1303 = vld [vmem:[#allocation3 + $0x7b8] sm:$0xff]
        %v1304 = vld [vmem:[#allocation3 + $0x7c0] sm:$0xff]
        %v1305 = vld [vmem:[#allocation3 + $0x7c8] sm:$0xff]
        %v1306 = vld [vmem:[#allocation3 + $0x7d0] sm:$0xff]
        %v1307 = vld [vmem:[#allocation3 + $0x7d8] sm:$0xff]
        %v1308 = vld [vmem:[#allocation3 + $0x7e0] sm:$0xff]
        %v1309 = vld [vmem:[#allocation3 + $0x7e8] sm:$0xff]
        %v1310 = vld [vmem:[#allocation3 + $0x7f0] sm:$0xff]
        %v1311 = vld [vmem:[#allocation3 + $0x7f8] sm:$0xff]
        %v1312 = vld [vmem:[#allocation3 + $0x800] sm:$0xff]
        %v1313 = vld [vmem:[#allocation3 + $0x808] sm:$0xff]
        %v1314 = vld [vmem:[#allocation3 + $0x810] sm:$0xff]
        %v1315 = vld [vmem:[#allocation3 + $0x818] sm:$0xff]
        %v1316 = vld [vmem:[#allocation3 + $0x820] sm:$0xff]
        %v1317 = vld [vmem:[#allocation3 + $0x828] sm:$0xff]
        %v1318 = vld [vmem:[#allocation3 + $0x830] sm:$0xff]
        %v1319 = vld [vmem:[#allocation3 + $0x838] sm:$0xff]
        %v1320 = vld [vmem:[#allocation3 + $0x840] sm:$0xff]
        %v1321 = vld [vmem:[#allocation3 + $0x848] sm:$0xff]
        %v1322 = vld [vmem:[#allocation3 + $0x850] sm:$0xff]
        %v1323 = vld [vmem:[#allocation3 + $0x858] sm:$0xff]
        %v1324 = vld [vmem:[#allocation3 + $0x860] sm:$0xff]
        %v1325 = vld [vmem:[#allocation3 + $0x868] sm:$0xff]
        %v1326 = vld [vmem:[#allocation3 + $0x870] sm:$0xff]
        %v1327 = vld [vmem:[#allocation3 + $0x878] sm:$0xff]
        %v1328 = vld [vmem:[#allocation3 + $0x880] sm:$0xff]
        %v1329 = vld [vmem:[#allocation3 + $0x888] sm:$0xff]
        %v1330 = vld [vmem:[#allocation3 + $0x890] sm:$0xff]
        %v1331 = vld [vmem:[#allocation3 + $0x898] sm:$0xff]
        %v1332 = vld [vmem:[#allocation3 + $0x8a0] sm:$0xff]
        %v1333 = vld [vmem:[#allocation3 + $0x8a8] sm:$0xff]
        %v1334 = vld [vmem:[#allocation3 + $0x8b0] sm:$0xff]
        %v1335 = vld [vmem:[#allocation3 + $0x8b8] sm:$0xff]
        %v1336 = vld [vmem:[#allocation3 + $0x8c0] sm:$0xff]
        %v1337 = vld [vmem:[#allocation3 + $0x8c8] sm:$0xff]
        %v1338 = vld [vmem:[#allocation3 + $0x8d0] sm:$0xff]
        %v1339 = vld [vmem:[#allocation3 + $0x8d8] sm:$0xff]
        %v1340 = vld [vmem:[#allocation3 + $0x8e0] sm:$0xff]
        %v1341 = vld [vmem:[#allocation3 + $0x8e8] sm:$0xff]
        %v1342 = vld [vmem:[#allocation3 + $0x8f0] sm:$0xff]
        %v1343 = vld [vmem:[#allocation3 + $0x8f8] sm:$0xff]
        %v1344 = vld [vmem:[#allocation7] sm:$0xff]
        %v1345 = vld [vmem:[#allocation7 + $0x8] sm:$0xff]
        %v1346 = vld [vmem:[#allocation7 + $0x10] sm:$0xff]
        %v1347 = vld [vmem:[#allocation7 + $0x18] sm:$0xff]
        %v1348 = vld [vmem:[#allocation7 + $0x20] sm:$0xff]
        %v1349 = vld [vmem:[#allocation7 + $0x28] sm:$0xff]
        %v1350 = vld [vmem:[#allocation7 + $0x30] sm:$0xff]
        %v1351 = vld [vmem:[#allocation7 + $0x38] sm:$0xff]
        %v1352 = vld [vmem:[#allocation7 + $0x40] sm:$0xff]
        %v1353 = vld [vmem:[#allocation7 + $0x48] sm:$0xff]
        %v1354 = vld [vmem:[#allocation7 + $0x50] sm:$0xff]
        %v1355 = vld [vmem:[#allocation7 + $0x58] sm:$0xff]
        %v1356 = vld [vmem:[#allocation7 + $0x60] sm:$0xff]
        %v1357 = vld [vmem:[#allocation7 + $0x68] sm:$0xff]
        %v1358 = vld [vmem:[#allocation7 + $0x70] sm:$0xff]
        %v1359 = vld [vmem:[#allocation7 + $0x78] sm:$0xff]
        %v1360 = vld [vmem:[#allocation7 + $0x80] sm:$0xff]
        %v1361 = vld [vmem:[#allocation7 + $0x88] sm:$0xff]
        %v1362 = vld [vmem:[#allocation7 + $0x90] sm:$0xff]
        %v1363 = vld [vmem:[#allocation7 + $0x98] sm:$0xff]
        %v1364 = vld [vmem:[#allocation7 + $0xa0] sm:$0xff]
        %v1365 = vld [vmem:[#allocation7 + $0xa8] sm:$0xff]
        %v1366 = vld [vmem:[#allocation7 + $0xb0] sm:$0xff]
        %v1367 = vld [vmem:[#allocation7 + $0xb8] sm:$0xff]
        %v1368 = vld [vmem:[#allocation7 + $0xc0] sm:$0xff]
        %v1369 = vld [vmem:[#allocation7 + $0xc8] sm:$0xff]
        %v1370 = vld [vmem:[#allocation7 + $0xd0] sm:$0xff]
        %v1371 = vld [vmem:[#allocation7 + $0xd8] sm:$0xff]
        %v1372 = vld [vmem:[#allocation7 + $0xe0] sm:$0xff]
        %v1373 = vld [vmem:[#allocation7 + $0xe8] sm:$0xff]
        %v1374 = vld [vmem:[#allocation7 + $0xf0] sm:$0xff]
        %v1375 = vld [vmem:[#allocation7 + $0xf8] sm:$0xff]
        %v1376 = vld [vmem:[#allocation7 + $0x100] sm:$0xff]
        %v1377 = vld [vmem:[#allocation7 + $0x108] sm:$0xff]
        %v1378 = vld [vmem:[#allocation7 + $0x110] sm:$0xff]
        %v1379 = vld [vmem:[#allocation7 + $0x118] sm:$0xff]
        %v1380 = vld [vmem:[#allocation7 + $0x120] sm:$0xff]
        %v1381 = vld [vmem:[#allocation7 + $0x128] sm:$0xff]
        %v1382 = vld [vmem:[#allocation7 + $0x130] sm:$0xff]
        %v1383 = vld [vmem:[#allocation7 + $0x138] sm:$0xff]
        %v1384 = vld [vmem:[#allocation7 + $0x140] sm:$0xff]
        %v1385 = vld [vmem:[#allocation7 + $0x148] sm:$0xff]
        %v1386 = vld [vmem:[#allocation7 + $0x150] sm:$0xff]
        %v1387 = vld [vmem:[#allocation7 + $0x158] sm:$0xff]
        %v1388 = vld [vmem:[#allocation7 + $0x160] sm:$0xff]
        %v1389 = vld [vmem:[#allocation7 + $0x168] sm:$0xff]
        %v1390 = vld [vmem:[#allocation7 + $0x170] sm:$0xff]
        %v1391 = vld [vmem:[#allocation7 + $0x178] sm:$0xff]
        %v1392 = vld [vmem:[#allocation7 + $0x180] sm:$0xff]
        %v1393 = vld [vmem:[#allocation7 + $0x188] sm:$0xff]
        %v1394 = vld [vmem:[#allocation7 + $0x190] sm:$0xff]
        %v1395 = vld [vmem:[#allocation7 + $0x198] sm:$0xff]
        %v1396 = vld [vmem:[#allocation7 + $0x1a0] sm:$0xff]
        %v1397 = vld [vmem:[#allocation7 + $0x1a8] sm:$0xff]
        %v1398 = vld [vmem:[#allocation7 + $0x1b0] sm:$0xff]
        %v1399 = vld [vmem:[#allocation7 + $0x1b8] sm:$0xff]
        %v1400 = vld [vmem:[#allocation7 + $0x1c0] sm:$0xff]
        %v1401 = vld [vmem:[#allocation7 + $0x1c8] sm:$0xff]
        %v1402 = vld [vmem:[#allocation7 + $0x1d0] sm:$0xff]
        %v1403 = vld [vmem:[#allocation7 + $0x1d8] sm:$0xff]
        %v1404 = vld [vmem:[#allocation7 + $0x1e0] sm:$0xff]
        %v1405 = vld [vmem:[#allocation7 + $0x1e8] sm:$0xff]
        %v1406 = vld [vmem:[#allocation7 + $0x1f0] sm:$0xff]
        %v1407 = vld [vmem:[#allocation7 + $0x1f8] sm:$0xff]
        %v1408 = vld [vmem:[#allocation7 + $0x200] sm:$0xff]
        %v1409 = vld [vmem:[#allocation7 + $0x208] sm:$0xff]
        %v1410 = vld [vmem:[#allocation7 + $0x210] sm:$0xff]
        %v1411 = vld [vmem:[#allocation7 + $0x218] sm:$0xff]
        %v1412 = vld [vmem:[#allocation7 + $0x220] sm:$0xff]
        %v1413 = vld [vmem:[#allocation7 + $0x228] sm:$0xff]
        %v1414 = vld [vmem:[#allocation7 + $0x230] sm:$0xff]
        %v1415 = vld [vmem:[#allocation7 + $0x238] sm:$0xff]
        %v1416 = vld [vmem:[#allocation7 + $0x240] sm:$0xff]
        %v1417 = vld [vmem:[#allocation7 + $0x248] sm:$0xff]
        %v1418 = vld [vmem:[#allocation7 + $0x250] sm:$0xff]
        %v1419 = vld [vmem:[#allocation7 + $0x258] sm:$0xff]
        %v1420 = vld [vmem:[#allocation7 + $0x260] sm:$0xff]
        %v1421 = vld [vmem:[#allocation7 + $0x268] sm:$0xff]
        %v1422 = vld [vmem:[#allocation7 + $0x270] sm:$0xff]
        %v1423 = vld [vmem:[#allocation7 + $0x278] sm:$0xff]
        %v1424 = vld [vmem:[#allocation7 + $0x280] sm:$0xff]
        %v1425 = vld [vmem:[#allocation7 + $0x288] sm:$0xff]
        %v1426 = vld [vmem:[#allocation7 + $0x290] sm:$0xff]
        %v1427 = vld [vmem:[#allocation7 + $0x298] sm:$0xff]
        %v1428 = vld [vmem:[#allocation7 + $0x2a0] sm:$0xff]
        %v1429 = vld [vmem:[#allocation7 + $0x2a8] sm:$0xff]
        %v1430 = vld [vmem:[#allocation7 + $0x2b0] sm:$0xff]
        %v1431 = vld [vmem:[#allocation7 + $0x2b8] sm:$0xff]
        %v1432 = vld [vmem:[#allocation7 + $0x2c0] sm:$0xff]
        %v1433 = vld [vmem:[#allocation7 + $0x2c8] sm:$0xff]
        %v1434 = vld [vmem:[#allocation7 + $0x2d0] sm:$0xff]
        %v1435 = vld [vmem:[#allocation7 + $0x2d8] sm:$0xff]
        %v1436 = vld [vmem:[#allocation7 + $0x2e0] sm:$0xff]
        %v1437 = vld [vmem:[#allocation7 + $0x2e8] sm:$0xff]
        %v1438 = vld [vmem:[#allocation7 + $0x2f0] sm:$0xff]
        %v1439 = vld [vmem:[#allocation7 + $0x2f8] sm:$0xff]
        %v1440 = vld [vmem:[#allocation7 + $0x300] sm:$0xff]
        %v1441 = vld [vmem:[#allocation7 + $0x308] sm:$0xff]
        %v1442 = vld [vmem:[#allocation7 + $0x310] sm:$0xff]
        %v1443 = vld [vmem:[#allocation7 + $0x318] sm:$0xff]
        %v1444 = vld [vmem:[#allocation7 + $0x320] sm:$0xff]
        %v1445 = vld [vmem:[#allocation7 + $0x328] sm:$0xff]
        %v1446 = vld [vmem:[#allocation7 + $0x330] sm:$0xff]
        %v1447 = vld [vmem:[#allocation7 + $0x338] sm:$0xff]
        %v1448 = vld [vmem:[#allocation7 + $0x340] sm:$0xff]
        %v1449 = vld [vmem:[#allocation7 + $0x348] sm:$0xff]
        %v1450 = vld [vmem:[#allocation7 + $0x350] sm:$0xff]
        %v1451 = vld [vmem:[#allocation7 + $0x358] sm:$0xff]
        %v1452 = vld [vmem:[#allocation7 + $0x360] sm:$0xff]
        %v1453 = vld [vmem:[#allocation7 + $0x368] sm:$0xff]
        %v1454 = vld [vmem:[#allocation7 + $0x370] sm:$0xff]
        %v1455 = vld [vmem:[#allocation7 + $0x378] sm:$0xff]
        %v1456 = vld [vmem:[#allocation7 + $0x380] sm:$0xff]
        %v1457 = vld [vmem:[#allocation7 + $0x388] sm:$0xff]
        %v1458 = vld [vmem:[#allocation7 + $0x390] sm:$0xff]
        %v1459 = vld [vmem:[#allocation7 + $0x398] sm:$0xff]
        %v1460 = vld [vmem:[#allocation7 + $0x3a0] sm:$0xff]
        %v1461 = vld [vmem:[#allocation7 + $0x3a8] sm:$0xff]
        %v1462 = vld [vmem:[#allocation7 + $0x3b0] sm:$0xff]
        %v1463 = vld [vmem:[#allocation7 + $0x3b8] sm:$0xff]
        %v1464 = vld [vmem:[#allocation7 + $0x3c0] sm:$0xff]
        %v1465 = vld [vmem:[#allocation7 + $0x3c8] sm:$0xff]
        %v1466 = vld [vmem:[#allocation7 + $0x3d0] sm:$0xff]
        %v1467 = vld [vmem:[#allocation7 + $0x3d8] sm:$0xff]
        %v1468 = vld [vmem:[#allocation7 + $0x3e0] sm:$0xff]
        %v1469 = vld [vmem:[#allocation7 + $0x3e8] sm:$0xff]
        %v1470 = vld [vmem:[#allocation7 + $0x3f0] sm:$0xff]
        %v1471 = vld [vmem:[#allocation7 + $0x3f8] sm:$0xff]
        %v1472 = vld [vmem:[#allocation7 + $0x400] sm:$0xff]
        %v1473 = vld [vmem:[#allocation7 + $0x408] sm:$0xff]
        %v1474 = vld [vmem:[#allocation7 + $0x410] sm:$0xff]
        %v1475 = vld [vmem:[#allocation7 + $0x418] sm:$0xff]
        %v1476 = vld [vmem:[#allocation7 + $0x420] sm:$0xff]
        %v1477 = vld [vmem:[#allocation7 + $0x428] sm:$0xff]
        %v1478 = vld [vmem:[#allocation7 + $0x430] sm:$0xff]
        %v1479 = vld [vmem:[#allocation7 + $0x438] sm:$0xff]
        %v1480 = vld [vmem:[#allocation7 + $0x440] sm:$0xff]
        %v1481 = vld [vmem:[#allocation7 + $0x448] sm:$0xff]
        %v1482 = vld [vmem:[#allocation7 + $0x450] sm:$0xff]
        %v1483 = vld [vmem:[#allocation7 + $0x458] sm:$0xff]
        %v1484 = vld [vmem:[#allocation7 + $0x460] sm:$0xff]
        %v1485 = vld [vmem:[#allocation7 + $0x468] sm:$0xff]
        %v1486 = vld [vmem:[#allocation7 + $0x470] sm:$0xff]
        %v1487 = vld [vmem:[#allocation7 + $0x478] sm:$0xff]
        %1488 = vmatprep.subr.mxu0 0.0
        %1489 = vmatpush1.msra.mxu0 %v1344
        %1490 = vmatprep.subr.mxu0 0.0
        %1491 = vmatpush1.msra.mxu0 %v1345
        %1492 = vmatprep.subr.mxu0 0.0
        %1493 = vmatpush1.msra.mxu0 %v1346
        %1494 = vmatprep.subr.mxu0 0.0
        %1495 = vmatpush1.msra.mxu0 %v1347
        %1496 = vmatprep.subr.mxu0 0.0
        %1497 = vmatpush1.msra.mxu0 %v1348
        %1498 = vmatprep.subr.mxu0 0.0
        %1499 = vmatpush1.msra.mxu0 %v1349
        %1500 = vmatprep.subr.mxu0 0.0
        %1501 = vmatpush1.msra.mxu0 %v1350
        %1502 = vmatprep.subr.mxu0 0.0
        %1503 = vmatpush1.msra.mxu0 %v1351
        %1504 = vmatprep.subr.mxu0 0.0
        %1505 = vmatpush1.msra.mxu0 %v1352
        %1506 = vmatprep.subr.mxu0 0.0
        %1507 = vmatpush1.msra.mxu0 %v1353
        %1508 = vmatprep.subr.mxu0 0.0
        %1509 = vmatpush1.msra.mxu0 %v1354
        %1510 = vmatprep.subr.mxu0 0.0
        %1511 = vmatpush1.msra.mxu0 %v1355
        %1512 = vmatprep.subr.mxu0 0.0
        %1513 = vmatpush1.msra.mxu0 %v1356
        %1514 = vmatprep.subr.mxu0 0.0
        %1515 = vmatpush1.msra.mxu0 %v1357
        %1516 = vmatprep.subr.mxu0 0.0
        %1517 = vmatpush1.msra.mxu0 %v1358
        %1518 = vmatprep.subr.mxu0 0.0
        %1519 = vmatpush1.msra.mxu0 %v1359
        %1520 = vmatprep.subr.mxu0 0.0
        %1521 = vmatpush1.msra.mxu0 %v1360
        %1522 = vmatprep.subr.mxu0 0.0
        %1523 = vmatpush1.msra.mxu0 %v1361
        %1524 = vmatprep.subr.mxu0 0.0
        %1525 = vmatpush1.msra.mxu0 %v1362
        %1526 = vmatprep.subr.mxu0 0.0
        %1527 = vmatpush1.msra.mxu0 %v1363
        %1528 = vmatprep.subr.mxu0 0.0
        %1529 = vmatpush1.msra.mxu0 %v1364
        %1530 = vmatprep.subr.mxu0 0.0
        %1531 = vmatpush1.msra.mxu0 %v1365
        %1532 = vmatprep.subr.mxu0 0.0
        %1533 = vmatpush1.msra.mxu0 %v1366
        %1534 = vmatprep.subr.mxu0 0.0
        %1535 = vmatpush1.msra.mxu0 %v1367
        %1536 = vmatprep.subr.mxu0 0.0
        %1537 = vmatpush1.msra.mxu0 %v1368
        %1538 = vmatprep.subr.mxu0 0.0
        %1539 = vmatpush1.msra.mxu0 %v1369
        %1540 = vmatprep.subr.mxu0 0.0
        %1541 = vmatpush1.msra.mxu0 %v1370
        %1542 = vmatprep.subr.mxu0 0.0
        %1543 = vmatpush1.msra.mxu0 %v1371
        %1544 = vmatprep.subr.mxu0 0.0
        %1545 = vmatpush1.msra.mxu0 %v1372
        %1546 = vmatprep.subr.mxu0 0.0
        %1547 = vmatpush1.msra.mxu0 %v1373
        %1548 = vmatprep.subr.mxu0 0.0
        %1549 = vmatpush1.msra.mxu0 %v1374
        %1550 = vmatprep.subr.mxu0 0.0
        %1551 = vmatpush1.msra.mxu0 %v1375
        %1552 = vmatprep.mubr.f32.mxu0 %v1057
        %1553 = vmatmul.mubr.f32.gmra.mrb[0].mxu0 %v1056
        %v1554 = vpop.f32.mrb[0].mxu0
        %v1555 = vadd.f32 0.0, %v1554
        %v1556 = vpop.f32.mrb[0].mxu0
        %1557 = vmatprep.mubr.f32.mxu0 %v1066
        %1558 = vmatmul.mubr.f32.gmra.mrb[0].mxu0 %v1065
        %v1559 = vpop.f32.mrb[0].mxu0
        %v1560 = vadd.f32 0.0, %v1559
        %v1561 = vpop.f32.mrb[0].mxu0
        %1562 = vmatprep.mubr.f32.mxu0 %v1075
        %1563 = vmatmul.mubr.f32.gmra.mrb[0].mxu0 %v1074
        %v1564 = vpop.f32.mrb[0].mxu0
        %v1565 = vadd.f32 0.0, %v1564
        %v1566 = vpop.f32.mrb[0].mxu0
        %1567 = vmatprep.mubr.f32.mxu0 %v1084
        %1568 = vmatmul.mubr.f32.gmra.mrb[0].mxu0 %v1083
        %v1569 = vpop.f32.mrb[0].mxu0
        %v1570 = vadd.f32 0.0, %v1569
        %v1571 = vpop.f32.mrb[0].mxu0
        %1572 = vmatprep.mubr.f32.mxu0 %v1093
        %1573 = vmatmul.mubr.f32.gmra.mrb[0].mxu0 %v1092
        %v1574 = vpop.f32.mrb[0].mxu0
        %v1575 = vadd.f32 0.0, %v1574
        %v1576 = vpop.f32.mrb[0].mxu0
        %1577 = vmatprep.mubr.f32.mxu0 %v1102
        %1578 = vmatmul.mubr.f32.gmra.mrb[0].mxu0 %v1101
        %v1579 = vpop.f32.mrb[0].mxu0
        %v1580 = vadd.f32 0.0, %v1579
        %v1581 = vpop.f32.mrb[0].mxu0
        %1582 = vmatprep.mubr.f32.mxu0 %v1111
        %1583 = vmatmul.mubr.f32.gmra.mrb[0].mxu0 %v1110
        %v1584 = vpop.f32.mrb[0].mxu0
        %v1585 = vadd.f32 0.0, %v1584
        %v1586 = vpop.f32.mrb[0].mxu0
        %1587 = vmatprep.mubr.f32.mxu0 %v1120
        %1588 = vmatmul.mubr.f32.gmra.mrb[0].mxu0 %v1119
        %v1589 = vpop.f32.mrb[0].mxu0
        %v1590 = vadd.f32 0.0, %v1589
        %v1591 = vpop.f32.mrb[0].mxu0
        %1592 = vmatprep.mubr.f32.mxu0 %v1129
        %1593 = vmatmul.mubr.f32.gmra.mrb[0].mxu0 %v1128
        %v1594 = vpop.f32.mrb[0].mxu0
        %v1595 = vadd.f32 0.0, %v1594
        %v1596 = vpop.f32.mrb[0].mxu0
        %1597 = vmatprep.mubr.f32.mxu0 %v1138
        %1598 = vmatmul.mubr.f32.gmra.mrb[0].mxu0 %v1137
        %v1599 = vpop.f32.mrb[0].mxu0
        %v1600 = vadd.f32 0.0, %v1599
        %v1601 = vpop.f32.mrb[0].mxu0
        %1602 = vmatprep.mubr.f32.mxu0 %v1147
        %1603 = vmatmul.mubr.f32.gmra.mrb[0].mxu0 %v1146
        %v1604 = vpop.f32.mrb[0].mxu0
        %v1605 = vadd.f32 0.0, %v1604
        %v1606 = vpop.f32.mrb[0].mxu0
        %1607 = vmatprep.mubr.f32.mxu0 %v1156
        %1608 = vmatmul.mubr.f32.gmra.mrb[0].mxu0 %v1155
        %v1609 = vpop.f32.mrb[0].mxu0
        %v1610 = vadd.f32 0.0, %v1609
        %v1611 = vpop.f32.mrb[0].mxu0
        %1612 = vmatprep.mubr.f32.mxu0 %v1165
        %1613 = vmatmul.mubr.f32.gmra.mrb[0].mxu0 %v1164
        %v1614 = vpop.f32.mrb[0].mxu0
        %v1615 = vadd.f32 0.0, %v1614
        %v1616 = vpop.f32.mrb[0].mxu0
        %1617 = vmatprep.mubr.f32.mxu0 %v1174
        %1618 = vmatmul.mubr.f32.gmra.mrb[0].mxu0 %v1173
        %v1619 = vpop.f32.mrb[0].mxu0
        %v1620 = vadd.f32 0.0, %v1619
        %v1621 = vpop.f32.mrb[0].mxu0
        %1622 = vmatprep.mubr.f32.mxu0 %v1183
        %1623 = vmatmul.mubr.f32.gmra.mrb[0].mxu0 %v1182
        %v1624 = vpop.f32.mrb[0].mxu0
        %v1625 = vadd.f32 0.0, %v1624
        %v1626 = vpop.f32.mrb[0].mxu0
        %1627 = vmatprep.mubr.f32.mxu0 %v1192
        %1628 = vmatmul.mubr.f32.gmra.mrb[0].mxu0 %v1191
        %v1629 = vpop.f32.mrb[0].mxu0
        %v1630 = vadd.f32 0.0, %v1629
        %v1631 = vpop.f32.mrb[0].mxu0
        %1632 = vmatprep.mubr.f32.mxu0 %v1201
        %1633 = vmatmul.mubr.f32.gmra.mrb[0].mxu0 %v1200
        %v1634 = vpop.f32.mrb[0].mxu0
        %v1635 = vadd.f32 0.0, %v1634
        %v1636 = vpop.f32.mrb[0].mxu0
        %1637 = vmatprep.mubr.f32.mxu0 %v1210
        %1638 = vmatmul.mubr.f32.gmra.mrb[0].mxu0 %v1209
        %v1639 = vpop.f32.mrb[0].mxu0
        %v1640 = vadd.f32 0.0, %v1639
        %v1641 = vpop.f32.mrb[0].mxu0
        %1642 = vmatprep.mubr.f32.mxu0 %v1219
        %1643 = vmatmul.mubr.f32.gmra.mrb[0].mxu0 %v1218
        %v1644 = vpop.f32.mrb[0].mxu0
        %v1645 = vadd.f32 0.0, %v1644
        %v1646 = vpop.f32.mrb[0].mxu0
        %1647 = vmatprep.mubr.f32.mxu0 %v1228
        %1648 = vmatmul.mubr.f32.gmra.mrb[0].mxu0 %v1227
        %v1649 = vpop.f32.mrb[0].mxu0
        %v1650 = vadd.f32 0.0, %v1649
        %v1651 = vpop.f32.mrb[0].mxu0
        %1652 = vmatprep.mubr.f32.mxu0 %v1237
        %1653 = vmatmul.mubr.f32.gmra.mrb[0].mxu0 %v1236
        %v1654 = vpop.f32.mrb[0].mxu0
        %v1655 = vadd.f32 0.0, %v1654
        %v1656 = vpop.f32.mrb[0].mxu0
        %1657 = vmatprep.mubr.f32.mxu0 %v1246
        %1658 = vmatmul.mubr.f32.gmra.mrb[0].mxu0 %v1245
        %v1659 = vpop.f32.mrb[0].mxu0
        %v1660 = vadd.f32 0.0, %v1659
        %v1661 = vpop.f32.mrb[0].mxu0
        %1662 = vmatprep.mubr.f32.mxu0 %v1255
        %1663 = vmatmul.mubr.f32.gmra.mrb[0].mxu0 %v1254
        %v1664 = vpop.f32.mrb[0].mxu0
        %v1665 = vadd.f32 0.0, %v1664
        %v1666 = vpop.f32.mrb[0].mxu0
        %1667 = vmatprep.mubr.f32.mxu0 %v1264
        %1668 = vmatmul.mubr.f32.gmra.mrb[0].mxu0 %v1263
        %v1669 = vpop.f32.mrb[0].mxu0
        %v1670 = vadd.f32 0.0, %v1669
        %v1671 = vpop.f32.mrb[0].mxu0
        %1672 = vmatprep.mubr.f32.mxu0 %v1273
        %1673 = vmatmul.mubr.f32.gmra.mrb[0].mxu0 %v1272
        %v1674 = vpop.f32.mrb[0].mxu0
        %v1675 = vadd.f32 0.0, %v1674
        %v1676 = vpop.f32.mrb[0].mxu0
        %1677 = vmatprep.mubr.f32.mxu0 %v1282
        %1678 = vmatmul.mubr.f32.gmra.mrb[0].mxu0 %v1281
        %v1679 = vpop.f32.mrb[0].mxu0
        %v1680 = vadd.f32 0.0, %v1679
        %v1681 = vpop.f32.mrb[0].mxu0
        %1682 = vmatprep.mubr.f32.mxu0 %v1291
        %1683 = vmatmul.mubr.f32.gmra.mrb[0].mxu0 %v1290
        %v1684 = vpop.f32.mrb[0].mxu0
        %v1685 = vadd.f32 0.0, %v1684
        %v1686 = vpop.f32.mrb[0].mxu0
        %1687 = vmatprep.mubr.f32.mxu0 %v1300
        %1688 = vmatmul.mubr.f32.gmra.mrb[0].mxu0 %v1299
        %v1689 = vpop.f32.mrb[0].mxu0
        %v1690 = vadd.f32 0.0, %v1689
        %v1691 = vpop.f32.mrb[0].mxu0
        %1692 = vmatprep.mubr.f32.mxu0 %v1309
        %1693 = vmatmul.mubr.f32.gmra.mrb[0].mxu0 %v1308
        %v1694 = vpop.f32.mrb[0].mxu0
        %v1695 = vadd.f32 0.0, %v1694
        %v1696 = vpop.f32.mrb[0].mxu0
        %1697 = vmatprep.mubr.f32.mxu0 %v1318
        %1698 = vmatmul.mubr.f32.gmra.mrb[0].mxu0 %v1317
        %v1699 = vpop.f32.mrb[0].mxu0
        %v1700 = vadd.f32 0.0, %v1699
        %v1701 = vpop.f32.mrb[0].mxu0
        %1702 = vmatprep.mubr.f32.mxu0 %v1327
        %1703 = vmatmul.mubr.f32.gmra.mrb[0].mxu0 %v1326
        %v1704 = vpop.f32.mrb[0].mxu0
        %v1705 = vadd.f32 0.0, %v1704
        %v1706 = vpop.f32.mrb[0].mxu0
        %1707 = vmatprep.mubr.f32.mxu0 %v1336
        %1708 = vmatmul.mubr.f32.gmra.mrb[0].mxu0 %v1335
        %v1709 = vpop.f32.mrb[0].mxu0
        %v1710 = vadd.f32 0.0, %v1709
        %v1711 = vpop.f32.mrb[0].mxu0
        %1712 = vdwg.mxu0
        %1713 = vmatprep.subr.mxu0 0.0
        %1714 = vmatpush1.msra.mxu0 %v1376
        %1715 = vmatprep.subr.mxu0 0.0
        %1716 = vmatpush1.msra.mxu0 %v1377
        %1717 = vmatprep.subr.mxu0 0.0
        %1718 = vmatpush1.msra.mxu0 %v1378
        %1719 = vmatprep.subr.mxu0 0.0
        %1720 = vmatpush1.msra.mxu0 %v1379
        %1721 = vmatprep.subr.mxu0 0.0
        %1722 = vmatpush1.msra.mxu0 %v1380
        %1723 = vmatprep.subr.mxu0 0.0
        %1724 = vmatpush1.msra.mxu0 %v1381
        %1725 = vmatprep.subr.mxu0 0.0
        %1726 = vmatpush1.msra.mxu0 %v1382
        %1727 = vmatprep.subr.mxu0 0.0
        %1728 = vmatpush1.msra.mxu0 %v1383
        %1729 = vmatprep.subr.mxu0 0.0
        %1730 = vmatpush1.msra.mxu0 %v1384
        %1731 = vmatprep.subr.mxu0 0.0
        %1732 = vmatpush1.msra.mxu0 %v1385
        %1733 = vmatprep.subr.mxu0 0.0
        %1734 = vmatpush1.msra.mxu0 %v1386
        %1735 = vmatprep.subr.mxu0 0.0
        %1736 = vmatpush1.msra.mxu0 %v1387
        %1737 = vmatprep.subr.mxu0 0.0
        %1738 = vmatpush1.msra.mxu0 %v1388
        %1739 = vmatprep.subr.mxu0 0.0
        %1740 = vmatpush1.msra.mxu0 %v1389
        %1741 = vmatprep.subr.mxu0 0.0
        %1742 = vmatpush1.msra.mxu0 %v1390
        %1743 = vmatprep.subr.mxu0 0.0
        %1744 = vmatpush1.msra.mxu0 %v1391
        %1745 = vmatprep.subr.mxu0 0.0
        %1746 = vmatpush1.msra.mxu0 %v1392
        %1747 = vmatprep.subr.mxu0 0.0
        %1748 = vmatpush1.msra.mxu0 %v1393
        %1749 = vmatprep.subr.mxu0 0.0
        %1750 = vmatpush1.msra.mxu0 %v1394
        %1751 = vmatprep.subr.mxu0 0.0
        %1752 = vmatpush1.msra.mxu0 %v1395
        %1753 = vmatprep.subr.mxu0 0.0
        %1754 = vmatpush1.msra.mxu0 %v1396
        %1755 = vmatprep.subr.mxu0 0.0
        %1756 = vmatpush1.msra.mxu0 %v1397
        %1757 = vmatprep.subr.mxu0 0.0
        %1758 = vmatpush1.msra.mxu0 %v1398
        %1759 = vmatprep.subr.mxu0 0.0
        %1760 = vmatpush1.msra.mxu0 %v1399
        %1761 = vmatprep.subr.mxu0 0.0
        %1762 = vmatpush1.msra.mxu0 %v1400
        %1763 = vmatprep.subr.mxu0 0.0
        %1764 = vmatpush1.msra.mxu0 %v1401
        %1765 = vmatprep.subr.mxu0 0.0
        %1766 = vmatpush1.msra.mxu0 %v1402
        %1767 = vmatprep.subr.mxu0 0.0
        %1768 = vmatpush1.msra.mxu0 %v1403
        %1769 = vmatprep.subr.mxu0 0.0
        %1770 = vmatpush1.msra.mxu0 %v1404
        %1771 = vmatprep.subr.mxu0 0.0
        %1772 = vmatpush1.msra.mxu0 %v1405
        %1773 = vmatprep.subr.mxu0 0.0
        %1774 = vmatpush1.msra.mxu0 %v1406
        %1775 = vmatprep.subr.mxu0 0.0
        %1776 = vmatpush1.msra.mxu0 %v1407
        %1777 = vmatprep.mubr.f32.mxu0 %v1059
        %1778 = vmatmul.mubr.f32.gmra.mrb[0].mxu0 %v1058
        %v1779 = vpop.f32.mrb[0].mxu0
        %v1780 = vadd.f32 %v1555, %v1779
        %v1781 = vpop.f32.mrb[0].mxu0
        %1782 = vmatprep.mubr.f32.mxu0 %v1068
        %1783 = vmatmul.mubr.f32.gmra.mrb[0].mxu0 %v1067
        %v1784 = vpop.f32.mrb[0].mxu0
        %v1785 = vadd.f32 %v1560, %v1784
        %v1786 = vpop.f32.mrb[0].mxu0
        %1787 = vmatprep.mubr.f32.mxu0 %v1077
        %1788 = vmatmul.mubr.f32.gmra.mrb[0].mxu0 %v1076
        %v1789 = vpop.f32.mrb[0].mxu0
        %v1790 = vadd.f32 %v1565, %v1789
        %v1791 = vpop.f32.mrb[0].mxu0
        %1792 = vmatprep.mubr.f32.mxu0 %v1086
        %1793 = vmatmul.mubr.f32.gmra.mrb[0].mxu0 %v1085
        %v1794 = vpop.f32.mrb[0].mxu0
        %v1795 = vadd.f32 %v1570, %v1794
        %v1796 = vpop.f32.mrb[0].mxu0
        %1797 = vmatprep.mubr.f32.mxu0 %v1095
        %1798 = vmatmul.mubr.f32.gmra.mrb[0].mxu0 %v1094
        %v1799 = vpop.f32.mrb[0].mxu0
        %v1800 = vadd.f32 %v1575, %v1799
        %v1801 = vpop.f32.mrb[0].mxu0
        %1802 = vmatprep.mubr.f32.mxu0 %v1104
        %1803 = vmatmul.mubr.f32.gmra.mrb[0].mxu0 %v1103
        %v1804 = vpop.f32.mrb[0].mxu0
        %v1805 = vadd.f32 %v1580, %v1804
        %v1806 = vpop.f32.mrb[0].mxu0
        %1807 = vmatprep.mubr.f32.mxu0 %v1113
        %1808 = vmatmul.mubr.f32.gmra.mrb[0].mxu0 %v1112
        %v1809 = vpop.f32.mrb[0].mxu0
        %v1810 = vadd.f32 %v1585, %v1809
        %v1811 = vpop.f32.mrb[0].mxu0
        %1812 = vmatprep.mubr.f32.mxu0 %v1122
        %1813 = vmatmul.mubr.f32.gmra.mrb[0].mxu0 %v1121
        %v1814 = vpop.f32.mrb[0].mxu0
        %v1815 = vadd.f32 %v1590, %v1814
        %v1816 = vpop.f32.mrb[0].mxu0
        %1817 = vmatprep.mubr.f32.mxu0 %v1131
        %1818 = vmatmul.mubr.f32.gmra.mrb[0].mxu0 %v1130
        %v1819 = vpop.f32.mrb[0].mxu0
        %v1820 = vadd.f32 %v1595, %v1819
        %v1821 = vpop.f32.mrb[0].mxu0
        %1822 = vmatprep.mubr.f32.mxu0 %v1140
        %1823 = vmatmul.mubr.f32.gmra.mrb[0].mxu0 %v1139
        %v1824 = vpop.f32.mrb[0].mxu0
        %v1825 = vadd.f32 %v1600, %v1824
        %v1826 = vpop.f32.mrb[0].mxu0
        %1827 = vmatprep.mubr.f32.mxu0 %v1149
        %1828 = vmatmul.mubr.f32.gmra.mrb[0].mxu0 %v1148
        %v1829 = vpop.f32.mrb[0].mxu0
        %v1830 = vadd.f32 %v1605, %v1829
        %v1831 = vpop.f32.mrb[0].mxu0
        %1832 = vmatprep.mubr.f32.mxu0 %v1158
        %1833 = vmatmul.mubr.f32.gmra.mrb[0].mxu0 %v1157
        %v1834 = vpop.f32.mrb[0].mxu0
        %v1835 = vadd.f32 %v1610, %v1834
        %v1836 = vpop.f32.mrb[0].mxu0
        %1837 = vmatprep.mubr.f32.mxu0 %v1167
        %1838 = vmatmul.mubr.f32.gmra.mrb[0].mxu0 %v1166
        %v1839 = vpop.f32.mrb[0].mxu0
        %v1840 = vadd.f32 %v1615, %v1839
        %v1841 = vpop.f32.mrb[0].mxu0
        %1842 = vmatprep.mubr.f32.mxu0 %v1176
        %1843 = vmatmul.mubr.f32.gmra.mrb[0].mxu0 %v1175
        %v1844 = vpop.f32.mrb[0].mxu0
        %v1845 = vadd.f32 %v1620, %v1844
        %v1846 = vpop.f32.mrb[0].mxu0
        %1847 = vmatprep.mubr.f32.mxu0 %v1185
        %1848 = vmatmul.mubr.f32.gmra.mrb[0].mxu0 %v1184
        %v1849 = vpop.f32.mrb[0].mxu0
        %v1850 = vadd.f32 %v1625, %v1849
        %v1851 = vpop.f32.mrb[0].mxu0
        %1852 = vmatprep.mubr.f32.mxu0 %v1194
        %1853 = vmatmul.mubr.f32.gmra.mrb[0].mxu0 %v1193
        %v1854 = vpop.f32.mrb[0].mxu0
        %v1855 = vadd.f32 %v1630, %v1854
        %v1856 = vpop.f32.mrb[0].mxu0
        %1857 = vmatprep.mubr.f32.mxu0 %v1203
        %1858 = vmatmul.mubr.f32.gmra.mrb[0].mxu0 %v1202
        %v1859 = vpop.f32.mrb[0].mxu0
        %v1860 = vadd.f32 %v1635, %v1859
        %v1861 = vpop.f32.mrb[0].mxu0
        %1862 = vmatprep.mubr.f32.mxu0 %v1212
        %1863 = vmatmul.mubr.f32.gmra.mrb[0].mxu0 %v1211
        %v1864 = vpop.f32.mrb[0].mxu0
        %v1865 = vadd.f32 %v1640, %v1864
        %v1866 = vpop.f32.mrb[0].mxu0
        %1867 = vmatprep.mubr.f32.mxu0 %v1221
        %1868 = vmatmul.mubr.f32.gmra.mrb[0].mxu0 %v1220
        %v1869 = vpop.f32.mrb[0].mxu0
        %v1870 = vadd.f32 %v1645, %v1869
        %v1871 = vpop.f32.mrb[0].mxu0
        %1872 = vmatprep.mubr.f32.mxu0 %v1230
        %1873 = vmatmul.mubr.f32.gmra.mrb[0].mxu0 %v1229
        %v1874 = vpop.f32.mrb[0].mxu0
        %v1875 = vadd.f32 %v1650, %v1874
        %v1876 = vpop.f32.mrb[0].mxu0
        %1877 = vmatprep.mubr.f32.mxu0 %v1239
        %1878 = vmatmul.mubr.f32.gmra.mrb[0].mxu0 %v1238
        %v1879 = vpop.f32.mrb[0].mxu0
        %v1880 = vadd.f32 %v1655, %v1879
        %v1881 = vpop.f32.mrb[0].mxu0
        %1882 = vmatprep.mubr.f32.mxu0 %v1248
        %1883 = vmatmul.mubr.f32.gmra.mrb[0].mxu0 %v1247
        %v1884 = vpop.f32.mrb[0].mxu0
        %v1885 = vadd.f32 %v1660, %v1884
        %v1886 = vpop.f32.mrb[0].mxu0
        %1887 = vmatprep.mubr.f32.mxu0 %v1257
        %1888 = vmatmul.mubr.f32.gmra.mrb[0].mxu0 %v1256
        %v1889 = vpop.f32.mrb[0].mxu0
        %v1890 = vadd.f32 %v1665, %v1889
        %v1891 = vpop.f32.mrb[0].mxu0
        %1892 = vmatprep.mubr.f32.mxu0 %v1266
        %1893 = vmatmul.mubr.f32.gmra.mrb[0].mxu0 %v1265
        %v1894 = vpop.f32.mrb[0].mxu0
        %v1895 = vadd.f32 %v1670, %v1894
        %v1896 = vpop.f32.mrb[0].mxu0
        %1897 = vmatprep.mubr.f32.mxu0 %v1275
        %1898 = vmatmul.mubr.f32.gmra.mrb[0].mxu0 %v1274
        %v1899 = vpop.f32.mrb[0].mxu0
        %v1900 = vadd.f32 %v1675, %v1899
        %v1901 = vpop.f32.mrb[0].mxu0
        %1902 = vmatprep.mubr.f32.mxu0 %v1284
        %1903 = vmatmul.mubr.f32.gmra.mrb[0].mxu0 %v1283
        %v1904 = vpop.f32.mrb[0].mxu0
        %v1905 = vadd.f32 %v1680, %v1904
        %v1906 = vpop.f32.mrb[0].mxu0
        %1907 = vmatprep.mubr.f32.mxu0 %v1293
        %1908 = vmatmul.mubr.f32.gmra.mrb[0].mxu0 %v1292
        %v1909 = vpop.f32.mrb[0].mxu0
        %v1910 = vadd.f32 %v1685, %v1909
        %v1911 = vpop.f32.mrb[0].mxu0
        %1912 = vmatprep.mubr.f32.mxu0 %v1302
        %1913 = vmatmul.mubr.f32.gmra.mrb[0].mxu0 %v1301
        %v1914 = vpop.f32.mrb[0].mxu0
        %v1915 = vadd.f32 %v1690, %v1914
        %v1916 = vpop.f32.mrb[0].mxu0
        %1917 = vmatprep.mubr.f32.mxu0 %v1311
        %1918 = vmatmul.mubr.f32.gmra.mrb[0].mxu0 %v1310
        %v1919 = vpop.f32.mrb[0].mxu0
        %v1920 = vadd.f32 %v1695, %v1919
        %v1921 = vpop.f32.mrb[0].mxu0
        %1922 = vmatprep.mubr.f32.mxu0 %v1320
        %1923 = vmatmul.mubr.f32.gmra.mrb[0].mxu0 %v1319
        %v1924 = vpop.f32.mrb[0].mxu0
        %v1925 = vadd.f32 %v1700, %v1924
        %v1926 = vpop.f32.mrb[0].mxu0
        %1927 = vmatprep.mubr.f32.mxu0 %v1329
        %1928 = vmatmul.mubr.f32.gmra.mrb[0].mxu0 %v1328
        %v1929 = vpop.f32.mrb[0].mxu0
        %v1930 = vadd.f32 %v1705, %v1929
        %v1931 = vpop.f32.mrb[0].mxu0
        %1932 = vmatprep.mubr.f32.mxu0 %v1338
        %1933 = vmatmul.mubr.f32.gmra.mrb[0].mxu0 %v1337
        %v1934 = vpop.f32.mrb[0].mxu0
        %v1935 = vadd.f32 %v1710, %v1934
        %v1936 = vpop.f32.mrb[0].mxu0
        %1937 = vdwg.mxu0
        %1938 = vmatprep.subr.mxu0 0.0
        %1939 = vmatpush1.msra.mxu0 %v1408
        %1940 = vmatprep.subr.mxu0 0.0
        %1941 = vmatpush1.msra.mxu0 %v1409
        %1942 = vmatprep.subr.mxu0 0.0
        %1943 = vmatpush1.msra.mxu0 %v1410
        %1944 = vmatprep.subr.mxu0 0.0
        %1945 = vmatpush1.msra.mxu0 %v1411
        %1946 = vmatprep.subr.mxu0 0.0
        %1947 = vmatpush1.msra.mxu0 %v1412
        %1948 = vmatprep.subr.mxu0 0.0
        %1949 = vmatpush1.msra.mxu0 %v1413
        %1950 = vmatprep.subr.mxu0 0.0
        %1951 = vmatpush1.msra.mxu0 %v1414
        %1952 = vmatprep.subr.mxu0 0.0
        %1953 = vmatpush1.msra.mxu0 %v1415
        %1954 = vmatprep.subr.mxu0 0.0
        %1955 = vmatpush1.msra.mxu0 %v1416
        %1956 = vmatprep.subr.mxu0 0.0
        %1957 = vmatpush1.msra.mxu0 %v1417
        %1958 = vmatprep.subr.mxu0 0.0
        %1959 = vmatpush1.msra.mxu0 %v1418
        %1960 = vmatprep.subr.mxu0 0.0
        %1961 = vmatpush1.msra.mxu0 %v1419
        %1962 = vmatprep.subr.mxu0 0.0
        %1963 = vmatpush1.msra.mxu0 %v1420
        %1964 = vmatprep.subr.mxu0 0.0
        %1965 = vmatpush1.msra.mxu0 %v1421
        %1966 = vmatprep.subr.mxu0 0.0
        %1967 = vmatpush1.msra.mxu0 %v1422
        %1968 = vmatprep.subr.mxu0 0.0
        %1969 = vmatpush1.msra.mxu0 %v1423
        %1970 = vmatprep.subr.mxu0 0.0
        %1971 = vmatpush1.msra.mxu0 %v1424
        %1972 = vmatprep.subr.mxu0 0.0
        %1973 = vmatpush1.msra.mxu0 %v1425
        %1974 = vmatprep.subr.mxu0 0.0
        %1975 = vmatpush1.msra.mxu0 %v1426
        %1976 = vmatprep.subr.mxu0 0.0
        %1977 = vmatpush1.msra.mxu0 %v1427
        %1978 = vmatprep.subr.mxu0 0.0
        %1979 = vmatpush1.msra.mxu0 %v1428
        %1980 = vmatprep.subr.mxu0 0.0
        %1981 = vmatpush1.msra.mxu0 %v1429
        %1982 = vmatprep.subr.mxu0 0.0
        %1983 = vmatpush1.msra.mxu0 %v1430
        %1984 = vmatprep.subr.mxu0 0.0
        %1985 = vmatpush1.msra.mxu0 %v1431
        %1986 = vmatprep.subr.mxu0 0.0
        %1987 = vmatpush1.msra.mxu0 %v1432
        %1988 = vmatprep.subr.mxu0 0.0
        %1989 = vmatpush1.msra.mxu0 %v1433
        %1990 = vmatprep.subr.mxu0 0.0
        %1991 = vmatpush1.msra.mxu0 %v1434
        %1992 = vmatprep.subr.mxu0 0.0
        %1993 = vmatpush1.msra.mxu0 %v1435
        %1994 = vmatprep.subr.mxu0 0.0
        %1995 = vmatpush1.msra.mxu0 %v1436
        %1996 = vmatprep.subr.mxu0 0.0
        %1997 = vmatpush1.msra.mxu0 %v1437
        %1998 = vmatprep.subr.mxu0 0.0
        %1999 = vmatpush1.msra.mxu0 %v1438
        %2000 = vmatprep.subr.mxu0 0.0
        %2001 = vmatpush1.msra.mxu0 %v1439
        %2002 = vmatprep.mubr.f32.mxu0 %v1061
        %2003 = vmatmul.mubr.f32.gmra.mrb[0].mxu0 %v1060
        %v2004 = vpop.f32.mrb[0].mxu0
        %v2005 = vadd.f32 %v1780, %v2004
        %v2006 = vpop.f32.mrb[0].mxu0
        %2007 = vmatprep.mubr.f32.mxu0 %v1070
        %2008 = vmatmul.mubr.f32.gmra.mrb[0].mxu0 %v1069
        %v2009 = vpop.f32.mrb[0].mxu0
        %v2010 = vadd.f32 %v1785, %v2009
        %v2011 = vpop.f32.mrb[0].mxu0
        %2012 = vmatprep.mubr.f32.mxu0 %v1079
        %2013 = vmatmul.mubr.f32.gmra.mrb[0].mxu0 %v1078
        %v2014 = vpop.f32.mrb[0].mxu0
        %v2015 = vadd.f32 %v1790, %v2014
        %v2016 = vpop.f32.mrb[0].mxu0
        %2017 = vmatprep.mubr.f32.mxu0 %v1088
        %2018 = vmatmul.mubr.f32.gmra.mrb[0].mxu0 %v1087
        %v2019 = vpop.f32.mrb[0].mxu0
        %v2020 = vadd.f32 %v1795, %v2019
        %v2021 = vpop.f32.mrb[0].mxu0
        %2022 = vmatprep.mubr.f32.mxu0 %v1097
        %2023 = vmatmul.mubr.f32.gmra.mrb[0].mxu0 %v1096
        %v2024 = vpop.f32.mrb[0].mxu0
        %v2025 = vadd.f32 %v1800, %v2024
        %v2026 = vpop.f32.mrb[0].mxu0
        %2027 = vmatprep.mubr.f32.mxu0 %v1106
        %2028 = vmatmul.mubr.f32.gmra.mrb[0].mxu0 %v1105
        %v2029 = vpop.f32.mrb[0].mxu0
        %v2030 = vadd.f32 %v1805, %v2029
        %v2031 = vpop.f32.mrb[0].mxu0
        %2032 = vmatprep.mubr.f32.mxu0 %v1115
        %2033 = vmatmul.mubr.f32.gmra.mrb[0].mxu0 %v1114
        %v2034 = vpop.f32.mrb[0].mxu0
        %v2035 = vadd.f32 %v1810, %v2034
        %v2036 = vpop.f32.mrb[0].mxu0
        %2037 = vmatprep.mubr.f32.mxu0 %v1124
        %2038 = vmatmul.mubr.f32.gmra.mrb[0].mxu0 %v1123
        %v2039 = vpop.f32.mrb[0].mxu0
        %v2040 = vadd.f32 %v1815, %v2039
        %v2041 = vpop.f32.mrb[0].mxu0
        %2042 = vmatprep.mubr.f32.mxu0 %v1133
        %2043 = vmatmul.mubr.f32.gmra.mrb[0].mxu0 %v1132
        %v2044 = vpop.f32.mrb[0].mxu0
        %v2045 = vadd.f32 %v1820, %v2044
        %v2046 = vpop.f32.mrb[0].mxu0
        %2047 = vmatprep.mubr.f32.mxu0 %v1142
        %2048 = vmatmul.mubr.f32.gmra.mrb[0].mxu0 %v1141
        %v2049 = vpop.f32.mrb[0].mxu0
        %v2050 = vadd.f32 %v1825, %v2049
        %v2051 = vpop.f32.mrb[0].mxu0
        %2052 = vmatprep.mubr.f32.mxu0 %v1151
        %2053 = vmatmul.mubr.f32.gmra.mrb[0].mxu0 %v1150
        %v2054 = vpop.f32.mrb[0].mxu0
        %v2055 = vadd.f32 %v1830, %v2054
        %v2056 = vpop.f32.mrb[0].mxu0
        %2057 = vmatprep.mubr.f32.mxu0 %v1160
        %2058 = vmatmul.mubr.f32.gmra.mrb[0].mxu0 %v1159
        %v2059 = vpop.f32.mrb[0].mxu0
        %v2060 = vadd.f32 %v1835, %v2059
        %v2061 = vpop.f32.mrb[0].mxu0
        %2062 = vmatprep.mubr.f32.mxu0 %v1169
        %2063 = vmatmul.mubr.f32.gmra.mrb[0].mxu0 %v1168
        %v2064 = vpop.f32.mrb[0].mxu0
        %v2065 = vadd.f32 %v1840, %v2064
        %v2066 = vpop.f32.mrb[0].mxu0
        %2067 = vmatprep.mubr.f32.mxu0 %v1178
        %2068 = vmatmul.mubr.f32.gmra.mrb[0].mxu0 %v1177
        %v2069 = vpop.f32.mrb[0].mxu0
        %v2070 = vadd.f32 %v1845, %v2069
        %v2071 = vpop.f32.mrb[0].mxu0
        %2072 = vmatprep.mubr.f32.mxu0 %v1187
        %2073 = vmatmul.mubr.f32.gmra.mrb[0].mxu0 %v1186
        %v2074 = vpop.f32.mrb[0].mxu0
        %v2075 = vadd.f32 %v1850, %v2074
        %v2076 = vpop.f32.mrb[0].mxu0
        %2077 = vmatprep.mubr.f32.mxu0 %v1196
        %2078 = vmatmul.mubr.f32.gmra.mrb[0].mxu0 %v1195
        %v2079 = vpop.f32.mrb[0].mxu0
        %v2080 = vadd.f32 %v1855, %v2079
        %v2081 = vpop.f32.mrb[0].mxu0
        %2082 = vmatprep.mubr.f32.mxu0 %v1205
        %2083 = vmatmul.mubr.f32.gmra.mrb[0].mxu0 %v1204
        %v2084 = vpop.f32.mrb[0].mxu0
        %v2085 = vadd.f32 %v1860, %v2084
        %v2086 = vpop.f32.mrb[0].mxu0
        %2087 = vmatprep.mubr.f32.mxu0 %v1214
        %2088 = vmatmul.mubr.f32.gmra.mrb[0].mxu0 %v1213
        %v2089 = vpop.f32.mrb[0].mxu0
        %v2090 = vadd.f32 %v1865, %v2089
        %v2091 = vpop.f32.mrb[0].mxu0
        %2092 = vmatprep.mubr.f32.mxu0 %v1223
        %2093 = vmatmul.mubr.f32.gmra.mrb[0].mxu0 %v1222
        %v2094 = vpop.f32.mrb[0].mxu0
        %v2095 = vadd.f32 %v1870, %v2094
        %v2096 = vpop.f32.mrb[0].mxu0
        %2097 = vmatprep.mubr.f32.mxu0 %v1232
        %2098 = vmatmul.mubr.f32.gmra.mrb[0].mxu0 %v1231
        %v2099 = vpop.f32.mrb[0].mxu0
        %v2100 = vadd.f32 %v1875, %v2099
        %v2101 = vpop.f32.mrb[0].mxu0
        %2102 = vmatprep.mubr.f32.mxu0 %v1241
        %2103 = vmatmul.mubr.f32.gmra.mrb[0].mxu0 %v1240
        %v2104 = vpop.f32.mrb[0].mxu0
        %v2105 = vadd.f32 %v1880, %v2104
        %v2106 = vpop.f32.mrb[0].mxu0
        %2107 = vmatprep.mubr.f32.mxu0 %v1250
        %2108 = vmatmul.mubr.f32.gmra.mrb[0].mxu0 %v1249
        %v2109 = vpop.f32.mrb[0].mxu0
        %v2110 = vadd.f32 %v1885, %v2109
        %v2111 = vpop.f32.mrb[0].mxu0
        %2112 = vmatprep.mubr.f32.mxu0 %v1259
        %2113 = vmatmul.mubr.f32.gmra.mrb[0].mxu0 %v1258
        %v2114 = vpop.f32.mrb[0].mxu0
        %v2115 = vadd.f32 %v1890, %v2114
        %v2116 = vpop.f32.mrb[0].mxu0
        %2117 = vmatprep.mubr.f32.mxu0 %v1268
        %2118 = vmatmul.mubr.f32.gmra.mrb[0].mxu0 %v1267
        %v2119 = vpop.f32.mrb[0].mxu0
        %v2120 = vadd.f32 %v1895, %v2119
        %v2121 = vpop.f32.mrb[0].mxu0
        %2122 = vmatprep.mubr.f32.mxu0 %v1277
        %2123 = vmatmul.mubr.f32.gmra.mrb[0].mxu0 %v1276
        %v2124 = vpop.f32.mrb[0].mxu0
        %v2125 = vadd.f32 %v1900, %v2124
        %v2126 = vpop.f32.mrb[0].mxu0
        %2127 = vmatprep.mubr.f32.mxu0 %v1286
        %2128 = vmatmul.mubr.f32.gmra.mrb[0].mxu0 %v1285
        %v2129 = vpop.f32.mrb[0].mxu0
        %v2130 = vadd.f32 %v1905, %v2129
        %v2131 = vpop.f32.mrb[0].mxu0
        %2132 = vmatprep.mubr.f32.mxu0 %v1295
        %2133 = vmatmul.mubr.f32.gmra.mrb[0].mxu0 %v1294
        %v2134 = vpop.f32.mrb[0].mxu0
        %v2135 = vadd.f32 %v1910, %v2134
        %v2136 = vpop.f32.mrb[0].mxu0
        %2137 = vmatprep.mubr.f32.mxu0 %v1304
        %2138 = vmatmul.mubr.f32.gmra.mrb[0].mxu0 %v1303
        %v2139 = vpop.f32.mrb[0].mxu0
        %v2140 = vadd.f32 %v1915, %v2139
        %v2141 = vpop.f32.mrb[0].mxu0
        %2142 = vmatprep.mubr.f32.mxu0 %v1313
        %2143 = vmatmul.mubr.f32.gmra.mrb[0].mxu0 %v1312
        %v2144 = vpop.f32.mrb[0].mxu0
        %v2145 = vadd.f32 %v1920, %v2144
        %v2146 = vpop.f32.mrb[0].mxu0
        %2147 = vmatprep.mubr.f32.mxu0 %v1322
        %2148 = vmatmul.mubr.f32.gmra.mrb[0].mxu0 %v1321
        %v2149 = vpop.f32.mrb[0].mxu0
        %v2150 = vadd.f32 %v1925, %v2149
        %v2151 = vpop.f32.mrb[0].mxu0
        %2152 = vmatprep.mubr.f32.mxu0 %v1331
        %2153 = vmatmul.mubr.f32.gmra.mrb[0].mxu0 %v1330
        %v2154 = vpop.f32.mrb[0].mxu0
        %v2155 = vadd.f32 %v1930, %v2154
        %v2156 = vpop.f32.mrb[0].mxu0
        %2157 = vmatprep.mubr.f32.mxu0 %v1340
        %2158 = vmatmul.mubr.f32.gmra.mrb[0].mxu0 %v1339
        %v2159 = vpop.f32.mrb[0].mxu0
        %v2160 = vadd.f32 %v1935, %v2159
        %v2161 = vpop.f32.mrb[0].mxu0
        %2162 = vdwg.mxu0
        %2163 = vmatprep.subr.mxu0 0.0
        %2164 = vmatpush1.msra.mxu0 %v1440
        %2165 = vmatprep.subr.mxu0 0.0
        %2166 = vmatpush1.msra.mxu0 %v1441
        %2167 = vmatprep.subr.mxu0 0.0
        %2168 = vmatpush1.msra.mxu0 %v1442
        %2169 = vmatprep.subr.mxu0 0.0
        %2170 = vmatpush1.msra.mxu0 %v1443
        %2171 = vmatprep.subr.mxu0 0.0
        %2172 = vmatpush1.msra.mxu0 %v1444
        %2173 = vmatprep.subr.mxu0 0.0
        %2174 = vmatpush1.msra.mxu0 %v1445
        %2175 = vmatprep.subr.mxu0 0.0
        %2176 = vmatpush1.msra.mxu0 %v1446
        %2177 = vmatprep.subr.mxu0 0.0
        %2178 = vmatpush1.msra.mxu0 %v1447
        %2179 = vmatprep.subr.mxu0 0.0
        %2180 = vmatpush1.msra.mxu0 %v1448
        %2181 = vmatprep.subr.mxu0 0.0
        %2182 = vmatpush1.msra.mxu0 %v1449
        %2183 = vmatprep.subr.mxu0 0.0
        %2184 = vmatpush1.msra.mxu0 %v1450
        %2185 = vmatprep.subr.mxu0 0.0
        %2186 = vmatpush1.msra.mxu0 %v1451
        %2187 = vmatprep.subr.mxu0 0.0
        %2188 = vmatpush1.msra.mxu0 %v1452
        %2189 = vmatprep.subr.mxu0 0.0
        %2190 = vmatpush1.msra.mxu0 %v1453
        %2191 = vmatprep.subr.mxu0 0.0
        %2192 = vmatpush1.msra.mxu0 %v1454
        %2193 = vmatprep.subr.mxu0 0.0
        %2194 = vmatpush1.msra.mxu0 %v1455
        %2195 = vmatprep.subr.mxu0 0.0
        %2196 = vmatpush1.msra.mxu0 %v1456
        %2197 = vmatprep.subr.mxu0 0.0
        %2198 = vmatpush1.msra.mxu0 %v1457
        %2199 = vmatprep.subr.mxu0 0.0
        %2200 = vmatpush1.msra.mxu0 %v1458
        %2201 = vmatprep.subr.mxu0 0.0
        %2202 = vmatpush1.msra.mxu0 %v1459
        %2203 = vmatprep.subr.mxu0 0.0
        %2204 = vmatpush1.msra.mxu0 %v1460
        %2205 = vmatprep.subr.mxu0 0.0
        %2206 = vmatpush1.msra.mxu0 %v1461
        %2207 = vmatprep.subr.mxu0 0.0
        %2208 = vmatpush1.msra.mxu0 %v1462
        %2209 = vmatprep.subr.mxu0 0.0
        %2210 = vmatpush1.msra.mxu0 %v1463
        %2211 = vmatprep.subr.mxu0 0.0
        %2212 = vmatpush1.msra.mxu0 %v1464
        %2213 = vmatprep.subr.mxu0 0.0
        %2214 = vmatpush1.msra.mxu0 %v1465
        %2215 = vmatprep.subr.mxu0 0.0
        %2216 = vmatpush1.msra.mxu0 %v1466
        %2217 = vmatprep.subr.mxu0 0.0
        %2218 = vmatpush1.msra.mxu0 %v1467
        %2219 = vmatprep.subr.mxu0 0.0
        %2220 = vmatpush1.msra.mxu0 %v1468
        %2221 = vmatprep.subr.mxu0 0.0
        %2222 = vmatpush1.msra.mxu0 %v1469
        %2223 = vmatprep.subr.mxu0 0.0
        %2224 = vmatpush1.msra.mxu0 %v1470
        %2225 = vmatprep.subr.mxu0 0.0
        %2226 = vmatpush1.msra.mxu0 %v1471
        %2227 = vmatprep.mubr.f32.mxu0 %v1063
        %2228 = vmatmul.mubr.f32.gmra.mrb[0].mxu0 %v1062
        %v2229 = vpop.f32.mrb[0].mxu0
        %v2230 = vadd.f32 %v2005, %v2229
        %v2231 = vpop.f32.mrb[0].mxu0
        %2232 = vmatprep.mubr.f32.mxu0 %v1072
        %2233 = vmatmul.mubr.f32.gmra.mrb[0].mxu0 %v1071
        %v2234 = vpop.f32.mrb[0].mxu0
        %v2235 = vadd.f32 %v2010, %v2234
        %v2236 = vpop.f32.mrb[0].mxu0
        %2237 = vmatprep.mubr.f32.mxu0 %v1081
        %2238 = vmatmul.mubr.f32.gmra.mrb[0].mxu0 %v1080
        %v2239 = vpop.f32.mrb[0].mxu0
        %v2240 = vadd.f32 %v2015, %v2239
        %v2241 = vpop.f32.mrb[0].mxu0
        %2242 = vmatprep.mubr.f32.mxu0 %v1090
        %2243 = vmatmul.mubr.f32.gmra.mrb[0].mxu0 %v1089
        %v2244 = vpop.f32.mrb[0].mxu0
        %v2245 = vadd.f32 %v2020, %v2244
        %v2246 = vpop.f32.mrb[0].mxu0
        %2247 = vmatprep.mubr.f32.mxu0 %v1099
        %2248 = vmatmul.mubr.f32.gmra.mrb[0].mxu0 %v1098
        %v2249 = vpop.f32.mrb[0].mxu0
        %v2250 = vadd.f32 %v2025, %v2249
        %v2251 = vpop.f32.mrb[0].mxu0
        %2252 = vmatprep.mubr.f32.mxu0 %v1108
        %2253 = vmatmul.mubr.f32.gmra.mrb[0].mxu0 %v1107
        %v2254 = vpop.f32.mrb[0].mxu0
        %v2255 = vadd.f32 %v2030, %v2254
        %v2256 = vpop.f32.mrb[0].mxu0
        %2257 = vmatprep.mubr.f32.mxu0 %v1117
        %2258 = vmatmul.mubr.f32.gmra.mrb[0].mxu0 %v1116
        %v2259 = vpop.f32.mrb[0].mxu0
        %v2260 = vadd.f32 %v2035, %v2259
        %v2261 = vpop.f32.mrb[0].mxu0
        %2262 = vmatprep.mubr.f32.mxu0 %v1126
        %2263 = vmatmul.mubr.f32.gmra.mrb[0].mxu0 %v1125
        %v2264 = vpop.f32.mrb[0].mxu0
        %v2265 = vadd.f32 %v2040, %v2264
        %v2266 = vpop.f32.mrb[0].mxu0
        %2267 = vmatprep.mubr.f32.mxu0 %v1135
        %2268 = vmatmul.mubr.f32.gmra.mrb[0].mxu0 %v1134
        %v2269 = vpop.f32.mrb[0].mxu0
        %v2270 = vadd.f32 %v2045, %v2269
        %v2271 = vpop.f32.mrb[0].mxu0
        %2272 = vmatprep.mubr.f32.mxu0 %v1144
        %2273 = vmatmul.mubr.f32.gmra.mrb[0].mxu0 %v1143
        %v2274 = vpop.f32.mrb[0].mxu0
        %v2275 = vadd.f32 %v2050, %v2274
        %v2276 = vpop.f32.mrb[0].mxu0
        %2277 = vmatprep.mubr.f32.mxu0 %v1153
        %2278 = vmatmul.mubr.f32.gmra.mrb[0].mxu0 %v1152
        %v2279 = vpop.f32.mrb[0].mxu0
        %v2280 = vadd.f32 %v2055, %v2279
        %v2281 = vpop.f32.mrb[0].mxu0
        %2282 = vmatprep.mubr.f32.mxu0 %v1162
        %2283 = vmatmul.mubr.f32.gmra.mrb[0].mxu0 %v1161
        %v2284 = vpop.f32.mrb[0].mxu0
        %v2285 = vadd.f32 %v2060, %v2284
        %v2286 = vpop.f32.mrb[0].mxu0
        %2287 = vmatprep.mubr.f32.mxu0 %v1171
        %2288 = vmatmul.mubr.f32.gmra.mrb[0].mxu0 %v1170
        %v2289 = vpop.f32.mrb[0].mxu0
        %v2290 = vadd.f32 %v2065, %v2289
        %v2291 = vpop.f32.mrb[0].mxu0
        %2292 = vmatprep.mubr.f32.mxu0 %v1180
        %2293 = vmatmul.mubr.f32.gmra.mrb[0].mxu0 %v1179
        %v2294 = vpop.f32.mrb[0].mxu0
        %v2295 = vadd.f32 %v2070, %v2294
        %v2296 = vpop.f32.mrb[0].mxu0
        %2297 = vmatprep.mubr.f32.mxu0 %v1189
        %2298 = vmatmul.mubr.f32.gmra.mrb[0].mxu0 %v1188
        %v2299 = vpop.f32.mrb[0].mxu0
        %v2300 = vadd.f32 %v2075, %v2299
        %v2301 = vpop.f32.mrb[0].mxu0
        %2302 = vmatprep.mubr.f32.mxu0 %v1198
        %2303 = vmatmul.mubr.f32.gmra.mrb[0].mxu0 %v1197
        %v2304 = vpop.f32.mrb[0].mxu0
        %v2305 = vadd.f32 %v2080, %v2304
        %v2306 = vpop.f32.mrb[0].mxu0
        %2307 = vmatprep.mubr.f32.mxu0 %v1207
        %2308 = vmatmul.mubr.f32.gmra.mrb[0].mxu0 %v1206
        %v2309 = vpop.f32.mrb[0].mxu0
        %v2310 = vadd.f32 %v2085, %v2309
        %v2311 = vpop.f32.mrb[0].mxu0
        %2312 = vmatprep.mubr.f32.mxu0 %v1216
        %2313 = vmatmul.mubr.f32.gmra.mrb[0].mxu0 %v1215
        %v2314 = vpop.f32.mrb[0].mxu0
        %v2315 = vadd.f32 %v2090, %v2314
        %v2316 = vpop.f32.mrb[0].mxu0
        %2317 = vmatprep.mubr.f32.mxu0 %v1225
        %2318 = vmatmul.mubr.f32.gmra.mrb[0].mxu0 %v1224
        %v2319 = vpop.f32.mrb[0].mxu0
        %v2320 = vadd.f32 %v2095, %v2319
        %v2321 = vpop.f32.mrb[0].mxu0
        %2322 = vmatprep.mubr.f32.mxu0 %v1234
        %2323 = vmatmul.mubr.f32.gmra.mrb[0].mxu0 %v1233
        %v2324 = vpop.f32.mrb[0].mxu0
        %v2325 = vadd.f32 %v2100, %v2324
        %v2326 = vpop.f32.mrb[0].mxu0
        %2327 = vmatprep.mubr.f32.mxu0 %v1243
        %2328 = vmatmul.mubr.f32.gmra.mrb[0].mxu0 %v1242
        %v2329 = vpop.f32.mrb[0].mxu0
        %v2330 = vadd.f32 %v2105, %v2329
        %v2331 = vpop.f32.mrb[0].mxu0
        %2332 = vmatprep.mubr.f32.mxu0 %v1252
        %2333 = vmatmul.mubr.f32.gmra.mrb[0].mxu0 %v1251
        %v2334 = vpop.f32.mrb[0].mxu0
        %v2335 = vadd.f32 %v2110, %v2334
        %v2336 = vpop.f32.mrb[0].mxu0
        %2337 = vmatprep.mubr.f32.mxu0 %v1261
        %2338 = vmatmul.mubr.f32.gmra.mrb[0].mxu0 %v1260
        %v2339 = vpop.f32.mrb[0].mxu0
        %v2340 = vadd.f32 %v2115, %v2339
        %v2341 = vpop.f32.mrb[0].mxu0
        %2342 = vmatprep.mubr.f32.mxu0 %v1270
        %2343 = vmatmul.mubr.f32.gmra.mrb[0].mxu0 %v1269
        %v2344 = vpop.f32.mrb[0].mxu0
        %v2345 = vadd.f32 %v2120, %v2344
        %v2346 = vpop.f32.mrb[0].mxu0
        %2347 = vmatprep.mubr.f32.mxu0 %v1279
        %2348 = vmatmul.mubr.f32.gmra.mrb[0].mxu0 %v1278
        %v2349 = vpop.f32.mrb[0].mxu0
        %v2350 = vadd.f32 %v2125, %v2349
        %v2351 = vpop.f32.mrb[0].mxu0
        %2352 = vmatprep.mubr.f32.mxu0 %v1288
        %2353 = vmatmul.mubr.f32.gmra.mrb[0].mxu0 %v1287
        %v2354 = vpop.f32.mrb[0].mxu0
        %v2355 = vadd.f32 %v2130, %v2354
        %v2356 = vpop.f32.mrb[0].mxu0
        %2357 = vmatprep.mubr.f32.mxu0 %v1297
        %2358 = vmatmul.mubr.f32.gmra.mrb[0].mxu0 %v1296
        %v2359 = vpop.f32.mrb[0].mxu0
        %v2360 = vadd.f32 %v2135, %v2359
        %v2361 = vpop.f32.mrb[0].mxu0
        %2362 = vmatprep.mubr.f32.mxu0 %v1306
        %2363 = vmatmul.mubr.f32.gmra.mrb[0].mxu0 %v1305
        %v2364 = vpop.f32.mrb[0].mxu0
        %v2365 = vadd.f32 %v2140, %v2364
        %v2366 = vpop.f32.mrb[0].mxu0
        %2367 = vmatprep.mubr.f32.mxu0 %v1315
        %2368 = vmatmul.mubr.f32.gmra.mrb[0].mxu0 %v1314
        %v2369 = vpop.f32.mrb[0].mxu0
        %v2370 = vadd.f32 %v2145, %v2369
        %v2371 = vpop.f32.mrb[0].mxu0
        %2372 = vmatprep.mubr.f32.mxu0 %v1324
        %2373 = vmatmul.mubr.f32.gmra.mrb[0].mxu0 %v1323
        %v2374 = vpop.f32.mrb[0].mxu0
        %v2375 = vadd.f32 %v2150, %v2374
        %v2376 = vpop.f32.mrb[0].mxu0
        %2377 = vmatprep.mubr.f32.mxu0 %v1333
        %2378 = vmatmul.mubr.f32.gmra.mrb[0].mxu0 %v1332
        %v2379 = vpop.f32.mrb[0].mxu0
        %v2380 = vadd.f32 %v2155, %v2379
        %v2381 = vpop.f32.mrb[0].mxu0
        %2382 = vmatprep.mubr.f32.mxu0 %v1342
        %2383 = vmatmul.mubr.f32.gmra.mrb[0].mxu0 %v1341
        %v2384 = vpop.f32.mrb[0].mxu0
        %v2385 = vadd.f32 %v2160, %v2384
        %v2386 = vpop.f32.mrb[0].mxu0
        %2387 = vdwg.mxu0
        %2388 = vmatprep.subr.mxu0 0.0
        %2389 = vmatpush1.msra.mxu0 %v1472
        %2390 = vmatprep.subr.mxu0 0.0
        %2391 = vmatpush1.msra.mxu0 %v1473
        %2392 = vmatprep.subr.mxu0 0.0
        %2393 = vmatpush1.msra.mxu0 %v1474
        %2394 = vmatprep.subr.mxu0 0.0
        %2395 = vmatpush1.msra.mxu0 %v1475
        %2396 = vmatprep.subr.mxu0 0.0
        %2397 = vmatpush1.msra.mxu0 %v1476
        %2398 = vmatprep.subr.mxu0 0.0
        %2399 = vmatpush1.msra.mxu0 %v1477
        %2400 = vmatprep.subr.mxu0 0.0
        %2401 = vmatpush1.msra.mxu0 %v1478
        %2402 = vmatprep.subr.mxu0 0.0
        %2403 = vmatpush1.msra.mxu0 %v1479
        %2404 = vmatprep.subr.mxu0 0.0
        %2405 = vmatpush1.msra.mxu0 %v1480
        %2406 = vmatprep.subr.mxu0 0.0
        %2407 = vmatpush1.msra.mxu0 %v1481
        %2408 = vmatprep.subr.mxu0 0.0
        %2409 = vmatpush1.msra.mxu0 %v1482
        %2410 = vmatprep.subr.mxu0 0.0
        %2411 = vmatpush1.msra.mxu0 %v1483
        %2412 = vmatprep.subr.mxu0 0.0
        %2413 = vmatpush1.msra.mxu0 %v1484
        %2414 = vmatprep.subr.mxu0 0.0
        %2415 = vmatpush1.msra.mxu0 %v1485
        %2416 = vmatprep.subr.mxu0 0.0
        %2417 = vmatpush1.msra.mxu0 %v1486
        %2418 = vmatprep.subr.mxu0 0.0
        %2419 = vmatpush1.msra.mxu0 %v1487
        %2420 = vmatprep.subr.mxu0 0.0
        %2421 = vmatpush1.msra.mxu0 0.0
        %2422 = vmatprep.subr.mxu0 0.0
        %2423 = vmatpush1.msra.mxu0 0.0
        %2424 = vmatprep.subr.mxu0 0.0
        %2425 = vmatpush1.msra.mxu0 0.0
        %2426 = vmatprep.subr.mxu0 0.0
        %2427 = vmatpush1.msra.mxu0 0.0
        %2428 = vmatprep.subr.mxu0 0.0
        %2429 = vmatpush1.msra.mxu0 0.0
        %2430 = vmatprep.subr.mxu0 0.0
        %2431 = vmatpush1.msra.mxu0 0.0
        %2432 = vmatprep.subr.mxu0 0.0
        %2433 = vmatpush1.msra.mxu0 0.0
        %2434 = vmatprep.subr.mxu0 0.0
        %2435 = vmatpush1.msra.mxu0 0.0
        %2436 = vmatprep.subr.mxu0 0.0
        %2437 = vmatpush1.msra.mxu0 0.0
        %2438 = vmatprep.subr.mxu0 0.0
        %2439 = vmatpush1.msra.mxu0 0.0
        %2440 = vmatprep.subr.mxu0 0.0
        %2441 = vmatpush1.msra.mxu0 0.0
        %2442 = vmatprep.subr.mxu0 0.0
        %2443 = vmatpush1.msra.mxu0 0.0
        %2444 = vmatprep.subr.mxu0 0.0
        %2445 = vmatpush1.msra.mxu0 0.0
        %2446 = vmatprep.subr.mxu0 0.0
        %2447 = vmatpush1.msra.mxu0 0.0
        %2448 = vmatprep.subr.mxu0 0.0
        %2449 = vmatpush1.msra.mxu0 0.0
        %2450 = vmatprep.subr.mxu0 0.0
        %2451 = vmatpush1.msra.mxu0 0.0
        %2452 = vmatprep.mubr.f32.mxu0 0.0
        %2453 = vmatmul.mubr.f32.gmra.mrb[0].mxu0 %v1064
        %v2454 = vpop.f32.mrb[0].mxu0
        %v2455 = vadd.f32 %v2230, %v2454
        %v2456 = vpop.f32.mrb[0].mxu0
        %2457 = vmatprep.mubr.f32.mxu0 0.0
        %2458 = vmatmul.mubr.f32.gmra.mrb[0].mxu0 %v1073
        %v2459 = vpop.f32.mrb[0].mxu0
        %v2460 = vadd.f32 %v2235, %v2459
        %v2461 = vpop.f32.mrb[0].mxu0
        %2462 = vmatprep.mubr.f32.mxu0 0.0
        %2463 = vmatmul.mubr.f32.gmra.mrb[0].mxu0 %v1082
        %v2464 = vpop.f32.mrb[0].mxu0
        %v2465 = vadd.f32 %v2240, %v2464
        %v2466 = vpop.f32.mrb[0].mxu0
        %2467 = vmatprep.mubr.f32.mxu0 0.0
        %2468 = vmatmul.mubr.f32.gmra.mrb[0].mxu0 %v1091
        %v2469 = vpop.f32.mrb[0].mxu0
        %v2470 = vadd.f32 %v2245, %v2469
        %v2471 = vpop.f32.mrb[0].mxu0
        %2472 = vmatprep.mubr.f32.mxu0 0.0
        %2473 = vmatmul.mubr.f32.gmra.mrb[0].mxu0 %v1100
        %v2474 = vpop.f32.mrb[0].mxu0
        %v2475 = vadd.f32 %v2250, %v2474
        %v2476 = vpop.f32.mrb[0].mxu0
        %2477 = vmatprep.mubr.f32.mxu0 0.0
        %2478 = vmatmul.mubr.f32.gmra.mrb[0].mxu0 %v1109
        %v2479 = vpop.f32.mrb[0].mxu0
        %v2480 = vadd.f32 %v2255, %v2479
        %v2481 = vpop.f32.mrb[0].mxu0
        %2482 = vmatprep.mubr.f32.mxu0 0.0
        %2483 = vmatmul.mubr.f32.gmra.mrb[0].mxu0 %v1118
        %v2484 = vpop.f32.mrb[0].mxu0
        %v2485 = vadd.f32 %v2260, %v2484
        %v2486 = vpop.f32.mrb[0].mxu0
        %2487 = vmatprep.mubr.f32.mxu0 0.0
        %2488 = vmatmul.mubr.f32.gmra.mrb[0].mxu0 %v1127
        %v2489 = vpop.f32.mrb[0].mxu0
        %v2490 = vadd.f32 %v2265, %v2489
        %v2491 = vpop.f32.mrb[0].mxu0
        %2492 = vmatprep.mubr.f32.mxu0 0.0
        %2493 = vmatmul.mubr.f32.gmra.mrb[0].mxu0 %v1136
        %v2494 = vpop.f32.mrb[0].mxu0
        %v2495 = vadd.f32 %v2270, %v2494
        %v2496 = vpop.f32.mrb[0].mxu0
        %2497 = vmatprep.mubr.f32.mxu0 0.0
        %2498 = vmatmul.mubr.f32.gmra.mrb[0].mxu0 %v1145
        %v2499 = vpop.f32.mrb[0].mxu0
        %v2500 = vadd.f32 %v2275, %v2499
        %v2501 = vpop.f32.mrb[0].mxu0
        %2502 = vmatprep.mubr.f32.mxu0 0.0
        %2503 = vmatmul.mubr.f32.gmra.mrb[0].mxu0 %v1154
        %v2504 = vpop.f32.mrb[0].mxu0
        %v2505 = vadd.f32 %v2280, %v2504
        %v2506 = vpop.f32.mrb[0].mxu0
        %2507 = vmatprep.mubr.f32.mxu0 0.0
        %2508 = vmatmul.mubr.f32.gmra.mrb[0].mxu0 %v1163
        %v2509 = vpop.f32.mrb[0].mxu0
        %v2510 = vadd.f32 %v2285, %v2509
        %v2511 = vpop.f32.mrb[0].mxu0
        %2512 = vmatprep.mubr.f32.mxu0 0.0
        %2513 = vmatmul.mubr.f32.gmra.mrb[0].mxu0 %v1172
        %v2514 = vpop.f32.mrb[0].mxu0
        %v2515 = vadd.f32 %v2290, %v2514
        %v2516 = vpop.f32.mrb[0].mxu0
        %2517 = vmatprep.mubr.f32.mxu0 0.0
        %2518 = vmatmul.mubr.f32.gmra.mrb[0].mxu0 %v1181
        %v2519 = vpop.f32.mrb[0].mxu0
        %v2520 = vadd.f32 %v2295, %v2519
        %v2521 = vpop.f32.mrb[0].mxu0
        %2522 = vmatprep.mubr.f32.mxu0 0.0
        %2523 = vmatmul.mubr.f32.gmra.mrb[0].mxu0 %v1190
        %v2524 = vpop.f32.mrb[0].mxu0
        %v2525 = vadd.f32 %v2300, %v2524
        %v2526 = vpop.f32.mrb[0].mxu0
        %2527 = vmatprep.mubr.f32.mxu0 0.0
        %2528 = vmatmul.mubr.f32.gmra.mrb[0].mxu0 %v1199
        %v2529 = vpop.f32.mrb[0].mxu0
        %v2530 = vadd.f32 %v2305, %v2529
        %v2531 = vpop.f32.mrb[0].mxu0
        %2532 = vmatprep.mubr.f32.mxu0 0.0
        %2533 = vmatmul.mubr.f32.gmra.mrb[0].mxu0 %v1208
        %v2534 = vpop.f32.mrb[0].mxu0
        %v2535 = vadd.f32 %v2310, %v2534
        %v2536 = vpop.f32.mrb[0].mxu0
        %2537 = vmatprep.mubr.f32.mxu0 0.0
        %2538 = vmatmul.mubr.f32.gmra.mrb[0].mxu0 %v1217
        %v2539 = vpop.f32.mrb[0].mxu0
        %v2540 = vadd.f32 %v2315, %v2539
        %v2541 = vpop.f32.mrb[0].mxu0
        %2542 = vmatprep.mubr.f32.mxu0 0.0
        %2543 = vmatmul.mubr.f32.gmra.mrb[0].mxu0 %v1226
        %v2544 = vpop.f32.mrb[0].mxu0
        %v2545 = vadd.f32 %v2320, %v2544
        %v2546 = vpop.f32.mrb[0].mxu0
        %2547 = vmatprep.mubr.f32.mxu0 0.0
        %2548 = vmatmul.mubr.f32.gmra.mrb[0].mxu0 %v1235
        %v2549 = vpop.f32.mrb[0].mxu0
        %v2550 = vadd.f32 %v2325, %v2549
        %v2551 = vpop.f32.mrb[0].mxu0
        %2552 = vmatprep.mubr.f32.mxu0 0.0
        %2553 = vmatmul.mubr.f32.gmra.mrb[0].mxu0 %v1244
        %v2554 = vpop.f32.mrb[0].mxu0
        %v2555 = vadd.f32 %v2330, %v2554
        %v2556 = vpop.f32.mrb[0].mxu0
        %2557 = vmatprep.mubr.f32.mxu0 0.0
        %2558 = vmatmul.mubr.f32.gmra.mrb[0].mxu0 %v1253
        %v2559 = vpop.f32.mrb[0].mxu0
        %v2560 = vadd.f32 %v2335, %v2559
        %v2561 = vpop.f32.mrb[0].mxu0
        %2562 = vmatprep.mubr.f32.mxu0 0.0
        %2563 = vmatmul.mubr.f32.gmra.mrb[0].mxu0 %v1262
        %v2564 = vpop.f32.mrb[0].mxu0
        %v2565 = vadd.f32 %v2340, %v2564
        %v2566 = vpop.f32.mrb[0].mxu0
        %2567 = vmatprep.mubr.f32.mxu0 0.0
        %2568 = vmatmul.mubr.f32.gmra.mrb[0].mxu0 %v1271
        %v2569 = vpop.f32.mrb[0].mxu0
        %v2570 = vadd.f32 %v2345, %v2569
        %v2571 = vpop.f32.mrb[0].mxu0
        %2572 = vmatprep.mubr.f32.mxu0 0.0
        %2573 = vmatmul.mubr.f32.gmra.mrb[0].mxu0 %v1280
        %v2574 = vpop.f32.mrb[0].mxu0
        %v2575 = vadd.f32 %v2350, %v2574
        %v2576 = vpop.f32.mrb[0].mxu0
        %2577 = vmatprep.mubr.f32.mxu0 0.0
        %2578 = vmatmul.mubr.f32.gmra.mrb[0].mxu0 %v1289
        %v2579 = vpop.f32.mrb[0].mxu0
        %v2580 = vadd.f32 %v2355, %v2579
        %v2581 = vpop.f32.mrb[0].mxu0
        %2582 = vmatprep.mubr.f32.mxu0 0.0
        %2583 = vmatmul.mubr.f32.gmra.mrb[0].mxu0 %v1298
        %v2584 = vpop.f32.mrb[0].mxu0
        %v2585 = vadd.f32 %v2360, %v2584
        %v2586 = vpop.f32.mrb[0].mxu0
        %2587 = vmatprep.mubr.f32.mxu0 0.0
        %2588 = vmatmul.mubr.f32.gmra.mrb[0].mxu0 %v1307
        %v2589 = vpop.f32.mrb[0].mxu0
        %v2590 = vadd.f32 %v2365, %v2589
        %v2591 = vpop.f32.mrb[0].mxu0
        %2592 = vmatprep.mubr.f32.mxu0 0.0
        %2593 = vmatmul.mubr.f32.gmra.mrb[0].mxu0 %v1316
        %v2594 = vpop.f32.mrb[0].mxu0
        %v2595 = vadd.f32 %v2370, %v2594
        %v2596 = vpop.f32.mrb[0].mxu0
        %2597 = vmatprep.mubr.f32.mxu0 0.0
        %2598 = vmatmul.mubr.f32.gmra.mrb[0].mxu0 %v1325
        %v2599 = vpop.f32.mrb[0].mxu0
        %v2600 = vadd.f32 %v2375, %v2599
        %v2601 = vpop.f32.mrb[0].mxu0
        %2602 = vmatprep.mubr.f32.mxu0 0.0
        %2603 = vmatmul.mubr.f32.gmra.mrb[0].mxu0 %v1334
        %v2604 = vpop.f32.mrb[0].mxu0
        %v2605 = vadd.f32 %v2380, %v2604
        %v2606 = vpop.f32.mrb[0].mxu0
        %2607 = vmatprep.mubr.f32.mxu0 0.0
        %2608 = vmatmul.mubr.f32.gmra.mrb[0].mxu0 %v1343
        %v2609 = vpop.f32.mrb[0].mxu0
        %v2610 = vadd.f32 %v2385, %v2609
        %v2611 = vpop.f32.mrb[0].mxu0
        %2612 = vdwg.mxu0
        %2613 = vst [vmem:[%s276] sm:$0xff] %v2455
        %2614 = vst [vmem:[%s276 + $0x8] sm:$0xff] %v2460
        %2615 = vst [vmem:[%s276 + $0x10] sm:$0xff] %v2465
        %2616 = vst [vmem:[%s276 + $0x18] sm:$0xff] %v2470
        %2617 = vst [vmem:[%s276 + $0x20] sm:$0xff] %v2475
        %2618 = vst [vmem:[%s276 + $0x28] sm:$0xff] %v2480
        %2619 = vst [vmem:[%s276 + $0x30] sm:$0xff] %v2485
        %2620 = vst [vmem:[%s276 + $0x38] sm:$0xff] %v2490
        %2621 = vst [vmem:[%s276 + $0x40] sm:$0xff] %v2495
        %2622 = vst [vmem:[%s276 + $0x48] sm:$0xff] %v2500
        %2623 = vst [vmem:[%s276 + $0x50] sm:$0xff] %v2505
        %2624 = vst [vmem:[%s276 + $0x58] sm:$0xff] %v2510
        %2625 = vst [vmem:[%s276 + $0x60] sm:$0xff] %v2515
        %2626 = vst [vmem:[%s276 + $0x68] sm:$0xff] %v2520
        %2627 = vst [vmem:[%s276 + $0x70] sm:$0xff] %v2525
        %2628 = vst [vmem:[%s276 + $0x78] sm:$0xff] %v2530
        %2629 = vst [vmem:[%s276 + $0x80] sm:$0xff] %v2535
        %2630 = vst [vmem:[%s276 + $0x88] sm:$0xff] %v2540
        %2631 = vst [vmem:[%s276 + $0x90] sm:$0xff] %v2545
        %2632 = vst [vmem:[%s276 + $0x98] sm:$0xff] %v2550
        %2633 = vst [vmem:[%s276 + $0xa0] sm:$0xff] %v2555
        %2634 = vst [vmem:[%s276 + $0xa8] sm:$0xff] %v2560
        %2635 = vst [vmem:[%s276 + $0xb0] sm:$0xff] %v2565
        %2636 = vst [vmem:[%s276 + $0xb8] sm:$0xff] %v2570
        %2637 = vst [vmem:[%s276 + $0xc0] sm:$0xff] %v2575
        %2638 = vst [vmem:[%s276 + $0xc8] sm:$0xff] %v2580
        %2639 = vst [vmem:[%s276 + $0xd0] sm:$0xff] %v2585
        %2640 = vst [vmem:[%s276 + $0xd8] sm:$0xff] %v2590
        %2641 = vst [vmem:[%s276 + $0xe0] sm:$0xff] %v2595
        %2642 = vst [vmem:[%s276 + $0xe8] sm:$0xff] %v2600
        %2643 = vst [vmem:[%s276 + $0xf0] sm:$0xff] %v2605
        %2644 = vst [vmem:[%s276 + $0xf8] sm:$0xff] %v2610
        %v2645 = vld [vmem:[#allocation10] sm:$0x1]
        %v2646 = vadd.f32 %v2455, %v2460
        %v2647 = vadd.f32 %v2646, %v2465
        %v2648 = vadd.f32 %v2647, %v2470
        %v2649 = vadd.f32 %v2648, %v2475
        %v2650 = vadd.f32 %v2649, %v2480
        %v2651 = vadd.f32 %v2650, %v2485
        %v2652 = vadd.f32 %v2651, %v2490
        %v2653 = vadd.f32 %v2652, %v2495
        %v2654 = vadd.f32 %v2653, %v2500
        %v2655 = vadd.f32 %v2654, %v2505
        %v2656 = vadd.f32 %v2655, %v2510
        %v2657 = vadd.f32 %v2656, %v2515
        %v2658 = vadd.f32 %v2657, %v2520
        %v2659 = vadd.f32 %v2658, %v2525
        %v2660 = vadd.f32 %v2659, %v2530
        %v2661 = vadd.f32 %v2660, %v2535
        %v2662 = vadd.f32 %v2661, %v2540
        %v2663 = vadd.f32 %v2662, %v2545
        %v2664 = vadd.f32 %v2663, %v2550
        %v2665 = vadd.f32 %v2664, %v2555
        %v2666 = vadd.f32 %v2665, %v2560
        %v2667 = vadd.f32 %v2666, %v2565
        %v2668 = vadd.f32 %v2667, %v2570
        %v2669 = vadd.f32 %v2668, %v2575
        %v2670 = vadd.f32 %v2669, %v2580
        %v2671 = vadd.f32 %v2670, %v2585
        %v2672 = vadd.f32 %v2671, %v2590
        %v2673 = vadd.f32 %v2672, %v2595
        %v2674 = vadd.f32 %v2673, %v2600
        %v2675 = vadd.f32 %v2674, %v2605
        %v2676 = vadd.f32 %v2675, %v2610
        %v2677 = vrot.slane %v2676, 4
        %v2678 = vadd.f32 %v2676, %v2677
        %v2679 = vrot.slane %v2678, 2
        %v2680 = vadd.f32 %v2678, %v2679
        %v2681 = vrot.slane %v2680, 1
        %v2682 = vadd.f32 %v2680, %v2681
        %v2683 = vadd.f32 %v2645, %v2682
        %2684 = vst [vmem:[#allocation10] sm:$0x1] %v2683
        %v2685 = vld [vmem:[#allocation12] sm:$0x1]
        %v2686 = vmul.f32 %v2455, %v2455
        %v2687 = vmul.f32 %v2460, %v2460
        %v2688 = vmul.f32 %v2465, %v2465
        %v2689 = vmul.f32 %v2470, %v2470
        %v2690 = vmul.f32 %v2475, %v2475
        %v2691 = vmul.f32 %v2480, %v2480
        %v2692 = vmul.f32 %v2485, %v2485
        %v2693 = vmul.f32 %v2490, %v2490
        %v2694 = vmul.f32 %v2495, %v2495
        %v2695 = vmul.f32 %v2500, %v2500
        %v2696 = vmul.f32 %v2505, %v2505
        %v2697 = vmul.f32 %v2510, %v2510
        %v2698 = vmul.f32 %v2515, %v2515
        %v2699 = vmul.f32 %v2520, %v2520
        %v2700 = vmul.f32 %v2525, %v2525
        %v2701 = vmul.f32 %v2530, %v2530
        %v2702 = vmul.f32 %v2535, %v2535
        %v2703 = vmul.f32 %v2540, %v2540
        %v2704 = vmul.f32 %v2545, %v2545
        %v2705 = vmul.f32 %v2550, %v2550
        %v2706 = vmul.f32 %v2555, %v2555
        %v2707 = vmul.f32 %v2560, %v2560
        %v2708 = vmul.f32 %v2565, %v2565
        %v2709 = vmul.f32 %v2570, %v2570
        %v2710 = vmul.f32 %v2575, %v2575
        %v2711 = vmul.f32 %v2580, %v2580
        %v2712 = vmul.f32 %v2585, %v2585
        %v2713 = vmul.f32 %v2590, %v2590
        %v2714 = vmul.f32 %v2595, %v2595
        %v2715 = vmul.f32 %v2600, %v2600
        %v2716 = vmul.f32 %v2605, %v2605
        %v2717 = vmul.f32 %v2610, %v2610
        %v2718 = vadd.f32 %v2686, %v2687
        %v2719 = vadd.f32 %v2718, %v2688
        %v2720 = vadd.f32 %v2719, %v2689
        %v2721 = vadd.f32 %v2720, %v2690
        %v2722 = vadd.f32 %v2721, %v2691
        %v2723 = vadd.f32 %v2722, %v2692
        %v2724 = vadd.f32 %v2723, %v2693
        %v2725 = vadd.f32 %v2724, %v2694
        %v2726 = vadd.f32 %v2725, %v2695
        %v2727 = vadd.f32 %v2726, %v2696
        %v2728 = vadd.f32 %v2727, %v2697
        %v2729 = vadd.f32 %v2728, %v2698
        %v2730 = vadd.f32 %v2729, %v2699
        %v2731 = vadd.f32 %v2730, %v2700
        %v2732 = vadd.f32 %v2731, %v2701
        %v2733 = vadd.f32 %v2732, %v2702
        %v2734 = vadd.f32 %v2733, %v2703
        %v2735 = vadd.f32 %v2734, %v2704
        %v2736 = vadd.f32 %v2735, %v2705
        %v2737 = vadd.f32 %v2736, %v2706
        %v2738 = vadd.f32 %v2737, %v2707
        %v2739 = vadd.f32 %v2738, %v2708
        %v2740 = vadd.f32 %v2739, %v2709
        %v2741 = vadd.f32 %v2740, %v2710
        %v2742 = vadd.f32 %v2741, %v2711
        %v2743 = vadd.f32 %v2742, %v2712
        %v2744 = vadd.f32 %v2743, %v2713
        %v2745 = vadd.f32 %v2744, %v2714
        %v2746 = vadd.f32 %v2745, %v2715
        %v2747 = vadd.f32 %v2746, %v2716
        %v2748 = vadd.f32 %v2747, %v2717
        %v2749 = vrot.slane %v2748, 4
        %v2750 = vadd.f32 %v2748, %v2749
        %v2751 = vrot.slane %v2750, 2
        %v2752 = vadd.f32 %v2750, %v2751
        %v2753 = vrot.slane %v2752, 1
        %v2754 = vadd.f32 %v2752, %v2753
        %v2755 = vadd.f32 %v2685, %v2754
        %2756 = vst [vmem:[#allocation12] sm:$0x1] %v2755
        %s2757 = sand.u32 %s123, 1
        %s2758 = scalar_lea.sflag [#allocation6], %s2757
        %s2759 = sand.u32 %s123, 1
        %s2760 = smul.addr %s2759, 256
        %s2761 = scalar_lea.vmem [#allocation9], %s2760
        // Predicated region
        $region49: #{tpu_custom_call.1} parent=35 // pred_check
          %p2762 = pneg %p133
        $region50: #{tpu_custom_call.1} parent=35 // pred_check_branch
          %2764 = sbr.rel (%p2762) target = $region52
        $region51: #{tpu_custom_call.1} parent=35 // pred_region
          %s2766 = ssub.s32 4096, 4096
          %2767 = vsyncadd %s2758, %s2766
          %s2768 = smul.addr %s26, 32
          %s2769 = smul.addr %s2768, 128
          %s2770 = scalar_lea.hbm %s4, %s2769
          %s2771 = sshll.u32 %s2761, 4
          %s2772 = int_to_ptr.vmem [resolvable:$true] %s2771
          %2777 = dma.vmem_to_hbm [thread:$0]  %s2772, 4096, %s2770, %s2758, 128, 128, 8
        $region52: #{tpu_custom_call.1} parent=35 // pred_fallthru
          _
        // Predicated region
        $region53: #{tpu_custom_call.1} parent=35 // pred_check
          %p2778 = pneg %p154
        $region54: #{tpu_custom_call.1} parent=35 // pred_check_branch
          %2780 = sbr.rel (%p2778) target = $region56
        $region55: #{tpu_custom_call.1} parent=35 // pred_region
          %s2782 = ssub.s32 16, 16
          %2783 = vsyncadd [#allocation11], %s2782
          %s2785 = sshll.u32 [#allocation10], 4
          %s2786 = int_to_ptr.vmem [resolvable:$true] %s2785
          %2788 = dma.vmem_to_hbm [thread:$0]  %s2786, 16, %s5, [#allocation11]
        $region56: #{tpu_custom_call.1} parent=35 // pred_fallthru
          _
        // Predicated region
        $region57: #{tpu_custom_call.1} parent=35 // pred_check
          %p2789 = pneg %p175
        $region58: #{tpu_custom_call.1} parent=35 // pred_check_branch
          %2791 = sbr.rel (%p2789) target = $region60
        $region59: #{tpu_custom_call.1} parent=35 // pred_region
          %s2793 = ssub.s32 16, 16
          %2794 = vsyncadd [#allocation11], %s2793
          %s2796 = sshll.u32 [#allocation12], 4
          %s2797 = int_to_ptr.vmem [resolvable:$true] %s2796
          %2799 = dma.vmem_to_hbm [thread:$0]  %s2797, 16, %s6, [#allocation11]
        $region60: #{tpu_custom_call.1} parent=35 // pred_fallthru
          _
        // Predicated region
        $region61: #{tpu_custom_call.1} parent=35 // pred_check
          %p2800 = pneg %p154
        $region62: #{tpu_custom_call.1} parent=35 // pred_check_branch
          %2802 = sbr.rel (%p2800) target = $region64
        $region63: #{tpu_custom_call.1} parent=35 // pred_region
          %2803 = dma.done [#allocation11], 16
        $region64: #{tpu_custom_call.1} parent=35 // pred_fallthru
          _
        // Predicated region
        $region65: #{tpu_custom_call.1} parent=35 // pred_check
          %p2804 = pneg %p175
        $region66: #{tpu_custom_call.1} parent=35 // pred_check_branch
          %2806 = sbr.rel (%p2804) target = $region68
        $region67: #{tpu_custom_call.1} parent=35 // pred_region
          %2807 = dma.done [#allocation11], 16
        $region68: #{tpu_custom_call.1} parent=35 // pred_fallthru
          _
      $region36: #{tpu_custom_call.1} parent=5 // pred_fallthru
        _
      %p2808 = scmp.le.s32.totalorder 2, %s21
      // Predicated region
      $region69: #{tpu_custom_call.1} parent=5 // pred_check
        %p2809 = pneg %p2808
      $region70: #{tpu_custom_call.1} parent=5 // pred_check_branch
        %2811 = sbr.rel (%p2809) target = $region72
      $region71: #{tpu_custom_call.1} parent=5 // pred_region
        %s2812 = ssub.s32 %s21, 2
        // Predicated region
        $region73: #{tpu_custom_call.1} parent=71 // pred_check
          %p2813 = pneg %p139
        $region74: #{tpu_custom_call.1} parent=71 // pred_check_branch
          %2815 = sbr.rel (%p2813) target = $region76
        $region75: #{tpu_custom_call.1} parent=71 // pred_region
          %s2816 = sand.u32 %s124, 1
          %s2817 = scalar_lea.sflag [#allocation6], %s2816
          %s2818 = sand.u32 %s124, 1
          %s2819 = smul.addr %s2818, 256
          %s2820 = scalar_lea.vmem [#allocation9], %s2819
          %2821 = dma.done %s2817, 4096
        $region76: #{tpu_custom_call.1} parent=71 // pred_fallthru
          _
      $region72: #{tpu_custom_call.1} parent=5 // pred_fallthru
        _
    $region6: #{tpu_custom_call.1} parent=1 // loop_footer
      %s25 = sadd.s32 1, %s21
    $region7: #{tpu_custom_call.1} parent=1 // loop_footer_branch
      %20 = sbr.rel target = $region3
    $region8: #{tpu_custom_call.1} parent=1 // loop_exit
      _
    %2822 = vsyncpa [#allocation5], 1
    %s2823 = scalar_lea.sflag [#allocation5], 1
    %2824 = vsyncpa %s2823, 1
    %2825 = vsyncpa [#allocation8], 1
    %2826 = vsyncpa [#allocation6], 1
    %s2827 = scalar_lea.sflag [#allocation6], 1
    %2828 = vsyncpa %s2827, 1
    %2829 = vsyncpa [#allocation11], 1

</llo_original>
